<compile_context>
chip_gen: v5e
topology: v5e:2x2
jax: 0.10.0
libtpu: 0.0.40
codegen_flags: <defaults>
</compile_context>

<pallas_src>
import functools

import numpy as np

import jax
import jax.numpy as jnp
from jax.experimental import pallas as pl
from jax.experimental.pallas import tpu as pltpu

LEAKY_SLOPE = 0.2
BN_EPS = 0.8          # nn.BatchNorm2d(C, 0.8) -> eps = 0.8
_LANES = 128

_LAYER_CFG = (
    # (kind, weight key, stride, padding, (gamma key, beta key) or None)
    ("convT", "ct1", (1, 1), (0, 0), ("bn1_g", "bn1_b")),
    ("convT", "ct2", (2, 2), (1, 1), ("bn2_g", "bn2_b")),
    ("convT", "ct3", (1, 2), (1, 1), ("bn3_g", "bn3_b")),
    ("convT", "ct4", (1, 2), (1, 0), ("bn4_g", "bn4_b")),
    ("conv",  "c5",  (2, 1), (1, 1), None),
    ("conv",  "c6",  (2, 1), (1, 1), None),
)


# ----------------------------------------------------------------------------
# Host-side (numpy) folding of conv structure into matmul operands
# ----------------------------------------------------------------------------
def _fold_row_map(weff, hin, ho, sh, off_h, dh):
    """Stacked per-tap row-space matrices: (kw*Ho*Cout, Hin*Cin).

    Row block j, entry [ho*Cout+co, hin*Cin+ci] = weff[co, ci, i, j] where
    i = off_h + hin*dh - ho*sh (0 <= i < kh), else 0.  Folds padding/
    dilation/stride along H plus the channel contraction.
    """
    cout, cin, kh, kw = weff.shape
    ho_idx = np.arange(ho)[:, None]
    hin_idx = np.arange(hin)[None, :]
    i_mat = off_h + hin_idx * dh - ho_idx * sh                # (Ho, Hin)
    mask = ((i_mat >= 0) & (i_mat < kh)).astype(np.float32)
    i_clip = np.clip(i_mat, 0, kh - 1)
    g = weff[:, :, i_clip, :]                                 # (Cout, Cin, Ho, Hin, kw)
    g = g * mask[None, None, :, :, None]
    g = np.transpose(g, (4, 2, 0, 3, 1))                      # (kw, Ho, Cout, Hin, Cin)
    return np.ascontiguousarray(g).reshape(kw * ho * cout, hin * cin)


def _fold_col_sel(win, wo, kw, sw, off_w, dw, n):
    """Per-tap col-space 0/1 matrices: (kw, Win*N, Wo*N).

    Sel[j, win*N+a, wo*N+b] = (a == b) & (off_w + win*dw == wo*sw + j).
    """
    win_idx = np.arange(win)[:, None]
    wo_idx = np.arange(wo)[None, :]
    eye_n = np.eye(n, dtype=np.float32)
    return np.stack(
        [np.kron(((off_w + win_idx * dw) == (wo_idx * sw + j)).astype(np.float32), eye_n)
         for j in range(kw)], axis=0)


def _pad8(r):
    return (r + 7) // 8 * 8


class _SlabBuilder:
    """Packs small matrices into one (rows, 128) slab with 8-row-aligned blocks."""

    def __init__(self):
        self.blocks = []
        self.rows = 0

    def add(self, a):
        a = np.asarray(a, np.float32)
        rows = _pad8(a.shape[0])
        blk = np.zeros((rows, _LANES), np.float32)
        blk[: a.shape[0], : a.shape[1]] = a
        off = self.rows
        self.blocks.append(blk)
        self.rows += rows
        return off

    def concat(self):
        return np.concatenate(self.blocks, axis=0)


def _prepare(params, n):
    """One-time host-side folding of all conv / BN structure into two slabs."""
    p = {k: np.asarray(v, np.float32) for k, v in params.items()}
    conv_sb, bn_sb = _SlabBuilder(), _SlabBuilder()
    meta = []
    flops, transcendentals = 0, 0

    hin, win, cin = 1, 1, p["ct1"].shape[0]
    for kind, wkey, stride, padding, bn in _LAYER_CFG:
        w = p[wkey]
        if kind == "convT":
            cin_w, cout, kh, kw = w.shape
            # equivalent direct conv: swap in/out channels, flip spatially
            weff = np.transpose(w[:, :, ::-1, ::-1], (1, 0, 2, 3))   # (Cout, Cin, kh, kw)
            off_h, dh, sh = kh - 1 - padding[0], stride[0], 1
            off_w, dw, sw = kw - 1 - padding[1], stride[1], 1
            hv = (hin - 1) * stride[0] + 1 + 2 * off_h
            wv = (win - 1) * stride[1] + 1 + 2 * off_w
        else:
            cout, cin_w, kh, kw = w.shape
            weff = w
            off_h, dh, sh = padding[0], 1, stride[0]
            off_w, dw, sw = padding[1], 1, stride[1]
            hv = hin + 2 * padding[0]
            wv = win + 2 * padding[1]
        assert cin_w == cin
        ho = (hv - kh) // sh + 1
        wo = (wv - kw) // sw + 1

        k_dim, hocout = hin * cin, ho * cout
        winn, won = win * n, wo * n

        # stacked row-space weights (one tall matmul per layer in the kernel)
        w_off = conv_sb.add(_fold_row_map(weff, hin, ho, sh, off_h, dh))

        # per-tap column selection matrices, uniform 8-row stride per tap
        sel = _fold_col_sel(win, wo, kw, sw, off_w, dw, n)
        sel_stride = _pad8(winn)
        sel_block = np.zeros((kw * sel_stride, won), np.float32)
        for j in range(kw):
            sel_block[j * sel_stride: j * sel_stride + winn, :] = sel[j]
        sel_off = conv_sb.add(sel_block)

        if bn is not None:
            r = np.tile(np.eye(cout, dtype=np.float32), (1, ho))     # (Cout, Ho*Cout)
            bn_off = (bn_sb.add(r),
                      bn_sb.add(r.T),
                      bn_sb.add(p[bn[0]].reshape(cout, 1)),
                      bn_sb.add(p[bn[1]].reshape(cout, 1)))
            act = "bn_leaky"
            flops += 8 * cout * hocout + 6 * hocout * won
            transcendentals += cout
        elif wkey == "c6":
            bn_off, act = None, "tanh"
            transcendentals += hocout * won
        else:
            bn_off, act = None, "leaky"

        flops += 2 * (kw * hocout) * k_dim * winn + 2 * kw * hocout * winn * won
        meta.append(dict(kw=kw, k=k_dim, hocout=hocout, winn=winn, won=won,
                         cout=cout, ho=ho, w_off=w_off, sel_off=sel_off,
                         sel_stride=sel_stride, bn=bn_off, act=act))
        hin, win, cin = ho, wo, cout

    conv_slab = jnp.asarray(conv_sb.concat(), dtype=jnp.bfloat16)   # MXU operands
    bn_slab = jnp.asarray(bn_sb.concat(), dtype=jnp.float32)        # BN stats stay f32

    bytes_accessed = (conv_slab.size * 2 + bn_slab.size * 4
                      + p["ct1"].shape[0] * n * 4 + hin * cin * win * n * 4)
    cost = pl.CostEstimate(flops=int(flops), transcendentals=int(transcendentals),
                           bytes_accessed=int(bytes_accessed))
    return conv_slab, bn_slab, tuple(meta), (hin, win, cin), cost


# ----------------------------------------------------------------------------
# The fused Pallas kernel (whole net, single invocation, VMEM-resident)
# ----------------------------------------------------------------------------
def _generator_kernel(meta, x_ref, conv_ref, bn_ref, o_ref):
    h = x_ref[...]                                              # f32 (Hin*Cin, Win*N)
    for lm in meta:
        kw, hocout = lm["kw"], lm["hocout"]

        # 1) stacked row-space map: one tall bf16 MXU matmul over all kw taps
        w_rows = kw * hocout
        w = conv_ref[lm["w_off"]: lm["w_off"] + w_rows, 0: lm["k"]]            # bf16
        t_all = jnp.dot(w, h.astype(jnp.bfloat16),
                        preferred_element_type=jnp.float32)                    # (kw*HoCout, WinN)

        # 2) column-space scatter: kw small Sel matmuls on aligned row slices
        y = None
        for j in range(kw):
            so = lm["sel_off"] + j * lm["sel_stride"]
            sel_j = conv_ref[so: so + lm["winn"], 0: lm["won"]]                # bf16 (0/1 exact)
            t_j = t_all[j * hocout:(j + 1) * hocout, :].astype(jnp.bfloat16)
            y_j = jnp.dot(t_j, sel_j, preferred_element_type=jnp.float32)
            y = y_j if y is None else y + y_j                                  # (HoCout, WoN) f32

        # 3) normalization / activation (all statistics kept in f32)
        if lm["act"] == "bn_leaky":
            cout = lm["cout"]
            r_off, t_off, g_off, b_off = lm["bn"]
            r = bn_ref[r_off: r_off + cout, 0: hocout]                         # (Cout, HoCout)
            tmat = bn_ref[t_off: t_off + hocout, 0: cout]                      # (HoCout, Cout)
            gamma = bn_ref[g_off: g_off + cout, 0:1]                           # (Cout, 1)
            beta = bn_ref[b_off: b_off + cout, 0:1]
            # lane reductions first (XLU), then N=1 gather mat-vecs (MXU)
            ysum = jnp.sum(y, axis=-1, keepdims=True)                          # (HoCout, 1)
            y2sum = jnp.sum(y * y, axis=-1, keepdims=True)
            inv_count = 1.0 / float(lm["ho"] * lm["won"])                      # 1 / (N*Ho*Wo)
            mean = jnp.dot(r, ysum, preferred_element_type=jnp.float32) * inv_count
            ex2 = jnp.dot(r, y2sum, preferred_element_type=jnp.float32) * inv_count
            var = ex2 - mean * mean                                            # biased var
            scale = gamma * jax.lax.rsqrt(var + BN_EPS)                        # (Cout, 1)
            shift = beta - mean * scale
            # N=1 broadcast mat-vecs; lane broadcast handled by the VPU
            scale_f = jnp.dot(tmat, scale, preferred_element_type=jnp.float32)  # (HoCout, 1)
            shift_f = jnp.dot(tmat, shift, preferred_element_type=jnp.float32)
            y = y * scale_f + shift_f
            h = jnp.where(y >= 0, y, LEAKY_SLOPE * y)
        elif lm["act"] == "leaky":
            h = jnp.where(y >= 0, y, LEAKY_SLOPE * y)
        else:
            h = jnp.tanh(y)                                                    # f32 tanh input

    o_ref[...] = h


def make_generator_forward(params, batch):
    """Build a jitted forward for a fixed parameter set / batch size.

    Weight folding runs here once (host-side numpy); the per-call graph is
    input transpose -> one fused pallas_call -> output reshape."""
    conv_slab, bn_slab, meta, (h_out, w_out, c_out), cost = _prepare(params, batch)
    vmem_spec = pl.BlockSpec(memory_space=pltpu.MemorySpace.VMEM)

    call = pl.pallas_call(
        functools.partial(_generator_kernel, meta),
        out_shape=jax.ShapeDtypeStruct((h_out * c_out, w_out * batch), jnp.float32),
        in_specs=[vmem_spec, vmem_spec, vmem_spec],
        out_specs=vmem_spec,
        compiler_params=pltpu.CompilerParams(vmem_limit_bytes=8 * 1024 * 1024),
        cost_estimate=cost,
    )

    @jax.jit
    def forward(x):
        x0 = x.reshape(batch, -1).T.astype(jnp.float32)         # (noise_dim, N)
        out = call(x0, conv_slab, bn_slab)                       # (Ho*Cout, Wo*N)
        return out.reshape(h_out, c_out, w_out, batch).transpose(3, 1, 0, 2)

    return forward


# ----------------------------------------------------------------------------
# Parameters (PyTorch-shaped) and a pure-XLA reference for validation
# ----------------------------------------------------------------------------
def init_params(key, noise_dim):
    s = 2
    ks = jax.random.split(key, 14)
    w = lambda k, shape: (0.05 * jax.random.normal(k, shape)).astype(jnp.float32)
    return {
        "ct1": w(ks[0], (noise_dim, s * 16, 4, 4)),
        "bn1_g": 1.0 + 0.1 * jax.random.normal(ks[1], (s * 16,), jnp.float32),
        "bn1_b": 0.1 * jax.random.normal(ks[2], (s * 16,), jnp.float32),
        "ct2": w(ks[3], (s * 16, s * 8, 4, 4)),
        "bn2_g": 1.0 + 0.1 * jax.random.normal(ks[4], (s * 8,), jnp.float32),
        "bn2_b": 0.1 * jax.random.normal(ks[5], (s * 8,), jnp.float32),
        "ct3": w(ks[6], (s * 8, s * 4, 3, 4)),
        "bn3_g": 1.0 + 0.1 * jax.random.normal(ks[7], (s * 4,), jnp.float32),
        "bn3_b": 0.1 * jax.random.normal(ks[8], (s * 4,), jnp.float32),
        "ct4": w(ks[9], (s * 4, s * 2, 3, 4)),
        "bn4_g": 1.0 + 0.1 * jax.random.normal(ks[10], (s * 2,), jnp.float32),
        "bn4_b": 0.1 * jax.random.normal(ks[11], (s * 2,), jnp.float32),
        "c5": w(ks[12], (s, s * 2, 4, 3)),
        "c6": w(ks[13], (1, s, 4, 3)),
    }


def _reference_forward(params, x):
    """Pure-XLA reference (lax.conv_general_dilated) with identical semantics."""
    dn = ("NCHW", "OIHW", "NCHW")
    hi = jax.lax.Precision.HIGHEST

    def conv_t(h, w, stride, padding):
        kh, kw = w.shape[2], w.shape[3]
        w_eq = jnp.flip(w, (2, 3)).transpose(1, 0, 2, 3)
        pad = ((kh - 1 - padding[0],) * 2, (kw - 1 - padding[1],) * 2)
        return jax.lax.conv_general_dilated(
            h, w_eq, window_strides=(1, 1), padding=pad, lhs_dilation=stride,
            dimension_numbers=dn, precision=hi)

    def conv(h, w, stride, padding):
        return jax.lax.conv_general_dilated(
            h, w, window_strides=stride,
            padding=((padding[0],) * 2, (padding[1],) * 2),
            dimension_numbers=dn, precision=hi)

    def bn_leaky(h, g, b):
        mean = jnp.mean(h, axis=(0, 2, 3), keepdims=True)
        var = jnp.mean((h - mean) ** 2, axis=(0, 2, 3), keepdims=True)
        y = (h - mean) * jax.lax.rsqrt(var + BN_EPS)
        y = y * g.reshape(1, -1, 1, 1) + b.reshape(1, -1, 1, 1)
        return jnp.where(y >= 0, y, LEAKY_SLOPE * y)

    h = conv_t(x, params["ct1"], (1, 1), (0, 0)); h = bn_leaky(h, params["bn1_g"], params["bn1_b"])
    h = conv_t(h, params["ct2"], (2, 2), (1, 1)); h = bn_leaky(h, params["bn2_g"], params["bn2_b"])
    h = conv_t(h, params["ct3"], (1, 2), (1, 1)); h = bn_leaky(h, params["bn3_g"], params["bn3_b"])
    h = conv_t(h, params["ct4"], (1, 2), (1, 0)); h = bn_leaky(h, params["bn4_g"], params["bn4_b"])
    h = conv(h, params["c5"], (2, 1), (1, 1)); h = jnp.where(h >= 0, h, LEAKY_SLOPE * h)
    h = conv(h, params["c6"], (2, 1), (1, 1))
    return jnp.tanh(h)


if __name__ == "__main__":
    noise_dim = 8
    batch = 2
    key = jax.random.PRNGKey(0)
    k_param, k_x = jax.random.split(key)
    params = init_params(k_param, noise_dim)
    # standard DCGAN latent: (N, noise_dim, 1, 1)
    x = jax.random.normal(k_x, (batch, noise_dim, 1, 1), jnp.float32)

    forward = make_generator_forward(params, batch)   # one-time host-side folding
    out = jax.block_until_ready(forward(x))
    ref = jax.block_until_ready(jax.jit(_reference_forward)(params, x))

    assert out.shape == (batch, 1, 2, 34), out.shape
    assert bool(jnp.all(jnp.isfinite(out)))
    assert bool(jnp.all(jnp.abs(out) <= 1.0))                  # tanh output range
    err = float(jnp.max(jnp.abs(out - ref)))
    assert err < 3e-2, err                                     # matches PyTorch-equivalent reference
    print("KERNEL_OK")
</pallas_src>

<mosaic_0001>
module attributes {stable_mosaic.version = 11 : i64} {
  func.func @_generator_kernel(%arg0: memref<8x2xf32, #tpu.memory_space<vmem>>, %arg1: memref<2128x128xbf16, #tpu.memory_space<vmem>>, %arg2: memref<544x128xf32, #tpu.memory_space<vmem>>, %arg3: memref<2x68xf32, #tpu.memory_space<vmem>>) attributes {dimension_semantics = [], scalar_prefetch = 0 : i64, scratch_operands = 0 : i64, tpu.core_type = #tpu.core_type<tc>} {
    %c0 = arith.constant 0 : index
    %c0_0 = arith.constant 0 : index
    %0 = vector.load %arg0[%c0, %c0_0] : memref<8x2xf32, #tpu.memory_space<vmem>>, vector<8x2xf32>
    %c0_1 = arith.constant 0 : index
    %c0_2 = arith.constant 0 : index
    %1 = vector.load %arg1[%c0_1, %c0_2] : memref<2128x128xbf16, #tpu.memory_space<vmem>>, vector<512x8xbf16>
    %2 = arith.truncf %0 : vector<8x2xf32> to vector<8x2xbf16>
    %cst = arith.constant dense<0.000000e+00> : vector<512x2xf32>
    %3 = tpu.matmul %1, %2, %cst {dimension_numbers = #tpu.dot_dimension_numbers<[1], [0], [0], [1], [0, 0, 1, 1], [], []>} : vector<512x8xbf16>, vector<8x2xbf16>, vector<512x2xf32> -> vector<512x2xf32>
    %c512 = arith.constant 512 : index
    %c0_3 = arith.constant 0 : index
    %4 = vector.load %arg1[%c512, %c0_3] : memref<2128x128xbf16, #tpu.memory_space<vmem>>, vector<2x8xbf16>
    %5 = vector.extract_strided_slice %3 {offsets = [0, 0], sizes = [128, 2], strides = [1, 1]} : vector<512x2xf32> to vector<128x2xf32>
    %6 = arith.truncf %5 : vector<128x2xf32> to vector<128x2xbf16>
    %cst_4 = arith.constant dense<0.000000e+00> : vector<128x8xf32>
    %7 = tpu.matmul %6, %4, %cst_4 {dimension_numbers = #tpu.dot_dimension_numbers<[1], [0], [0], [1], [0, 0, 1, 1], [], []>} : vector<128x2xbf16>, vector<2x8xbf16>, vector<128x8xf32> -> vector<128x8xf32>
    %c520 = arith.constant 520 : index
    %c0_5 = arith.constant 0 : index
    %8 = vector.load %arg1[%c520, %c0_5] : memref<2128x128xbf16, #tpu.memory_space<vmem>>, vector<2x8xbf16>
    %9 = vector.extract_strided_slice %3 {offsets = [128, 0], sizes = [128, 2], strides = [1, 1]} : vector<512x2xf32> to vector<128x2xf32>
    %10 = arith.truncf %9 : vector<128x2xf32> to vector<128x2xbf16>
    %cst_6 = arith.constant dense<0.000000e+00> : vector<128x8xf32>
    %11 = tpu.matmul %10, %8, %cst_6 {dimension_numbers = #tpu.dot_dimension_numbers<[1], [0], [0], [1], [0, 0, 1, 1], [], []>} : vector<128x2xbf16>, vector<2x8xbf16>, vector<128x8xf32> -> vector<128x8xf32>
    %12 = arith.addf %7, %11 : vector<128x8xf32>
    %c528 = arith.constant 528 : index
    %c0_7 = arith.constant 0 : index
    %13 = vector.load %arg1[%c528, %c0_7] : memref<2128x128xbf16, #tpu.memory_space<vmem>>, vector<2x8xbf16>
    %14 = vector.extract_strided_slice %3 {offsets = [256, 0], sizes = [128, 2], strides = [1, 1]} : vector<512x2xf32> to vector<128x2xf32>
    %15 = arith.truncf %14 : vector<128x2xf32> to vector<128x2xbf16>
    %cst_8 = arith.constant dense<0.000000e+00> : vector<128x8xf32>
    %16 = tpu.matmul %15, %13, %cst_8 {dimension_numbers = #tpu.dot_dimension_numbers<[1], [0], [0], [1], [0, 0, 1, 1], [], []>} : vector<128x2xbf16>, vector<2x8xbf16>, vector<128x8xf32> -> vector<128x8xf32>
    %17 = arith.addf %12, %16 : vector<128x8xf32>
    %c536 = arith.constant 536 : index
    %c0_9 = arith.constant 0 : index
    %18 = vector.load %arg1[%c536, %c0_9] : memref<2128x128xbf16, #tpu.memory_space<vmem>>, vector<2x8xbf16>
    %19 = vector.extract_strided_slice %3 {offsets = [384, 0], sizes = [128, 2], strides = [1, 1]} : vector<512x2xf32> to vector<128x2xf32>
    %20 = arith.truncf %19 : vector<128x2xf32> to vector<128x2xbf16>
    %cst_10 = arith.constant dense<0.000000e+00> : vector<128x8xf32>
    %21 = tpu.matmul %20, %18, %cst_10 {dimension_numbers = #tpu.dot_dimension_numbers<[1], [0], [0], [1], [0, 0, 1, 1], [], []>} : vector<128x2xbf16>, vector<2x8xbf16>, vector<128x8xf32> -> vector<128x8xf32>
    %22 = arith.addf %17, %21 : vector<128x8xf32>
    %c0_11 = arith.constant 0 : index
    %c0_12 = arith.constant 0 : index
    %23 = vector.load %arg2[%c0_11, %c0_12] : memref<544x128xf32, #tpu.memory_space<vmem>>, vector<32x128xf32>
    %c32 = arith.constant 32 : index
    %c0_13 = arith.constant 0 : index
    %24 = vector.load %arg2[%c32, %c0_13] : memref<544x128xf32, #tpu.memory_space<vmem>>, vector<128x32xf32>
    %c160 = arith.constant 160 : index
    %c0_14 = arith.constant 0 : index
    %25 = vector.load %arg2[%c160, %c0_14] : memref<544x128xf32, #tpu.memory_space<vmem>>, vector<32x1xf32>
    %c192 = arith.constant 192 : index
    %c0_15 = arith.constant 0 : index
    %26 = vector.load %arg2[%c192, %c0_15] : memref<544x128xf32, #tpu.memory_space<vmem>>, vector<32x1xf32>
    %cst_16 = arith.constant dense<0.000000e+00> : vector<128xf32>
    %27 = vector.multi_reduction <add>, %22, %cst_16 [1] : vector<128x8xf32> to vector<128xf32>
    %28 = vector.shape_cast %27 : vector<128xf32> to vector<128x1xf32>
    %29 = arith.mulf %22, %22 : vector<128x8xf32>
    %cst_17 = arith.constant dense<0.000000e+00> : vector<128xf32>
    %30 = vector.multi_reduction <add>, %29, %cst_17 [1] : vector<128x8xf32> to vector<128xf32>
    %31 = vector.shape_cast %30 : vector<128xf32> to vector<128x1xf32>
    %cst_18 = arith.constant dense<0.000000e+00> : vector<32x1xf32>
    %32 = tpu.matmul %23, %28, %cst_18 {dimension_numbers = #tpu.dot_dimension_numbers<[1], [0], [0], [1], [0, 0, 1, 1], [], []>} : vector<32x128xf32>, vector<128x1xf32>, vector<32x1xf32> -> vector<32x1xf32>
    %cst_19 = arith.constant 3.125000e-02 : f32
    %33 = vector.broadcast %cst_19 : f32 to vector<32x1xf32>
    %34 = arith.mulf %32, %33 : vector<32x1xf32>
    %cst_20 = arith.constant dense<0.000000e+00> : vector<32x1xf32>
    %35 = tpu.matmul %23, %31, %cst_20 {dimension_numbers = #tpu.dot_dimension_numbers<[1], [0], [0], [1], [0, 0, 1, 1], [], []>} : vector<32x128xf32>, vector<128x1xf32>, vector<32x1xf32> -> vector<32x1xf32>
    %cst_21 = arith.constant 3.125000e-02 : f32
    %36 = vector.broadcast %cst_21 : f32 to vector<32x1xf32>
    %37 = arith.mulf %35, %36 : vector<32x1xf32>
    %38 = arith.mulf %34, %34 : vector<32x1xf32>
    %39 = arith.subf %37, %38 : vector<32x1xf32>
    %cst_22 = arith.constant 8.000000e-01 : f32
    %40 = vector.broadcast %cst_22 : f32 to vector<32x1xf32>
    %41 = arith.addf %39, %40 : vector<32x1xf32>
    %42 = math.rsqrt %41 : vector<32x1xf32>
    %43 = arith.mulf %25, %42 : vector<32x1xf32>
    %44 = arith.mulf %34, %43 : vector<32x1xf32>
    %45 = arith.subf %26, %44 : vector<32x1xf32>
    %cst_23 = arith.constant dense<0.000000e+00> : vector<128x1xf32>
    %46 = tpu.matmul %24, %43, %cst_23 {dimension_numbers = #tpu.dot_dimension_numbers<[1], [0], [0], [1], [0, 0, 1, 1], [], []>} : vector<128x32xf32>, vector<32x1xf32>, vector<128x1xf32> -> vector<128x1xf32>
    %cst_24 = arith.constant dense<0.000000e+00> : vector<128x1xf32>
    %47 = tpu.matmul %24, %45, %cst_24 {dimension_numbers = #tpu.dot_dimension_numbers<[1], [0], [0], [1], [0, 0, 1, 1], [], []>} : vector<128x32xf32>, vector<32x1xf32>, vector<128x1xf32> -> vector<128x1xf32>
    %48 = vector.broadcast %46 : vector<128x1xf32> to vector<128x8xf32>
    %49 = arith.mulf %22, %48 : vector<128x8xf32>
    %50 = vector.broadcast %47 : vector<128x1xf32> to vector<128x8xf32>
    %51 = arith.addf %49, %50 : vector<128x8xf32>
    %cst_25 = arith.constant 0.000000e+00 : f32
    %52 = vector.broadcast %cst_25 : f32 to vector<128x8xf32>
    %53 = arith.cmpf oge, %51, %52 : vector<128x8xf32>
    %cst_26 = arith.constant 2.000000e-01 : f32
    %54 = vector.broadcast %cst_26 : f32 to vector<128x8xf32>
    %55 = arith.mulf %54, %51 : vector<128x8xf32>
    %56 = arith.select %53, %51, %55 : vector<128x8xi1>, vector<128x8xf32>
    %c544 = arith.constant 544 : index
    %c0_27 = arith.constant 0 : index
    %57 = vector.load %arg1[%c544, %c0_27] : memref<2128x128xbf16, #tpu.memory_space<vmem>>, vector<512x128xbf16>
    %58 = arith.truncf %56 : vector<128x8xf32> to vector<128x8xbf16>
    %cst_28 = arith.constant dense<0.000000e+00> : vector<512x8xf32>
    %59 = tpu.matmul %57, %58, %cst_28 {dimension_numbers = #tpu.dot_dimension_numbers<[1], [0], [0], [1], [0, 0, 1, 1], [], []>} : vector<512x128xbf16>, vector<128x8xbf16>, vector<512x8xf32> -> vector<512x8xf32>
    %c1056 = arith.constant 1056 : index
    %c0_29 = arith.constant 0 : index
    %60 = vector.load %arg1[%c1056, %c0_29] : memref<2128x128xbf16, #tpu.memory_space<vmem>>, vector<8x16xbf16>
    %61 = vector.extract_strided_slice %59 {offsets = [0, 0], sizes = [128, 8], strides = [1, 1]} : vector<512x8xf32> to vector<128x8xf32>
    %62 = arith.truncf %61 : vector<128x8xf32> to vector<128x8xbf16>
    %cst_30 = arith.constant dense<0.000000e+00> : vector<128x16xf32>
    %63 = tpu.matmul %62, %60, %cst_30 {dimension_numbers = #tpu.dot_dimension_numbers<[1], [0], [0], [1], [0, 0, 1, 1], [], []>} : vector<128x8xbf16>, vector<8x16xbf16>, vector<128x16xf32> -> vector<128x16xf32>
    %c1064 = arith.constant 1064 : index
    %c0_31 = arith.constant 0 : index
    %64 = vector.load %arg1[%c1064, %c0_31] : memref<2128x128xbf16, #tpu.memory_space<vmem>>, vector<8x16xbf16>
    %65 = vector.extract_strided_slice %59 {offsets = [128, 0], sizes = [128, 8], strides = [1, 1]} : vector<512x8xf32> to vector<128x8xf32>
    %66 = arith.truncf %65 : vector<128x8xf32> to vector<128x8xbf16>
    %cst_32 = arith.constant dense<0.000000e+00> : vector<128x16xf32>
    %67 = tpu.matmul %66, %64, %cst_32 {dimension_numbers = #tpu.dot_dimension_numbers<[1], [0], [0], [1], [0, 0, 1, 1], [], []>} : vector<128x8xbf16>, vector<8x16xbf16>, vector<128x16xf32> -> vector<128x16xf32>
    %68 = arith.addf %63, %67 : vector<128x16xf32>
    %c1072 = arith.constant 1072 : index
    %c0_33 = arith.constant 0 : index
    %69 = vector.load %arg1[%c1072, %c0_33] : memref<2128x128xbf16, #tpu.memory_space<vmem>>, vector<8x16xbf16>
    %70 = vector.extract_strided_slice %59 {offsets = [256, 0], sizes = [128, 8], strides = [1, 1]} : vector<512x8xf32> to vector<128x8xf32>
    %71 = arith.truncf %70 : vector<128x8xf32> to vector<128x8xbf16>
    %cst_34 = arith.constant dense<0.000000e+00> : vector<128x16xf32>
    %72 = tpu.matmul %71, %69, %cst_34 {dimension_numbers = #tpu.dot_dimension_numbers<[1], [0], [0], [1], [0, 0, 1, 1], [], []>} : vector<128x8xbf16>, vector<8x16xbf16>, vector<128x16xf32> -> vector<128x16xf32>
    %73 = arith.addf %68, %72 : vector<128x16xf32>
    %c1080 = arith.constant 1080 : index
    %c0_35 = arith.constant 0 : index
    %74 = vector.load %arg1[%c1080, %c0_35] : memref<2128x128xbf16, #tpu.memory_space<vmem>>, vector<8x16xbf16>
    %75 = vector.extract_strided_slice %59 {offsets = [384, 0], sizes = [128, 8], strides = [1, 1]} : vector<512x8xf32> to vector<128x8xf32>
    %76 = arith.truncf %75 : vector<128x8xf32> to vector<128x8xbf16>
    %cst_36 = arith.constant dense<0.000000e+00> : vector<128x16xf32>
    %77 = tpu.matmul %76, %74, %cst_36 {dimension_numbers = #tpu.dot_dimension_numbers<[1], [0], [0], [1], [0, 0, 1, 1], [], []>} : vector<128x8xbf16>, vector<8x16xbf16>, vector<128x16xf32> -> vector<128x16xf32>
    %78 = arith.addf %73, %77 : vector<128x16xf32>
    %c224 = arith.constant 224 : index
    %c0_37 = arith.constant 0 : index
    %79 = vector.load %arg2[%c224, %c0_37] : memref<544x128xf32, #tpu.memory_space<vmem>>, vector<16x128xf32>
    %c240 = arith.constant 240 : index
    %c0_38 = arith.constant 0 : index
    %80 = vector.load %arg2[%c240, %c0_38] : memref<544x128xf32, #tpu.memory_space<vmem>>, vector<128x16xf32>
    %c368 = arith.constant 368 : index
    %c0_39 = arith.constant 0 : index
    %81 = vector.load %arg2[%c368, %c0_39] : memref<544x128xf32, #tpu.memory_space<vmem>>, vector<16x1xf32>
    %c384 = arith.constant 384 : index
    %c0_40 = arith.constant 0 : index
    %82 = vector.load %arg2[%c384, %c0_40] : memref<544x128xf32, #tpu.memory_space<vmem>>, vector<16x1xf32>
    %cst_41 = arith.constant dense<0.000000e+00> : vector<128xf32>
    %83 = vector.multi_reduction <add>, %78, %cst_41 [1] : vector<128x16xf32> to vector<128xf32>
    %84 = vector.shape_cast %83 : vector<128xf32> to vector<128x1xf32>
    %85 = arith.mulf %78, %78 : vector<128x16xf32>
    %cst_42 = arith.constant dense<0.000000e+00> : vector<128xf32>
    %86 = vector.multi_reduction <add>, %85, %cst_42 [1] : vector<128x16xf32> to vector<128xf32>
    %87 = vector.shape_cast %86 : vector<128xf32> to vector<128x1xf32>
    %cst_43 = arith.constant dense<0.000000e+00> : vector<16x1xf32>
    %88 = tpu.matmul %79, %84, %cst_43 {dimension_numbers = #tpu.dot_dimension_numbers<[1], [0], [0], [1], [0, 0, 1, 1], [], []>} : vector<16x128xf32>, vector<128x1xf32>, vector<16x1xf32> -> vector<16x1xf32>
    %cst_44 = arith.constant 7.812500e-03 : f32
    %89 = vector.broadcast %cst_44 : f32 to vector<16x1xf32>
    %90 = arith.mulf %88, %89 : vector<16x1xf32>
    %cst_45 = arith.constant dense<0.000000e+00> : vector<16x1xf32>
    %91 = tpu.matmul %79, %87, %cst_45 {dimension_numbers = #tpu.dot_dimension_numbers<[1], [0], [0], [1], [0, 0, 1, 1], [], []>} : vector<16x128xf32>, vector<128x1xf32>, vector<16x1xf32> -> vector<16x1xf32>
    %cst_46 = arith.constant 7.812500e-03 : f32
    %92 = vector.broadcast %cst_46 : f32 to vector<16x1xf32>
    %93 = arith.mulf %91, %92 : vector<16x1xf32>
    %94 = arith.mulf %90, %90 : vector<16x1xf32>
    %95 = arith.subf %93, %94 : vector<16x1xf32>
    %cst_47 = arith.constant 8.000000e-01 : f32
    %96 = vector.broadcast %cst_47 : f32 to vector<16x1xf32>
    %97 = arith.addf %95, %96 : vector<16x1xf32>
    %98 = math.rsqrt %97 : vector<16x1xf32>
    %99 = arith.mulf %81, %98 : vector<16x1xf32>
    %100 = arith.mulf %90, %99 : vector<16x1xf32>
    %101 = arith.subf %82, %100 : vector<16x1xf32>
    %cst_48 = arith.constant dense<0.000000e+00> : vector<128x1xf32>
    %102 = tpu.matmul %80, %99, %cst_48 {dimension_numbers = #tpu.dot_dimension_numbers<[1], [0], [0], [1], [0, 0, 1, 1], [], []>} : vector<128x16xf32>, vector<16x1xf32>, vector<128x1xf32> -> vector<128x1xf32>
    %cst_49 = arith.constant dense<0.000000e+00> : vector<128x1xf32>
    %103 = tpu.matmul %80, %101, %cst_49 {dimension_numbers = #tpu.dot_dimension_numbers<[1], [0], [0], [1], [0, 0, 1, 1], [], []>} : vector<128x16xf32>, vector<16x1xf32>, vector<128x1xf32> -> vector<128x1xf32>
    %104 = vector.broadcast %102 : vector<128x1xf32> to vector<128x16xf32>
    %105 = arith.mulf %78, %104 : vector<128x16xf32>
    %106 = vector.broadcast %103 : vector<128x1xf32> to vector<128x16xf32>
    %107 = arith.addf %105, %106 : vector<128x16xf32>
    %cst_50 = arith.constant 0.000000e+00 : f32
    %108 = vector.broadcast %cst_50 : f32 to vector<128x16xf32>
    %109 = arith.cmpf oge, %107, %108 : vector<128x16xf32>
    %cst_51 = arith.constant 2.000000e-01 : f32
    %110 = vector.broadcast %cst_51 : f32 to vector<128x16xf32>
    %111 = arith.mulf %110, %107 : vector<128x16xf32>
    %112 = arith.select %109, %107, %111 : vector<128x16xi1>, vector<128x16xf32>
    %c1088 = arith.constant 1088 : index
    %c0_52 = arith.constant 0 : index
    %113 = vector.load %arg1[%c1088, %c0_52] : memref<2128x128xbf16, #tpu.memory_space<vmem>>, vector<256x128xbf16>
    %114 = arith.truncf %112 : vector<128x16xf32> to vector<128x16xbf16>
    %cst_53 = arith.constant dense<0.000000e+00> : vector<256x16xf32>
    %115 = tpu.matmul %113, %114, %cst_53 {dimension_numbers = #tpu.dot_dimension_numbers<[1], [0], [0], [1], [0, 0, 1, 1], [], []>} : vector<256x128xbf16>, vector<128x16xbf16>, vector<256x16xf32> -> vector<256x16xf32>
    %c1344 = arith.constant 1344 : index
    %c0_54 = arith.constant 0 : index
    %116 = vector.load %arg1[%c1344, %c0_54] : memref<2128x128xbf16, #tpu.memory_space<vmem>>, vector<16x32xbf16>
    %117 = vector.extract_strided_slice %115 {offsets = [0, 0], sizes = [64, 16], strides = [1, 1]} : vector<256x16xf32> to vector<64x16xf32>
    %118 = arith.truncf %117 : vector<64x16xf32> to vector<64x16xbf16>
    %cst_55 = arith.constant dense<0.000000e+00> : vector<64x32xf32>
    %119 = tpu.matmul %118, %116, %cst_55 {dimension_numbers = #tpu.dot_dimension_numbers<[1], [0], [0], [1], [0, 0, 1, 1], [], []>} : vector<64x16xbf16>, vector<16x32xbf16>, vector<64x32xf32> -> vector<64x32xf32>
    %c1360 = arith.constant 1360 : index
    %c0_56 = arith.constant 0 : index
    %120 = vector.load %arg1[%c1360, %c0_56] : memref<2128x128xbf16, #tpu.memory_space<vmem>>, vector<16x32xbf16>
    %121 = vector.extract_strided_slice %115 {offsets = [64, 0], sizes = [64, 16], strides = [1, 1]} : vector<256x16xf32> to vector<64x16xf32>
    %122 = arith.truncf %121 : vector<64x16xf32> to vector<64x16xbf16>
    %cst_57 = arith.constant dense<0.000000e+00> : vector<64x32xf32>
    %123 = tpu.matmul %122, %120, %cst_57 {dimension_numbers = #tpu.dot_dimension_numbers<[1], [0], [0], [1], [0, 0, 1, 1], [], []>} : vector<64x16xbf16>, vector<16x32xbf16>, vector<64x32xf32> -> vector<64x32xf32>
    %124 = arith.addf %119, %123 : vector<64x32xf32>
    %c1376 = arith.constant 1376 : index
    %c0_58 = arith.constant 0 : index
    %125 = vector.load %arg1[%c1376, %c0_58] : memref<2128x128xbf16, #tpu.memory_space<vmem>>, vector<16x32xbf16>
    %126 = vector.extract_strided_slice %115 {offsets = [128, 0], sizes = [64, 16], strides = [1, 1]} : vector<256x16xf32> to vector<64x16xf32>
    %127 = arith.truncf %126 : vector<64x16xf32> to vector<64x16xbf16>
    %cst_59 = arith.constant dense<0.000000e+00> : vector<64x32xf32>
    %128 = tpu.matmul %127, %125, %cst_59 {dimension_numbers = #tpu.dot_dimension_numbers<[1], [0], [0], [1], [0, 0, 1, 1], [], []>} : vector<64x16xbf16>, vector<16x32xbf16>, vector<64x32xf32> -> vector<64x32xf32>
    %129 = arith.addf %124, %128 : vector<64x32xf32>
    %c1392 = arith.constant 1392 : index
    %c0_60 = arith.constant 0 : index
    %130 = vector.load %arg1[%c1392, %c0_60] : memref<2128x128xbf16, #tpu.memory_space<vmem>>, vector<16x32xbf16>
    %131 = vector.extract_strided_slice %115 {offsets = [192, 0], sizes = [64, 16], strides = [1, 1]} : vector<256x16xf32> to vector<64x16xf32>
    %132 = arith.truncf %131 : vector<64x16xf32> to vector<64x16xbf16>
    %cst_61 = arith.constant dense<0.000000e+00> : vector<64x32xf32>
    %133 = tpu.matmul %132, %130, %cst_61 {dimension_numbers = #tpu.dot_dimension_numbers<[1], [0], [0], [1], [0, 0, 1, 1], [], []>} : vector<64x16xbf16>, vector<16x32xbf16>, vector<64x32xf32> -> vector<64x32xf32>
    %134 = arith.addf %129, %133 : vector<64x32xf32>
    %c400 = arith.constant 400 : index
    %c0_62 = arith.constant 0 : index
    %135 = vector.load %arg2[%c400, %c0_62] : memref<544x128xf32, #tpu.memory_space<vmem>>, vector<8x64xf32>
    %c408 = arith.constant 408 : index
    %c0_63 = arith.constant 0 : index
    %136 = vector.load %arg2[%c408, %c0_63] : memref<544x128xf32, #tpu.memory_space<vmem>>, vector<64x8xf32>
    %c472 = arith.constant 472 : index
    %c0_64 = arith.constant 0 : index
    %137 = vector.load %arg2[%c472, %c0_64] : memref<544x128xf32, #tpu.memory_space<vmem>>, vector<8x1xf32>
    %c480 = arith.constant 480 : index
    %c0_65 = arith.constant 0 : index
    %138 = vector.load %arg2[%c480, %c0_65] : memref<544x128xf32, #tpu.memory_space<vmem>>, vector<8x1xf32>
    %cst_66 = arith.constant dense<0.000000e+00> : vector<64xf32>
    %139 = vector.multi_reduction <add>, %134, %cst_66 [1] : vector<64x32xf32> to vector<64xf32>
    %140 = vector.shape_cast %139 : vector<64xf32> to vector<64x1xf32>
    %141 = arith.mulf %134, %134 : vector<64x32xf32>
    %cst_67 = arith.constant dense<0.000000e+00> : vector<64xf32>
    %142 = vector.multi_reduction <add>, %141, %cst_67 [1] : vector<64x32xf32> to vector<64xf32>
    %143 = vector.shape_cast %142 : vector<64xf32> to vector<64x1xf32>
    %cst_68 = arith.constant dense<0.000000e+00> : vector<8x1xf32>
    %144 = tpu.matmul %135, %140, %cst_68 {dimension_numbers = #tpu.dot_dimension_numbers<[1], [0], [0], [1], [0, 0, 1, 1], [], []>} : vector<8x64xf32>, vector<64x1xf32>, vector<8x1xf32> -> vector<8x1xf32>
    %cst_69 = arith.constant 3.906250e-03 : f32
    %145 = vector.broadcast %cst_69 : f32 to vector<8x1xf32>
    %146 = arith.mulf %144, %145 : vector<8x1xf32>
    %cst_70 = arith.constant dense<0.000000e+00> : vector<8x1xf32>
    %147 = tpu.matmul %135, %143, %cst_70 {dimension_numbers = #tpu.dot_dimension_numbers<[1], [0], [0], [1], [0, 0, 1, 1], [], []>} : vector<8x64xf32>, vector<64x1xf32>, vector<8x1xf32> -> vector<8x1xf32>
    %cst_71 = arith.constant 3.906250e-03 : f32
    %148 = vector.broadcast %cst_71 : f32 to vector<8x1xf32>
    %149 = arith.mulf %147, %148 : vector<8x1xf32>
    %150 = arith.mulf %146, %146 : vector<8x1xf32>
    %151 = arith.subf %149, %150 : vector<8x1xf32>
    %cst_72 = arith.constant 8.000000e-01 : f32
    %152 = vector.broadcast %cst_72 : f32 to vector<8x1xf32>
    %153 = arith.addf %151, %152 : vector<8x1xf32>
    %154 = math.rsqrt %153 : vector<8x1xf32>
    %155 = arith.mulf %137, %154 : vector<8x1xf32>
    %156 = arith.mulf %146, %155 : vector<8x1xf32>
    %157 = arith.subf %138, %156 : vector<8x1xf32>
    %cst_73 = arith.constant dense<0.000000e+00> : vector<64x1xf32>
    %158 = tpu.matmul %136, %155, %cst_73 {dimension_numbers = #tpu.dot_dimension_numbers<[1], [0], [0], [1], [0, 0, 1, 1], [], []>} : vector<64x8xf32>, vector<8x1xf32>, vector<64x1xf32> -> vector<64x1xf32>
    %cst_74 = arith.constant dense<0.000000e+00> : vector<64x1xf32>
    %159 = tpu.matmul %136, %157, %cst_74 {dimension_numbers = #tpu.dot_dimension_numbers<[1], [0], [0], [1], [0, 0, 1, 1], [], []>} : vector<64x8xf32>, vector<8x1xf32>, vector<64x1xf32> -> vector<64x1xf32>
    %160 = vector.broadcast %158 : vector<64x1xf32> to vector<64x32xf32>
    %161 = arith.mulf %134, %160 : vector<64x32xf32>
    %162 = vector.broadcast %159 : vector<64x1xf32> to vector<64x32xf32>
    %163 = arith.addf %161, %162 : vector<64x32xf32>
    %cst_75 = arith.constant 0.000000e+00 : f32
    %164 = vector.broadcast %cst_75 : f32 to vector<64x32xf32>
    %165 = arith.cmpf oge, %163, %164 : vector<64x32xf32>
    %cst_76 = arith.constant 2.000000e-01 : f32
    %166 = vector.broadcast %cst_76 : f32 to vector<64x32xf32>
    %167 = arith.mulf %166, %163 : vector<64x32xf32>
    %168 = arith.select %165, %163, %167 : vector<64x32xi1>, vector<64x32xf32>
    %c1408 = arith.constant 1408 : index
    %c0_77 = arith.constant 0 : index
    %169 = vector.load %arg1[%c1408, %c0_77] : memref<2128x128xbf16, #tpu.memory_space<vmem>>, vector<128x64xbf16>
    %170 = arith.truncf %168 : vector<64x32xf32> to vector<64x32xbf16>
    %cst_78 = arith.constant dense<0.000000e+00> : vector<128x32xf32>
    %171 = tpu.matmul %169, %170, %cst_78 {dimension_numbers = #tpu.dot_dimension_numbers<[1], [0], [0], [1], [0, 0, 1, 1], [], []>} : vector<128x64xbf16>, vector<64x32xbf16>, vector<128x32xf32> -> vector<128x32xf32>
    %c1536 = arith.constant 1536 : index
    %c0_79 = arith.constant 0 : index
    %172 = vector.load %arg1[%c1536, %c0_79] : memref<2128x128xbf16, #tpu.memory_space<vmem>>, vector<32x68xbf16>
    %173 = vector.extract_strided_slice %171 {offsets = [0, 0], sizes = [32, 32], strides = [1, 1]} : vector<128x32xf32> to vector<32x32xf32>
    %174 = arith.truncf %173 : vector<32x32xf32> to vector<32x32xbf16>
    %cst_80 = arith.constant dense<0.000000e+00> : vector<32x68xf32>
    %175 = tpu.matmul %174, %172, %cst_80 {dimension_numbers = #tpu.dot_dimension_numbers<[1], [0], [0], [1], [0, 0, 1, 1], [], []>} : vector<32x32xbf16>, vector<32x68xbf16>, vector<32x68xf32> -> vector<32x68xf32>
    %c1568 = arith.constant 1568 : index
    %c0_81 = arith.constant 0 : index
    %176 = vector.load %arg1[%c1568, %c0_81] : memref<2128x128xbf16, #tpu.memory_space<vmem>>, vector<32x68xbf16>
    %177 = vector.extract_strided_slice %171 {offsets = [32, 0], sizes = [32, 32], strides = [1, 1]} : vector<128x32xf32> to vector<32x32xf32>
    %178 = arith.truncf %177 : vector<32x32xf32> to vector<32x32xbf16>
    %cst_82 = arith.constant dense<0.000000e+00> : vector<32x68xf32>
    %179 = tpu.matmul %178, %176, %cst_82 {dimension_numbers = #tpu.dot_dimension_numbers<[1], [0], [0], [1], [0, 0, 1, 1], [], []>} : vector<32x32xbf16>, vector<32x68xbf16>, vector<32x68xf32> -> vector<32x68xf32>
    %180 = arith.addf %175, %179 : vector<32x68xf32>
    %c1600 = arith.constant 1600 : index
    %c0_83 = arith.constant 0 : index
    %181 = vector.load %arg1[%c1600, %c0_83] : memref<2128x128xbf16, #tpu.memory_space<vmem>>, vector<32x68xbf16>
    %182 = vector.extract_strided_slice %171 {offsets = [64, 0], sizes = [32, 32], strides = [1, 1]} : vector<128x32xf32> to vector<32x32xf32>
    %183 = arith.truncf %182 : vector<32x32xf32> to vector<32x32xbf16>
    %cst_84 = arith.constant dense<0.000000e+00> : vector<32x68xf32>
    %184 = tpu.matmul %183, %181, %cst_84 {dimension_numbers = #tpu.dot_dimension_numbers<[1], [0], [0], [1], [0, 0, 1, 1], [], []>} : vector<32x32xbf16>, vector<32x68xbf16>, vector<32x68xf32> -> vector<32x68xf32>
    %185 = arith.addf %180, %184 : vector<32x68xf32>
    %c1632 = arith.constant 1632 : index
    %c0_85 = arith.constant 0 : index
    %186 = vector.load %arg1[%c1632, %c0_85] : memref<2128x128xbf16, #tpu.memory_space<vmem>>, vector<32x68xbf16>
    %187 = vector.extract_strided_slice %171 {offsets = [96, 0], sizes = [32, 32], strides = [1, 1]} : vector<128x32xf32> to vector<32x32xf32>
    %188 = arith.truncf %187 : vector<32x32xf32> to vector<32x32xbf16>
    %cst_86 = arith.constant dense<0.000000e+00> : vector<32x68xf32>
    %189 = tpu.matmul %188, %186, %cst_86 {dimension_numbers = #tpu.dot_dimension_numbers<[1], [0], [0], [1], [0, 0, 1, 1], [], []>} : vector<32x32xbf16>, vector<32x68xbf16>, vector<32x68xf32> -> vector<32x68xf32>
    %190 = arith.addf %185, %189 : vector<32x68xf32>
    %c488 = arith.constant 488 : index
    %c0_87 = arith.constant 0 : index
    %191 = vector.load %arg2[%c488, %c0_87] : memref<544x128xf32, #tpu.memory_space<vmem>>, vector<4x32xf32>
    %c496 = arith.constant 496 : index
    %c0_88 = arith.constant 0 : index
    %192 = vector.load %arg2[%c496, %c0_88] : memref<544x128xf32, #tpu.memory_space<vmem>>, vector<32x4xf32>
    %c528_89 = arith.constant 528 : index
    %c0_90 = arith.constant 0 : index
    %193 = vector.load %arg2[%c528_89, %c0_90] : memref<544x128xf32, #tpu.memory_space<vmem>>, vector<4x1xf32>
    %c536_91 = arith.constant 536 : index
    %c0_92 = arith.constant 0 : index
    %194 = vector.load %arg2[%c536_91, %c0_92] : memref<544x128xf32, #tpu.memory_space<vmem>>, vector<4x1xf32>
    %cst_93 = arith.constant dense<0.000000e+00> : vector<32xf32>
    %195 = vector.multi_reduction <add>, %190, %cst_93 [1] : vector<32x68xf32> to vector<32xf32>
    %196 = vector.shape_cast %195 : vector<32xf32> to vector<32x1xf32>
    %197 = arith.mulf %190, %190 : vector<32x68xf32>
    %cst_94 = arith.constant dense<0.000000e+00> : vector<32xf32>
    %198 = vector.multi_reduction <add>, %197, %cst_94 [1] : vector<32x68xf32> to vector<32xf32>
    %199 = vector.shape_cast %198 : vector<32xf32> to vector<32x1xf32>
    %cst_95 = arith.constant dense<0.000000e+00> : vector<4x1xf32>
    %200 = tpu.matmul %191, %196, %cst_95 {dimension_numbers = #tpu.dot_dimension_numbers<[1], [0], [0], [1], [0, 0, 1, 1], [], []>} : vector<4x32xf32>, vector<32x1xf32>, vector<4x1xf32> -> vector<4x1xf32>
    %cst_96 = arith.constant 0.0018382353 : f32
    %201 = vector.broadcast %cst_96 : f32 to vector<4x1xf32>
    %202 = arith.mulf %200, %201 : vector<4x1xf32>
    %cst_97 = arith.constant dense<0.000000e+00> : vector<4x1xf32>
    %203 = tpu.matmul %191, %199, %cst_97 {dimension_numbers = #tpu.dot_dimension_numbers<[1], [0], [0], [1], [0, 0, 1, 1], [], []>} : vector<4x32xf32>, vector<32x1xf32>, vector<4x1xf32> -> vector<4x1xf32>
    %cst_98 = arith.constant 0.0018382353 : f32
    %204 = vector.broadcast %cst_98 : f32 to vector<4x1xf32>
    %205 = arith.mulf %203, %204 : vector<4x1xf32>
    %206 = arith.mulf %202, %202 : vector<4x1xf32>
    %207 = arith.subf %205, %206 : vector<4x1xf32>
    %cst_99 = arith.constant 8.000000e-01 : f32
    %208 = vector.broadcast %cst_99 : f32 to vector<4x1xf32>
    %209 = arith.addf %207, %208 : vector<4x1xf32>
    %210 = math.rsqrt %209 : vector<4x1xf32>
    %211 = arith.mulf %193, %210 : vector<4x1xf32>
    %212 = arith.mulf %202, %211 : vector<4x1xf32>
    %213 = arith.subf %194, %212 : vector<4x1xf32>
    %cst_100 = arith.constant dense<0.000000e+00> : vector<32x1xf32>
    %214 = tpu.matmul %192, %211, %cst_100 {dimension_numbers = #tpu.dot_dimension_numbers<[1], [0], [0], [1], [0, 0, 1, 1], [], []>} : vector<32x4xf32>, vector<4x1xf32>, vector<32x1xf32> -> vector<32x1xf32>
    %cst_101 = arith.constant dense<0.000000e+00> : vector<32x1xf32>
    %215 = tpu.matmul %192, %213, %cst_101 {dimension_numbers = #tpu.dot_dimension_numbers<[1], [0], [0], [1], [0, 0, 1, 1], [], []>} : vector<32x4xf32>, vector<4x1xf32>, vector<32x1xf32> -> vector<32x1xf32>
    %216 = vector.broadcast %214 : vector<32x1xf32> to vector<32x68xf32>
    %217 = arith.mulf %190, %216 : vector<32x68xf32>
    %218 = vector.broadcast %215 : vector<32x1xf32> to vector<32x68xf32>
    %219 = arith.addf %217, %218 : vector<32x68xf32>
    %cst_102 = arith.constant 0.000000e+00 : f32
    %220 = vector.broadcast %cst_102 : f32 to vector<32x68xf32>
    %221 = arith.cmpf oge, %219, %220 : vector<32x68xf32>
    %cst_103 = arith.constant 2.000000e-01 : f32
    %222 = vector.broadcast %cst_103 : f32 to vector<32x68xf32>
    %223 = arith.mulf %222, %219 : vector<32x68xf32>
    %224 = arith.select %221, %219, %223 : vector<32x68xi1>, vector<32x68xf32>
    %c1664 = arith.constant 1664 : index
    %c0_104 = arith.constant 0 : index
    %225 = vector.load %arg1[%c1664, %c0_104] : memref<2128x128xbf16, #tpu.memory_space<vmem>>, vector<24x32xbf16>
    %226 = arith.truncf %224 : vector<32x68xf32> to vector<32x68xbf16>
    %cst_105 = arith.constant dense<0.000000e+00> : vector<24x68xf32>
    %227 = tpu.matmul %225, %226, %cst_105 {dimension_numbers = #tpu.dot_dimension_numbers<[1], [0], [0], [1], [0, 0, 1, 1], [], []>} : vector<24x32xbf16>, vector<32x68xbf16>, vector<24x68xf32> -> vector<24x68xf32>
    %c1688 = arith.constant 1688 : index
    %c0_106 = arith.constant 0 : index
    %228 = vector.load %arg1[%c1688, %c0_106] : memref<2128x128xbf16, #tpu.memory_space<vmem>>, vector<68x68xbf16>
    %229 = vector.extract_strided_slice %227 {offsets = [0, 0], sizes = [8, 68], strides = [1, 1]} : vector<24x68xf32> to vector<8x68xf32>
    %230 = arith.truncf %229 : vector<8x68xf32> to vector<8x68xbf16>
    %cst_107 = arith.constant dense<0.000000e+00> : vector<8x68xf32>
    %231 = tpu.matmul %230, %228, %cst_107 {dimension_numbers = #tpu.dot_dimension_numbers<[1], [0], [0], [1], [0, 0, 1, 1], [], []>} : vector<8x68xbf16>, vector<68x68xbf16>, vector<8x68xf32> -> vector<8x68xf32>
    %c1760 = arith.constant 1760 : index
    %c0_108 = arith.constant 0 : index
    %232 = vector.load %arg1[%c1760, %c0_108] : memref<2128x128xbf16, #tpu.memory_space<vmem>>, vector<68x68xbf16>
    %233 = vector.extract_strided_slice %227 {offsets = [8, 0], sizes = [8, 68], strides = [1, 1]} : vector<24x68xf32> to vector<8x68xf32>
    %234 = arith.truncf %233 : vector<8x68xf32> to vector<8x68xbf16>
    %cst_109 = arith.constant dense<0.000000e+00> : vector<8x68xf32>
    %235 = tpu.matmul %234, %232, %cst_109 {dimension_numbers = #tpu.dot_dimension_numbers<[1], [0], [0], [1], [0, 0, 1, 1], [], []>} : vector<8x68xbf16>, vector<68x68xbf16>, vector<8x68xf32> -> vector<8x68xf32>
    %236 = arith.addf %231, %235 : vector<8x68xf32>
    %c1832 = arith.constant 1832 : index
    %c0_110 = arith.constant 0 : index
    %237 = vector.load %arg1[%c1832, %c0_110] : memref<2128x128xbf16, #tpu.memory_space<vmem>>, vector<68x68xbf16>
    %238 = vector.extract_strided_slice %227 {offsets = [16, 0], sizes = [8, 68], strides = [1, 1]} : vector<24x68xf32> to vector<8x68xf32>
    %239 = arith.truncf %238 : vector<8x68xf32> to vector<8x68xbf16>
    %cst_111 = arith.constant dense<0.000000e+00> : vector<8x68xf32>
    %240 = tpu.matmul %239, %237, %cst_111 {dimension_numbers = #tpu.dot_dimension_numbers<[1], [0], [0], [1], [0, 0, 1, 1], [], []>} : vector<8x68xbf16>, vector<68x68xbf16>, vector<8x68xf32> -> vector<8x68xf32>
    %241 = arith.addf %236, %240 : vector<8x68xf32>
    %cst_112 = arith.constant 0.000000e+00 : f32
    %242 = vector.broadcast %cst_112 : f32 to vector<8x68xf32>
    %243 = arith.cmpf oge, %241, %242 : vector<8x68xf32>
    %cst_113 = arith.constant 2.000000e-01 : f32
    %244 = vector.broadcast %cst_113 : f32 to vector<8x68xf32>
    %245 = arith.mulf %244, %241 : vector<8x68xf32>
    %246 = arith.select %243, %241, %245 : vector<8x68xi1>, vector<8x68xf32>
    %c1904 = arith.constant 1904 : index
    %c0_114 = arith.constant 0 : index
    %247 = vector.load %arg1[%c1904, %c0_114] : memref<2128x128xbf16, #tpu.memory_space<vmem>>, vector<6x8xbf16>
    %248 = arith.truncf %246 : vector<8x68xf32> to vector<8x68xbf16>
    %cst_115 = arith.constant dense<0.000000e+00> : vector<6x68xf32>
    %249 = tpu.matmul %247, %248, %cst_115 {dimension_numbers = #tpu.dot_dimension_numbers<[1], [0], [0], [1], [0, 0, 1, 1], [], []>} : vector<6x8xbf16>, vector<8x68xbf16>, vector<6x68xf32> -> vector<6x68xf32>
    %c1912 = arith.constant 1912 : index
    %c0_116 = arith.constant 0 : index
    %250 = vector.load %arg1[%c1912, %c0_116] : memref<2128x128xbf16, #tpu.memory_space<vmem>>, vector<68x68xbf16>
    %251 = vector.extract_strided_slice %249 {offsets = [0, 0], sizes = [2, 68], strides = [1, 1]} : vector<6x68xf32> to vector<2x68xf32>
    %252 = arith.truncf %251 : vector<2x68xf32> to vector<2x68xbf16>
    %cst_117 = arith.constant dense<0.000000e+00> : vector<2x68xf32>
    %253 = tpu.matmul %252, %250, %cst_117 {dimension_numbers = #tpu.dot_dimension_numbers<[1], [0], [0], [1], [0, 0, 1, 1], [], []>} : vector<2x68xbf16>, vector<68x68xbf16>, vector<2x68xf32> -> vector<2x68xf32>
    %c1984 = arith.constant 1984 : index
    %c0_118 = arith.constant 0 : index
    %254 = vector.load %arg1[%c1984, %c0_118] : memref<2128x128xbf16, #tpu.memory_space<vmem>>, vector<68x68xbf16>
    %255 = vector.extract_strided_slice %249 {offsets = [2, 0], sizes = [2, 68], strides = [1, 1]} : vector<6x68xf32> to vector<2x68xf32>
    %256 = arith.truncf %255 : vector<2x68xf32> to vector<2x68xbf16>
    %cst_119 = arith.constant dense<0.000000e+00> : vector<2x68xf32>
    %257 = tpu.matmul %256, %254, %cst_119 {dimension_numbers = #tpu.dot_dimension_numbers<[1], [0], [0], [1], [0, 0, 1, 1], [], []>} : vector<2x68xbf16>, vector<68x68xbf16>, vector<2x68xf32> -> vector<2x68xf32>
    %258 = arith.addf %253, %257 : vector<2x68xf32>
    %c2056 = arith.constant 2056 : index
    %c0_120 = arith.constant 0 : index
    %259 = vector.load %arg1[%c2056, %c0_120] : memref<2128x128xbf16, #tpu.memory_space<vmem>>, vector<68x68xbf16>
    %260 = vector.extract_strided_slice %249 {offsets = [4, 0], sizes = [2, 68], strides = [1, 1]} : vector<6x68xf32> to vector<2x68xf32>
    %261 = arith.truncf %260 : vector<2x68xf32> to vector<2x68xbf16>
    %cst_121 = arith.constant dense<0.000000e+00> : vector<2x68xf32>
    %262 = tpu.matmul %261, %259, %cst_121 {dimension_numbers = #tpu.dot_dimension_numbers<[1], [0], [0], [1], [0, 0, 1, 1], [], []>} : vector<2x68xbf16>, vector<68x68xbf16>, vector<2x68xf32> -> vector<2x68xf32>
    %263 = arith.addf %258, %262 : vector<2x68xf32>
    %264 = math.tanh %263 : vector<2x68xf32>
    %c0_122 = arith.constant 0 : index
    %c0_123 = arith.constant 0 : index
    %265 = vector.load %arg3[%c0_122, %c0_123] : memref<2x68xf32, #tpu.memory_space<vmem>>, vector<2x68xf32>
    tpu.vector_store %arg3[%c0_122, %c0_123], %264 {strides = array<i32>} : memref<2x68xf32, #tpu.memory_space<vmem>>, vector<2x68xf32>,
    return
  }
}

</mosaic_0001>

<llo_original>
// kernel: forward.1
$region0: #{forward.1}
  #allocation0 [shape = 'u32[]', space=smem, size = 0x4, offset = 0x4, fixed_abs, tag = 'smem constant byte address 0x4 - core index']
  #allocation1 [shape = 'u32[72,128]{1,0:T(1,128)}', space=vmem, size = 0x9000, scoped, tag = 'internal scratch']
  %s0 = inlined_call_operand.vmem [shape: f32[8,2], index: 0, kind: input, shape index: {}]
  %s1 = inlined_call_operand.hbm [shape: bf16[2128,128], index: 1, kind: input, shape index: {}]
  %s2 = inlined_call_operand.hbm [shape: f32[544,128], index: 2, kind: input, shape index: {}]
  %s3 = inlined_call_operand.vmem [shape: f32[2,68], index: 3, kind: output, shape index: {}]
  %s4 = sld [smem:[#allocation0]]
  $region30: #{forward.1} parent=0
    _
  %s6 = ssub.s32 1, %s4
  %s7 = scalar_select 0, %s6, %s4
  $region1: #{forward.1} parent=0
    #allocation2 [shape = 'u8[544768]{0}', space=vmem, size = 0x85000, scoped, tag = 'input window, operand 1, single buffered']
    #allocation3 [shape = 's32[1]{0}', space=sflag, size = 0x4, scoped, tag = 'scoped memory for forward.1']
    #allocation4 [shape = 'u8[278528]{0}', space=vmem, size = 0x44000, scoped, tag = 'input window, operand 2, single buffered']
    #allocation5 [shape = 's32[1]{0}', space=sflag, size = 0x4, scoped, tag = 'scoped memory for forward.1']
    %8 = vsyncpa [#allocation3], 0
    %9 = vsyncpa [#allocation5], 0
    // Predicated region
    $region2: #{forward.1} parent=1 // pred_check
      _
    $region3: #{forward.1} parent=1 // pred_check_branch
      %11 = sbr.rel (0) target = $region5
    $region4: #{forward.1} parent=1 // pred_region
      _
    $region5: #{forward.1} parent=1 // pred_fallthru
      _
    // Predicated region
    $region6: #{forward.1} parent=1 // pred_check
      _
    $region7: #{forward.1} parent=1 // pred_check_branch
      %13 = sbr.rel (0) target = $region9
    $region8: #{forward.1} parent=1 // pred_region
      %15 = vsyncadd [#allocation3], 0
      %s16 = sshll.u32 %s1, 4
      %s17 = int_to_ptr.hbm [resolvable:$true] %s16
      %s18 = sshll.u32 [#allocation2], 4
      %s19 = int_to_ptr.vmem [resolvable:$true] %s18
      %24 = dma.hbm_to_vmem [thread:$0]  %s17, 17024, %s19, [#allocation3], 64, 64, 4
    $region9: #{forward.1} parent=1 // pred_fallthru
      _
    // Predicated region
    $region10: #{forward.1} parent=1 // pred_check
      _
    $region11: #{forward.1} parent=1 // pred_check_branch
      %26 = sbr.rel (0) target = $region13
    $region12: #{forward.1} parent=1 // pred_region
      %28 = vsyncadd [#allocation5], 0
      %s29 = sshll.u32 %s2, 4
      %s30 = int_to_ptr.hbm [resolvable:$true] %s29
      %s31 = sshll.u32 [#allocation4], 4
      %s32 = int_to_ptr.vmem [resolvable:$true] %s31
      %37 = dma.hbm_to_vmem [thread:$0]  %s30, 8704, %s32, [#allocation5], 128, 128, 8
    $region13: #{forward.1} parent=1 // pred_fallthru
      _
    // Predicated region
    $region14: #{forward.1} parent=1 // pred_check
      _
    $region15: #{forward.1} parent=1 // pred_check_branch
      %39 = sbr.rel (0) target = $region17
    $region16: #{forward.1} parent=1 // pred_region
      %41 = dma.done [#allocation3], 17024
    $region17: #{forward.1} parent=1 // pred_fallthru
      _
    // Predicated region
    $region18: #{forward.1} parent=1 // pred_check
      _
    $region19: #{forward.1} parent=1 // pred_check_branch
      %43 = sbr.rel (0) target = $region21
    $region20: #{forward.1} parent=1 // pred_region
      %45 = dma.done [#allocation5], 8704
    $region21: #{forward.1} parent=1 // pred_fallthru
      _
    %v47 = vld [vmem:[%s0] sm:$0xff]
    %v48 = vld [vmem:[#allocation2] sm:$0xf]
    %v49 = vld [vmem:[#allocation2 + $0x4] sm:$0xf]
    %v50 = vld [vmem:[#allocation2 + $0x8] sm:$0xf]
    %v51 = vld [vmem:[#allocation2 + $0xc] sm:$0xf]
    %v52 = vld [vmem:[#allocation2 + $0x10] sm:$0xf]
    %v53 = vld [vmem:[#allocation2 + $0x14] sm:$0xf]
    %v54 = vld [vmem:[#allocation2 + $0x18] sm:$0xf]
    %v55 = vld [vmem:[#allocation2 + $0x1c] sm:$0xf]
    %v56 = vld [vmem:[#allocation2 + $0x20] sm:$0xf]
    %v57 = vld [vmem:[#allocation2 + $0x24] sm:$0xf]
    %v58 = vld [vmem:[#allocation2 + $0x28] sm:$0xf]
    %v59 = vld [vmem:[#allocation2 + $0x2c] sm:$0xf]
    %v60 = vld [vmem:[#allocation2 + $0x30] sm:$0xf]
    %v61 = vld [vmem:[#allocation2 + $0x34] sm:$0xf]
    %v62 = vld [vmem:[#allocation2 + $0x38] sm:$0xf]
    %v63 = vld [vmem:[#allocation2 + $0x3c] sm:$0xf]
    %v64 = vld [vmem:[#allocation2 + $0x40] sm:$0xf]
    %v65 = vld [vmem:[#allocation2 + $0x44] sm:$0xf]
    %v66 = vld [vmem:[#allocation2 + $0x48] sm:$0xf]
    %v67 = vld [vmem:[#allocation2 + $0x4c] sm:$0xf]
    %v68 = vld [vmem:[#allocation2 + $0x50] sm:$0xf]
    %v69 = vld [vmem:[#allocation2 + $0x54] sm:$0xf]
    %v70 = vld [vmem:[#allocation2 + $0x58] sm:$0xf]
    %v71 = vld [vmem:[#allocation2 + $0x5c] sm:$0xf]
    %v72 = vld [vmem:[#allocation2 + $0x60] sm:$0xf]
    %v73 = vld [vmem:[#allocation2 + $0x64] sm:$0xf]
    %v74 = vld [vmem:[#allocation2 + $0x68] sm:$0xf]
    %v75 = vld [vmem:[#allocation2 + $0x6c] sm:$0xf]
    %v76 = vld [vmem:[#allocation2 + $0x70] sm:$0xf]
    %v77 = vld [vmem:[#allocation2 + $0x74] sm:$0xf]
    %v78 = vld [vmem:[#allocation2 + $0x78] sm:$0xf]
    %v79 = vld [vmem:[#allocation2 + $0x7c] sm:$0xf]
    %v80 = vld [vmem:[#allocation2 + $0x80] sm:$0xf]
    %v81 = vld [vmem:[#allocation2 + $0x84] sm:$0xf]
    %v82 = vld [vmem:[#allocation2 + $0x88] sm:$0xf]
    %v83 = vld [vmem:[#allocation2 + $0x8c] sm:$0xf]
    %v84 = vld [vmem:[#allocation2 + $0x90] sm:$0xf]
    %v85 = vld [vmem:[#allocation2 + $0x94] sm:$0xf]
    %v86 = vld [vmem:[#allocation2 + $0x98] sm:$0xf]
    %v87 = vld [vmem:[#allocation2 + $0x9c] sm:$0xf]
    %v88 = vld [vmem:[#allocation2 + $0xa0] sm:$0xf]
    %v89 = vld [vmem:[#allocation2 + $0xa4] sm:$0xf]
    %v90 = vld [vmem:[#allocation2 + $0xa8] sm:$0xf]
    %v91 = vld [vmem:[#allocation2 + $0xac] sm:$0xf]
    %v92 = vld [vmem:[#allocation2 + $0xb0] sm:$0xf]
    %v93 = vld [vmem:[#allocation2 + $0xb4] sm:$0xf]
    %v94 = vld [vmem:[#allocation2 + $0xb8] sm:$0xf]
    %v95 = vld [vmem:[#allocation2 + $0xbc] sm:$0xf]
    %v96 = vld [vmem:[#allocation2 + $0xc0] sm:$0xf]
    %v97 = vld [vmem:[#allocation2 + $0xc4] sm:$0xf]
    %v98 = vld [vmem:[#allocation2 + $0xc8] sm:$0xf]
    %v99 = vld [vmem:[#allocation2 + $0xcc] sm:$0xf]
    %v100 = vld [vmem:[#allocation2 + $0xd0] sm:$0xf]
    %v101 = vld [vmem:[#allocation2 + $0xd4] sm:$0xf]
    %v102 = vld [vmem:[#allocation2 + $0xd8] sm:$0xf]
    %v103 = vld [vmem:[#allocation2 + $0xdc] sm:$0xf]
    %v104 = vld [vmem:[#allocation2 + $0xe0] sm:$0xf]
    %v105 = vld [vmem:[#allocation2 + $0xe4] sm:$0xf]
    %v106 = vld [vmem:[#allocation2 + $0xe8] sm:$0xf]
    %v107 = vld [vmem:[#allocation2 + $0xec] sm:$0xf]
    %v108 = vld [vmem:[#allocation2 + $0xf0] sm:$0xf]
    %v109 = vld [vmem:[#allocation2 + $0xf4] sm:$0xf]
    %v110 = vld [vmem:[#allocation2 + $0xf8] sm:$0xf]
    %v111 = vld [vmem:[#allocation2 + $0xfc] sm:$0xf]
    %v112 = vpack.c.bf16 %v47, %v47
    %v177 = vunpack.c.l.b16 %v48
    %v178 = vunpack.c.l.b16 %v49
    %v179 = vunpack.c.l.b16 %v50
    %v180 = vunpack.c.l.b16 %v51
    %v181 = vunpack.c.l.b16 %v52
    %v182 = vunpack.c.l.b16 %v53
    %v183 = vunpack.c.l.b16 %v54
    %v184 = vunpack.c.l.b16 %v55
    %v185 = vunpack.c.l.b16 %v56
    %v186 = vunpack.c.l.b16 %v57
    %v187 = vunpack.c.l.b16 %v58
    %v188 = vunpack.c.l.b16 %v59
    %v189 = vunpack.c.l.b16 %v60
    %v190 = vunpack.c.l.b16 %v61
    %v191 = vunpack.c.l.b16 %v62
    %v192 = vunpack.c.l.b16 %v63
    %v193 = vunpack.c.l.b16 %v64
    %v194 = vunpack.c.l.b16 %v65
    %v195 = vunpack.c.l.b16 %v66
    %v196 = vunpack.c.l.b16 %v67
    %v197 = vunpack.c.l.b16 %v68
    %v198 = vunpack.c.l.b16 %v69
    %v199 = vunpack.c.l.b16 %v70
    %v200 = vunpack.c.l.b16 %v71
    %v201 = vunpack.c.l.b16 %v72
    %v202 = vunpack.c.l.b16 %v73
    %v203 = vunpack.c.l.b16 %v74
    %v204 = vunpack.c.l.b16 %v75
    %v205 = vunpack.c.l.b16 %v76
    %v206 = vunpack.c.l.b16 %v77
    %v207 = vunpack.c.l.b16 %v78
    %v208 = vunpack.c.l.b16 %v79
    %v209 = vunpack.c.l.b16 %v80
    %v210 = vunpack.c.l.b16 %v81
    %v211 = vunpack.c.l.b16 %v82
    %v212 = vunpack.c.l.b16 %v83
    %v213 = vunpack.c.l.b16 %v84
    %v214 = vunpack.c.l.b16 %v85
    %v215 = vunpack.c.l.b16 %v86
    %v216 = vunpack.c.l.b16 %v87
    %v217 = vunpack.c.l.b16 %v88
    %v218 = vunpack.c.l.b16 %v89
    %v219 = vunpack.c.l.b16 %v90
    %v220 = vunpack.c.l.b16 %v91
    %v221 = vunpack.c.l.b16 %v92
    %v222 = vunpack.c.l.b16 %v93
    %v223 = vunpack.c.l.b16 %v94
    %v224 = vunpack.c.l.b16 %v95
    %v225 = vunpack.c.l.b16 %v96
    %v226 = vunpack.c.l.b16 %v97
    %v227 = vunpack.c.l.b16 %v98
    %v228 = vunpack.c.l.b16 %v99
    %v229 = vunpack.c.l.b16 %v100
    %v230 = vunpack.c.l.b16 %v101
    %v231 = vunpack.c.l.b16 %v102
    %v232 = vunpack.c.l.b16 %v103
    %v233 = vunpack.c.l.b16 %v104
    %v234 = vunpack.c.l.b16 %v105
    %v235 = vunpack.c.l.b16 %v106
    %v236 = vunpack.c.l.b16 %v107
    %v237 = vunpack.c.l.b16 %v108
    %v238 = vunpack.c.l.b16 %v109
    %v239 = vunpack.c.l.b16 %v110
    %v240 = vunpack.c.l.b16 %v111
    %v241 = vpack.c.b16 %v178, %v177
    %v242 = vpack.c.b16 %v180, %v179
    %v243 = vpack.c.b16 %v182, %v181
    %v244 = vpack.c.b16 %v184, %v183
    %v245 = vpack.c.b16 %v186, %v185
    %v246 = vpack.c.b16 %v188, %v187
    %v247 = vpack.c.b16 %v190, %v189
    %v248 = vpack.c.b16 %v192, %v191
    %v249 = vpack.c.b16 %v194, %v193
    %v250 = vpack.c.b16 %v196, %v195
    %v251 = vpack.c.b16 %v198, %v197
    %v252 = vpack.c.b16 %v200, %v199
    %v253 = vpack.c.b16 %v202, %v201
    %v254 = vpack.c.b16 %v204, %v203
    %v255 = vpack.c.b16 %v206, %v205
    %v256 = vpack.c.b16 %v208, %v207
    %v257 = vpack.c.b16 %v210, %v209
    %v258 = vpack.c.b16 %v212, %v211
    %v259 = vpack.c.b16 %v214, %v213
    %v260 = vpack.c.b16 %v216, %v215
    %v261 = vpack.c.b16 %v218, %v217
    %v262 = vpack.c.b16 %v220, %v219
    %v263 = vpack.c.b16 %v222, %v221
    %v264 = vpack.c.b16 %v224, %v223
    %v265 = vpack.c.b16 %v226, %v225
    %v266 = vpack.c.b16 %v228, %v227
    %v267 = vpack.c.b16 %v230, %v229
    %v268 = vpack.c.b16 %v232, %v231
    %v269 = vpack.c.b16 %v234, %v233
    %v270 = vpack.c.b16 %v236, %v235
    %v271 = vpack.c.b16 %v238, %v237
    %v272 = vpack.c.b16 %v240, %v239
    %vm273 = vcmask 64512
    %v275 = vsel %vm273, %v241, 0
    %v278 = vsel %vm273, %v242, 0
    %v281 = vsel %vm273, %v243, 0
    %v284 = vsel %vm273, %v244, 0
    %v287 = vsel %vm273, %v245, 0
    %v290 = vsel %vm273, %v246, 0
    %v293 = vsel %vm273, %v247, 0
    %v296 = vsel %vm273, %v248, 0
    %v299 = vsel %vm273, %v249, 0
    %v302 = vsel %vm273, %v250, 0
    %v305 = vsel %vm273, %v251, 0
    %v308 = vsel %vm273, %v252, 0
    %v311 = vsel %vm273, %v253, 0
    %v314 = vsel %vm273, %v254, 0
    %v317 = vsel %vm273, %v255, 0
    %v320 = vsel %vm273, %v256, 0
    %v323 = vsel %vm273, %v257, 0
    %v326 = vsel %vm273, %v258, 0
    %v329 = vsel %vm273, %v259, 0
    %v332 = vsel %vm273, %v260, 0
    %v335 = vsel %vm273, %v261, 0
    %v338 = vsel %vm273, %v262, 0
    %v341 = vsel %vm273, %v263, 0
    %v344 = vsel %vm273, %v264, 0
    %v347 = vsel %vm273, %v265, 0
    %v350 = vsel %vm273, %v266, 0
    %v353 = vsel %vm273, %v267, 0
    %v356 = vsel %vm273, %v268, 0
    %v359 = vsel %vm273, %v269, 0
    %v362 = vsel %vm273, %v270, 0
    %v365 = vsel %vm273, %v271, 0
    %v368 = vsel %vm273, %v272, 0
    %vm370 = vcmask 1043456
    %v372 = vsel %vm370, %v112, 0
    %374 = vmatpush.bf16.msra.mxu0 0
    %375 = vmatpush.bf16.msra.mxu0 0
    %376 = vmatpush.bf16.msra.mxu0 0
    %377 = vmatpush.bf16.msra.mxu0 0
    %378 = vmatpush.bf16.msra.mxu0 0
    %379 = vmatpush.bf16.msra.mxu0 0
    %380 = vmatpush.bf16.msra.mxu0 0
    %381 = vmatpush.bf16.msra.mxu0 %v372
    %382 = vmatmul.bf16.gmra.mxu0 %v275
    %v383 = vpop.f32.mrf.mxu0
    %v384 = vadd.f32 0.0, %v383
    %v385 = vpop.f32.mrf.mxu0
    %v386 = vadd.f32 0.0, %v385
    %387 = vmatmul.bf16.gmra.mxu0 %v278
    %v388 = vpop.f32.mrf.mxu0
    %v389 = vadd.f32 0.0, %v388
    %v390 = vpop.f32.mrf.mxu0
    %v391 = vadd.f32 0.0, %v390
    %392 = vmatmul.bf16.gmra.mxu0 %v281
    %v393 = vpop.f32.mrf.mxu0
    %v394 = vadd.f32 0.0, %v393
    %v395 = vpop.f32.mrf.mxu0
    %v396 = vadd.f32 0.0, %v395
    %397 = vmatmul.bf16.gmra.mxu0 %v284
    %v398 = vpop.f32.mrf.mxu0
    %v399 = vadd.f32 0.0, %v398
    %v400 = vpop.f32.mrf.mxu0
    %v401 = vadd.f32 0.0, %v400
    %402 = vmatmul.bf16.gmra.mxu0 %v287
    %v403 = vpop.f32.mrf.mxu0
    %v404 = vadd.f32 0.0, %v403
    %v405 = vpop.f32.mrf.mxu0
    %v406 = vadd.f32 0.0, %v405
    %407 = vmatmul.bf16.gmra.mxu0 %v290
    %v408 = vpop.f32.mrf.mxu0
    %v409 = vadd.f32 0.0, %v408
    %v410 = vpop.f32.mrf.mxu0
    %v411 = vadd.f32 0.0, %v410
    %412 = vmatmul.bf16.gmra.mxu0 %v293
    %v413 = vpop.f32.mrf.mxu0
    %v414 = vadd.f32 0.0, %v413
    %v415 = vpop.f32.mrf.mxu0
    %v416 = vadd.f32 0.0, %v415
    %417 = vmatmul.bf16.gmra.mxu0 %v296
    %v418 = vpop.f32.mrf.mxu0
    %v419 = vadd.f32 0.0, %v418
    %v420 = vpop.f32.mrf.mxu0
    %v421 = vadd.f32 0.0, %v420
    %422 = vmatmul.bf16.gmra.mxu0 %v299
    %v423 = vpop.f32.mrf.mxu0
    %v424 = vadd.f32 0.0, %v423
    %v425 = vpop.f32.mrf.mxu0
    %v426 = vadd.f32 0.0, %v425
    %427 = vmatmul.bf16.gmra.mxu0 %v302
    %v428 = vpop.f32.mrf.mxu0
    %v429 = vadd.f32 0.0, %v428
    %v430 = vpop.f32.mrf.mxu0
    %v431 = vadd.f32 0.0, %v430
    %432 = vmatmul.bf16.gmra.mxu0 %v305
    %v433 = vpop.f32.mrf.mxu0
    %v434 = vadd.f32 0.0, %v433
    %v435 = vpop.f32.mrf.mxu0
    %v436 = vadd.f32 0.0, %v435
    %437 = vmatmul.bf16.gmra.mxu0 %v308
    %v438 = vpop.f32.mrf.mxu0
    %v439 = vadd.f32 0.0, %v438
    %v440 = vpop.f32.mrf.mxu0
    %v441 = vadd.f32 0.0, %v440
    %442 = vmatmul.bf16.gmra.mxu0 %v311
    %v443 = vpop.f32.mrf.mxu0
    %v444 = vadd.f32 0.0, %v443
    %v445 = vpop.f32.mrf.mxu0
    %v446 = vadd.f32 0.0, %v445
    %447 = vmatmul.bf16.gmra.mxu0 %v314
    %v448 = vpop.f32.mrf.mxu0
    %v449 = vadd.f32 0.0, %v448
    %v450 = vpop.f32.mrf.mxu0
    %v451 = vadd.f32 0.0, %v450
    %452 = vmatmul.bf16.gmra.mxu0 %v317
    %v453 = vpop.f32.mrf.mxu0
    %v454 = vadd.f32 0.0, %v453
    %v455 = vpop.f32.mrf.mxu0
    %v456 = vadd.f32 0.0, %v455
    %457 = vmatmul.bf16.gmra.mxu0 %v320
    %v458 = vpop.f32.mrf.mxu0
    %v459 = vadd.f32 0.0, %v458
    %v460 = vpop.f32.mrf.mxu0
    %v461 = vadd.f32 0.0, %v460
    %462 = vmatmul.bf16.gmra.mxu0 %v323
    %v463 = vpop.f32.mrf.mxu0
    %v464 = vadd.f32 0.0, %v463
    %v465 = vpop.f32.mrf.mxu0
    %v466 = vadd.f32 0.0, %v465
    %467 = vmatmul.bf16.gmra.mxu0 %v326
    %v468 = vpop.f32.mrf.mxu0
    %v469 = vadd.f32 0.0, %v468
    %v470 = vpop.f32.mrf.mxu0
    %v471 = vadd.f32 0.0, %v470
    %472 = vmatmul.bf16.gmra.mxu0 %v329
    %v473 = vpop.f32.mrf.mxu0
    %v474 = vadd.f32 0.0, %v473
    %v475 = vpop.f32.mrf.mxu0
    %v476 = vadd.f32 0.0, %v475
    %477 = vmatmul.bf16.gmra.mxu0 %v332
    %v478 = vpop.f32.mrf.mxu0
    %v479 = vadd.f32 0.0, %v478
    %v480 = vpop.f32.mrf.mxu0
    %v481 = vadd.f32 0.0, %v480
    %482 = vmatmul.bf16.gmra.mxu0 %v335
    %v483 = vpop.f32.mrf.mxu0
    %v484 = vadd.f32 0.0, %v483
    %v485 = vpop.f32.mrf.mxu0
    %v486 = vadd.f32 0.0, %v485
    %487 = vmatmul.bf16.gmra.mxu0 %v338
    %v488 = vpop.f32.mrf.mxu0
    %v489 = vadd.f32 0.0, %v488
    %v490 = vpop.f32.mrf.mxu0
    %v491 = vadd.f32 0.0, %v490
    %492 = vmatmul.bf16.gmra.mxu0 %v341
    %v493 = vpop.f32.mrf.mxu0
    %v494 = vadd.f32 0.0, %v493
    %v495 = vpop.f32.mrf.mxu0
    %v496 = vadd.f32 0.0, %v495
    %497 = vmatmul.bf16.gmra.mxu0 %v344
    %v498 = vpop.f32.mrf.mxu0
    %v499 = vadd.f32 0.0, %v498
    %v500 = vpop.f32.mrf.mxu0
    %v501 = vadd.f32 0.0, %v500
    %502 = vmatmul.bf16.gmra.mxu0 %v347
    %v503 = vpop.f32.mrf.mxu0
    %v504 = vadd.f32 0.0, %v503
    %v505 = vpop.f32.mrf.mxu0
    %v506 = vadd.f32 0.0, %v505
    %507 = vmatmul.bf16.gmra.mxu0 %v350
    %v508 = vpop.f32.mrf.mxu0
    %v509 = vadd.f32 0.0, %v508
    %v510 = vpop.f32.mrf.mxu0
    %v511 = vadd.f32 0.0, %v510
    %512 = vmatmul.bf16.gmra.mxu0 %v353
    %v513 = vpop.f32.mrf.mxu0
    %v514 = vadd.f32 0.0, %v513
    %v515 = vpop.f32.mrf.mxu0
    %v516 = vadd.f32 0.0, %v515
    %517 = vmatmul.bf16.gmra.mxu0 %v356
    %v518 = vpop.f32.mrf.mxu0
    %v519 = vadd.f32 0.0, %v518
    %v520 = vpop.f32.mrf.mxu0
    %v521 = vadd.f32 0.0, %v520
    %522 = vmatmul.bf16.gmra.mxu0 %v359
    %v523 = vpop.f32.mrf.mxu0
    %v524 = vadd.f32 0.0, %v523
    %v525 = vpop.f32.mrf.mxu0
    %v526 = vadd.f32 0.0, %v525
    %527 = vmatmul.bf16.gmra.mxu0 %v362
    %v528 = vpop.f32.mrf.mxu0
    %v529 = vadd.f32 0.0, %v528
    %v530 = vpop.f32.mrf.mxu0
    %v531 = vadd.f32 0.0, %v530
    %532 = vmatmul.bf16.gmra.mxu0 %v365
    %v533 = vpop.f32.mrf.mxu0
    %v534 = vadd.f32 0.0, %v533
    %v535 = vpop.f32.mrf.mxu0
    %v536 = vadd.f32 0.0, %v535
    %537 = vmatmul.bf16.gmra.mxu0 %v368
    %v538 = vpop.f32.mrf.mxu0
    %v539 = vadd.f32 0.0, %v538
    %v540 = vpop.f32.mrf.mxu0
    %v541 = vadd.f32 0.0, %v540
    %542 = vdwg.mxu0
    %v543 = vld [vmem:[#allocation2 + $0x100] sm:$0x1]
    %v544 = vpack.c.bf16 %v386, %v384
    %v545 = vpack.c.bf16 %v391, %v389
    %v546 = vpack.c.bf16 %v396, %v394
    %v547 = vpack.c.bf16 %v401, %v399
    %v548 = vpack.c.bf16 %v406, %v404
    %v549 = vpack.c.bf16 %v411, %v409
    %v550 = vpack.c.bf16 %v416, %v414
    %v551 = vpack.c.bf16 %v421, %v419
    %v552 = vld [vmem:[#allocation2 + $0x104] sm:$0x1]
    %v553 = vpack.c.bf16 %v426, %v424
    %v554 = vpack.c.bf16 %v431, %v429
    %v555 = vpack.c.bf16 %v436, %v434
    %v556 = vpack.c.bf16 %v441, %v439
    %v557 = vpack.c.bf16 %v446, %v444
    %v558 = vpack.c.bf16 %v451, %v449
    %v559 = vpack.c.bf16 %v456, %v454
    %v560 = vpack.c.bf16 %v461, %v459
    %vm561 = vcmask 15360
    %v563 = vsel %vm561, %v553, 0
    %v566 = vsel %vm561, %v554, 0
    %v569 = vsel %vm561, %v555, 0
    %v572 = vsel %vm561, %v556, 0
    %v575 = vsel %vm561, %v557, 0
    %v578 = vsel %vm561, %v558, 0
    %v581 = vsel %vm561, %v559, 0
    %v584 = vsel %vm561, %v560, 0
    %vm586 = vcmask 1040384
    %v588 = vsel %vm586, %v552, 0
    %590 = vmatpush.bf16.msra.mxu0 0
    %591 = vmatpush.bf16.msra.mxu0 0
    %592 = vmatpush.bf16.msra.mxu0 0
    %593 = vmatpush.bf16.msra.mxu0 0
    %594 = vmatpush.bf16.msra.mxu0 0
    %595 = vmatpush.bf16.msra.mxu0 0
    %596 = vmatpush.bf16.msra.mxu0 0
    %597 = vmatpush.bf16.msra.mxu0 %v588
    %598 = vmatmul.bf16.gmra.mxu0 %v563
    %v599 = vpop.f32.mrf.mxu0
    %v600 = vadd.f32 0.0, %v599
    %v601 = vpop.f32.mrf.mxu0
    %v602 = vadd.f32 0.0, %v601
    %603 = vmatmul.bf16.gmra.mxu0 %v566
    %v604 = vpop.f32.mrf.mxu0
    %v605 = vadd.f32 0.0, %v604
    %v606 = vpop.f32.mrf.mxu0
    %v607 = vadd.f32 0.0, %v606
    %608 = vmatmul.bf16.gmra.mxu0 %v569
    %v609 = vpop.f32.mrf.mxu0
    %v610 = vadd.f32 0.0, %v609
    %v611 = vpop.f32.mrf.mxu0
    %v612 = vadd.f32 0.0, %v611
    %613 = vmatmul.bf16.gmra.mxu0 %v572
    %v614 = vpop.f32.mrf.mxu0
    %v615 = vadd.f32 0.0, %v614
    %v616 = vpop.f32.mrf.mxu0
    %v617 = vadd.f32 0.0, %v616
    %618 = vmatmul.bf16.gmra.mxu0 %v575
    %v619 = vpop.f32.mrf.mxu0
    %v620 = vadd.f32 0.0, %v619
    %v621 = vpop.f32.mrf.mxu0
    %v622 = vadd.f32 0.0, %v621
    %623 = vmatmul.bf16.gmra.mxu0 %v578
    %v624 = vpop.f32.mrf.mxu0
    %v625 = vadd.f32 0.0, %v624
    %v626 = vpop.f32.mrf.mxu0
    %v627 = vadd.f32 0.0, %v626
    %628 = vmatmul.bf16.gmra.mxu0 %v581
    %v629 = vpop.f32.mrf.mxu0
    %v630 = vadd.f32 0.0, %v629
    %v631 = vpop.f32.mrf.mxu0
    %v632 = vadd.f32 0.0, %v631
    %633 = vmatmul.bf16.gmra.mxu0 %v584
    %v634 = vpop.f32.mrf.mxu0
    %v635 = vadd.f32 0.0, %v634
    %v636 = vpop.f32.mrf.mxu0
    %v637 = vadd.f32 0.0, %v636
    %638 = vdwg.mxu0
    %v640 = vsel %vm561, %v544, 0
    %v643 = vsel %vm561, %v545, 0
    %v646 = vsel %vm561, %v546, 0
    %v649 = vsel %vm561, %v547, 0
    %v652 = vsel %vm561, %v548, 0
    %v655 = vsel %vm561, %v549, 0
    %v658 = vsel %vm561, %v550, 0
    %v661 = vsel %vm561, %v551, 0
    %v664 = vsel %vm586, %v543, 0
    %666 = vmatpush.bf16.msra.mxu0 0
    %667 = vmatpush.bf16.msra.mxu0 0
    %668 = vmatpush.bf16.msra.mxu0 0
    %669 = vmatpush.bf16.msra.mxu0 0
    %670 = vmatpush.bf16.msra.mxu0 0
    %671 = vmatpush.bf16.msra.mxu0 0
    %672 = vmatpush.bf16.msra.mxu0 0
    %673 = vmatpush.bf16.msra.mxu0 %v664
    %674 = vmatmul.bf16.gmra.mxu0 %v640
    %v675 = vpop.f32.mrf.mxu0
    %v676 = vadd.f32 %v600, %v675
    %v677 = vpop.f32.mrf.mxu0
    %v678 = vadd.f32 %v602, %v677
    %679 = vmatmul.bf16.gmra.mxu0 %v643
    %v680 = vpop.f32.mrf.mxu0
    %v681 = vadd.f32 %v605, %v680
    %v682 = vpop.f32.mrf.mxu0
    %v683 = vadd.f32 %v607, %v682
    %684 = vmatmul.bf16.gmra.mxu0 %v646
    %v685 = vpop.f32.mrf.mxu0
    %v686 = vadd.f32 %v610, %v685
    %v687 = vpop.f32.mrf.mxu0
    %v688 = vadd.f32 %v612, %v687
    %689 = vmatmul.bf16.gmra.mxu0 %v649
    %v690 = vpop.f32.mrf.mxu0
    %v691 = vadd.f32 %v615, %v690
    %v692 = vpop.f32.mrf.mxu0
    %v693 = vadd.f32 %v617, %v692
    %694 = vmatmul.bf16.gmra.mxu0 %v652
    %v695 = vpop.f32.mrf.mxu0
    %v696 = vadd.f32 %v620, %v695
    %v697 = vpop.f32.mrf.mxu0
    %v698 = vadd.f32 %v622, %v697
    %699 = vmatmul.bf16.gmra.mxu0 %v655
    %v700 = vpop.f32.mrf.mxu0
    %v701 = vadd.f32 %v625, %v700
    %v702 = vpop.f32.mrf.mxu0
    %v703 = vadd.f32 %v627, %v702
    %704 = vmatmul.bf16.gmra.mxu0 %v658
    %v705 = vpop.f32.mrf.mxu0
    %v706 = vadd.f32 %v630, %v705
    %v707 = vpop.f32.mrf.mxu0
    %v708 = vadd.f32 %v632, %v707
    %709 = vmatmul.bf16.gmra.mxu0 %v661
    %v710 = vpop.f32.mrf.mxu0
    %v711 = vadd.f32 %v635, %v710
    %v712 = vpop.f32.mrf.mxu0
    %v713 = vadd.f32 %v637, %v712
    %714 = vdwg.mxu0
    %v715 = vld [vmem:[#allocation2 + $0x108] sm:$0x1]
    %v716 = vpack.c.bf16 %v466, %v464
    %v717 = vpack.c.bf16 %v471, %v469
    %v718 = vpack.c.bf16 %v476, %v474
    %v719 = vpack.c.bf16 %v481, %v479
    %v720 = vpack.c.bf16 %v486, %v484
    %v721 = vpack.c.bf16 %v491, %v489
    %v722 = vpack.c.bf16 %v496, %v494
    %v723 = vpack.c.bf16 %v501, %v499
    %v725 = vsel %vm561, %v716, 0
    %v728 = vsel %vm561, %v717, 0
    %v731 = vsel %vm561, %v718, 0
    %v734 = vsel %vm561, %v719, 0
    %v737 = vsel %vm561, %v720, 0
    %v740 = vsel %vm561, %v721, 0
    %v743 = vsel %vm561, %v722, 0
    %v746 = vsel %vm561, %v723, 0
    %v749 = vsel %vm586, %v715, 0
    %751 = vmatpush.bf16.msra.mxu0 0
    %752 = vmatpush.bf16.msra.mxu0 0
    %753 = vmatpush.bf16.msra.mxu0 0
    %754 = vmatpush.bf16.msra.mxu0 0
    %755 = vmatpush.bf16.msra.mxu0 0
    %756 = vmatpush.bf16.msra.mxu0 0
    %757 = vmatpush.bf16.msra.mxu0 0
    %758 = vmatpush.bf16.msra.mxu0 %v749
    %759 = vmatmul.bf16.gmra.mxu0 %v725
    %v760 = vpop.f32.mrf.mxu0
    %v761 = vadd.f32 0.0, %v760
    %v762 = vpop.f32.mrf.mxu0
    %v763 = vadd.f32 0.0, %v762
    %764 = vmatmul.bf16.gmra.mxu0 %v728
    %v765 = vpop.f32.mrf.mxu0
    %v766 = vadd.f32 0.0, %v765
    %v767 = vpop.f32.mrf.mxu0
    %v768 = vadd.f32 0.0, %v767
    %769 = vmatmul.bf16.gmra.mxu0 %v731
    %v770 = vpop.f32.mrf.mxu0
    %v771 = vadd.f32 0.0, %v770
    %v772 = vpop.f32.mrf.mxu0
    %v773 = vadd.f32 0.0, %v772
    %774 = vmatmul.bf16.gmra.mxu0 %v734
    %v775 = vpop.f32.mrf.mxu0
    %v776 = vadd.f32 0.0, %v775
    %v777 = vpop.f32.mrf.mxu0
    %v778 = vadd.f32 0.0, %v777
    %779 = vmatmul.bf16.gmra.mxu0 %v737
    %v780 = vpop.f32.mrf.mxu0
    %v781 = vadd.f32 0.0, %v780
    %v782 = vpop.f32.mrf.mxu0
    %v783 = vadd.f32 0.0, %v782
    %784 = vmatmul.bf16.gmra.mxu0 %v740
    %v785 = vpop.f32.mrf.mxu0
    %v786 = vadd.f32 0.0, %v785
    %v787 = vpop.f32.mrf.mxu0
    %v788 = vadd.f32 0.0, %v787
    %789 = vmatmul.bf16.gmra.mxu0 %v743
    %v790 = vpop.f32.mrf.mxu0
    %v791 = vadd.f32 0.0, %v790
    %v792 = vpop.f32.mrf.mxu0
    %v793 = vadd.f32 0.0, %v792
    %794 = vmatmul.bf16.gmra.mxu0 %v746
    %v795 = vpop.f32.mrf.mxu0
    %v796 = vadd.f32 0.0, %v795
    %v797 = vpop.f32.mrf.mxu0
    %v798 = vadd.f32 0.0, %v797
    %799 = vdwg.mxu0
    %v800 = vadd.f32 %v676, %v761
    %v801 = vadd.f32 %v678, %v763
    %v802 = vadd.f32 %v681, %v766
    %v803 = vadd.f32 %v683, %v768
    %v804 = vadd.f32 %v686, %v771
    %v805 = vadd.f32 %v688, %v773
    %v806 = vadd.f32 %v691, %v776
    %v807 = vadd.f32 %v693, %v778
    %v808 = vadd.f32 %v696, %v781
    %v809 = vadd.f32 %v698, %v783
    %v810 = vadd.f32 %v701, %v786
    %v811 = vadd.f32 %v703, %v788
    %v812 = vadd.f32 %v706, %v791
    %v813 = vadd.f32 %v708, %v793
    %v814 = vadd.f32 %v711, %v796
    %v815 = vadd.f32 %v713, %v798
    %v816 = vld [vmem:[#allocation2 + $0x10c] sm:$0x1]
    %v817 = vpack.c.bf16 %v506, %v504
    %v818 = vpack.c.bf16 %v511, %v509
    %v819 = vpack.c.bf16 %v516, %v514
    %v820 = vpack.c.bf16 %v521, %v519
    %v821 = vpack.c.bf16 %v526, %v524
    %v822 = vpack.c.bf16 %v531, %v529
    %v823 = vpack.c.bf16 %v536, %v534
    %v824 = vpack.c.bf16 %v541, %v539
    %v826 = vsel %vm561, %v817, 0
    %v829 = vsel %vm561, %v818, 0
    %v832 = vsel %vm561, %v819, 0
    %v835 = vsel %vm561, %v820, 0
    %v838 = vsel %vm561, %v821, 0
    %v841 = vsel %vm561, %v822, 0
    %v844 = vsel %vm561, %v823, 0
    %v847 = vsel %vm561, %v824, 0
    %v850 = vsel %vm586, %v816, 0
    %852 = vmatpush.bf16.msra.mxu0 0
    %853 = vmatpush.bf16.msra.mxu0 0
    %854 = vmatpush.bf16.msra.mxu0 0
    %855 = vmatpush.bf16.msra.mxu0 0
    %856 = vmatpush.bf16.msra.mxu0 0
    %857 = vmatpush.bf16.msra.mxu0 0
    %858 = vmatpush.bf16.msra.mxu0 0
    %859 = vmatpush.bf16.msra.mxu0 %v850
    %860 = vmatmul.bf16.gmra.mxu0 %v826
    %v861 = vpop.f32.mrf.mxu0
    %v862 = vadd.f32 0.0, %v861
    %v863 = vpop.f32.mrf.mxu0
    %v864 = vadd.f32 0.0, %v863
    %865 = vmatmul.bf16.gmra.mxu0 %v829
    %v866 = vpop.f32.mrf.mxu0
    %v867 = vadd.f32 0.0, %v866
    %v868 = vpop.f32.mrf.mxu0
    %v869 = vadd.f32 0.0, %v868
    %870 = vmatmul.bf16.gmra.mxu0 %v832
    %v871 = vpop.f32.mrf.mxu0
    %v872 = vadd.f32 0.0, %v871
    %v873 = vpop.f32.mrf.mxu0
    %v874 = vadd.f32 0.0, %v873
    %875 = vmatmul.bf16.gmra.mxu0 %v835
    %v876 = vpop.f32.mrf.mxu0
    %v877 = vadd.f32 0.0, %v876
    %v878 = vpop.f32.mrf.mxu0
    %v879 = vadd.f32 0.0, %v878
    %880 = vmatmul.bf16.gmra.mxu0 %v838
    %v881 = vpop.f32.mrf.mxu0
    %v882 = vadd.f32 0.0, %v881
    %v883 = vpop.f32.mrf.mxu0
    %v884 = vadd.f32 0.0, %v883
    %885 = vmatmul.bf16.gmra.mxu0 %v841
    %v886 = vpop.f32.mrf.mxu0
    %v887 = vadd.f32 0.0, %v886
    %v888 = vpop.f32.mrf.mxu0
    %v889 = vadd.f32 0.0, %v888
    %890 = vmatmul.bf16.gmra.mxu0 %v844
    %v891 = vpop.f32.mrf.mxu0
    %v892 = vadd.f32 0.0, %v891
    %v893 = vpop.f32.mrf.mxu0
    %v894 = vadd.f32 0.0, %v893
    %895 = vmatmul.bf16.gmra.mxu0 %v847
    %v896 = vpop.f32.mrf.mxu0
    %v897 = vadd.f32 0.0, %v896
    %v898 = vpop.f32.mrf.mxu0
    %v899 = vadd.f32 0.0, %v898
    %900 = vdwg.mxu0
    %v901 = vadd.f32 %v800, %v862
    %v902 = vadd.f32 %v801, %v864
    %v903 = vadd.f32 %v802, %v867
    %v904 = vadd.f32 %v803, %v869
    %v905 = vadd.f32 %v804, %v872
    %v906 = vadd.f32 %v805, %v874
    %v907 = vadd.f32 %v806, %v877
    %v908 = vadd.f32 %v807, %v879
    %v909 = vadd.f32 %v808, %v882
    %v910 = vadd.f32 %v809, %v884
    %v911 = vadd.f32 %v810, %v887
    %v912 = vadd.f32 %v811, %v889
    %v913 = vadd.f32 %v812, %v892
    %v914 = vadd.f32 %v813, %v894
    %v915 = vadd.f32 %v814, %v897
    %v916 = vadd.f32 %v815, %v899
    %v917 = vld [vmem:[#allocation4] sm:$0xff]
    %v918 = vld [vmem:[#allocation4 + $0x8] sm:$0xff]
    %v919 = vld [vmem:[#allocation4 + $0x10] sm:$0xff]
    %v920 = vld [vmem:[#allocation4 + $0x18] sm:$0xff]
    %v921 = vld [vmem:[#allocation4 + $0x20] sm:$0xff]
    %v922 = vld [vmem:[#allocation4 + $0x28] sm:$0xff]
    %v923 = vld [vmem:[#allocation4 + $0x30] sm:$0xff]
    %v924 = vld [vmem:[#allocation4 + $0x38] sm:$0xff]
    %v925 = vld [vmem:[#allocation4 + $0x40] sm:$0xff]
    %v926 = vld [vmem:[#allocation4 + $0x48] sm:$0xff]
    %v927 = vld [vmem:[#allocation4 + $0x50] sm:$0xff]
    %v928 = vld [vmem:[#allocation4 + $0x58] sm:$0xff]
    %v929 = vld [vmem:[#allocation4 + $0x60] sm:$0xff]
    %v930 = vld [vmem:[#allocation4 + $0x68] sm:$0xff]
    %v931 = vld [vmem:[#allocation4 + $0x70] sm:$0xff]
    %v932 = vld [vmem:[#allocation4 + $0x78] sm:$0xff]
    %v933 = vld [vmem:[#allocation4 + $0x80] sm:$0xff]
    %v934 = vld [vmem:[#allocation4 + $0x88] sm:$0xff]
    %v935 = vld [vmem:[#allocation4 + $0x90] sm:$0xff]
    %v936 = vld [vmem:[#allocation4 + $0x98] sm:$0xff]
    %v937 = vld [vmem:[#allocation4 + $0xa0] sm:$0xff]
    %v938 = vld [vmem:[#allocation4 + $0xa8] sm:$0xff]
    %v939 = vld [vmem:[#allocation4 + $0xb0] sm:$0xff]
    %v940 = vld [vmem:[#allocation4 + $0xb8] sm:$0xff]
    %v941 = vld [vmem:[#allocation4 + $0xc0] sm:$0xff]
    %v942 = vld [vmem:[#allocation4 + $0xc8] sm:$0xff]
    %v943 = vld [vmem:[#allocation4 + $0xd0] sm:$0xff]
    %v944 = vld [vmem:[#allocation4 + $0xd8] sm:$0xff]
    %v945 = vsel %vm273, %v901, 0.0
    %946 = vadd.xlane.f32.xlu0 %v945
    %v947 = vpop.xlane.xlu0 %946
    %v948 = vsel %vm273, %v902, 0.0
    %949 = vadd.xlane.f32.xlu0 %v948
    %v950 = vpop.xlane.xlu0 %949
    %v951 = vsel %vm273, %v903, 0.0
    %952 = vadd.xlane.f32.xlu0 %v951
    %v953 = vpop.xlane.xlu0 %952
    %v954 = vsel %vm273, %v904, 0.0
    %955 = vadd.xlane.f32.xlu0 %v954
    %v956 = vpop.xlane.xlu0 %955
    %v957 = vsel %vm273, %v905, 0.0
    %958 = vadd.xlane.f32.xlu0 %v957
    %v959 = vpop.xlane.xlu0 %958
    %v960 = vsel %vm273, %v906, 0.0
    %961 = vadd.xlane.f32.xlu0 %v960
    %v962 = vpop.xlane.xlu0 %961
    %v963 = vsel %vm273, %v907, 0.0
    %964 = vadd.xlane.f32.xlu0 %v963
    %v965 = vpop.xlane.xlu0 %964
    %v966 = vsel %vm273, %v908, 0.0
    %967 = vadd.xlane.f32.xlu0 %v966
    %v968 = vpop.xlane.xlu0 %967
    %v969 = vsel %vm273, %v909, 0.0
    %970 = vadd.xlane.f32.xlu0 %v969
    %v971 = vpop.xlane.xlu0 %970
    %v972 = vsel %vm273, %v910, 0.0
    %973 = vadd.xlane.f32.xlu0 %v972
    %v974 = vpop.xlane.xlu0 %973
    %v975 = vsel %vm273, %v911, 0.0
    %976 = vadd.xlane.f32.xlu0 %v975
    %v977 = vpop.xlane.xlu0 %976
    %v978 = vsel %vm273, %v912, 0.0
    %979 = vadd.xlane.f32.xlu0 %v978
    %v980 = vpop.xlane.xlu0 %979
    %v981 = vsel %vm273, %v913, 0.0
    %982 = vadd.xlane.f32.xlu0 %v981
    %v983 = vpop.xlane.xlu0 %982
    %v984 = vsel %vm273, %v914, 0.0
    %985 = vadd.xlane.f32.xlu0 %v984
    %v986 = vpop.xlane.xlu0 %985
    %v987 = vsel %vm273, %v915, 0.0
    %988 = vadd.xlane.f32.xlu0 %v987
    %v989 = vpop.xlane.xlu0 %988
    %v990 = vsel %vm273, %v916, 0.0
    %991 = vadd.xlane.f32.xlu0 %v990
    %v992 = vpop.xlane.xlu0 %991
    %v993 = vmul.f32 %v901, %v901
    %v994 = vmul.f32 %v902, %v902
    %v995 = vmul.f32 %v903, %v903
    %v996 = vmul.f32 %v904, %v904
    %v997 = vmul.f32 %v905, %v905
    %v998 = vmul.f32 %v906, %v906
    %v999 = vmul.f32 %v907, %v907
    %v1000 = vmul.f32 %v908, %v908
    %v1001 = vmul.f32 %v909, %v909
    %v1002 = vmul.f32 %v910, %v910
    %v1003 = vmul.f32 %v911, %v911
    %v1004 = vmul.f32 %v912, %v912
    %v1005 = vmul.f32 %v913, %v913
    %v1006 = vmul.f32 %v914, %v914
    %v1007 = vmul.f32 %v915, %v915
    %v1008 = vmul.f32 %v916, %v916
    %v1009 = vsel %vm273, %v993, 0.0
    %1010 = vadd.xlane.f32.xlu0 %v1009
    %v1011 = vpop.xlane.xlu0 %1010
    %v1012 = vsel %vm273, %v994, 0.0
    %1013 = vadd.xlane.f32.xlu0 %v1012
    %v1014 = vpop.xlane.xlu0 %1013
    %v1015 = vsel %vm273, %v995, 0.0
    %1016 = vadd.xlane.f32.xlu0 %v1015
    %v1017 = vpop.xlane.xlu0 %1016
    %v1018 = vsel %vm273, %v996, 0.0
    %1019 = vadd.xlane.f32.xlu0 %v1018
    %v1020 = vpop.xlane.xlu0 %1019
    %v1021 = vsel %vm273, %v997, 0.0
    %1022 = vadd.xlane.f32.xlu0 %v1021
    %v1023 = vpop.xlane.xlu0 %1022
    %v1024 = vsel %vm273, %v998, 0.0
    %1025 = vadd.xlane.f32.xlu0 %v1024
    %v1026 = vpop.xlane.xlu0 %1025
    %v1027 = vsel %vm273, %v999, 0.0
    %1028 = vadd.xlane.f32.xlu0 %v1027
    %v1029 = vpop.xlane.xlu0 %1028
    %v1030 = vsel %vm273, %v1000, 0.0
    %1031 = vadd.xlane.f32.xlu0 %v1030
    %v1032 = vpop.xlane.xlu0 %1031
    %v1033 = vsel %vm273, %v1001, 0.0
    %1034 = vadd.xlane.f32.xlu0 %v1033
    %v1035 = vpop.xlane.xlu0 %1034
    %v1036 = vsel %vm273, %v1002, 0.0
    %1037 = vadd.xlane.f32.xlu0 %v1036
    %v1038 = vpop.xlane.xlu0 %1037
    %v1039 = vsel %vm273, %v1003, 0.0
    %1040 = vadd.xlane.f32.xlu0 %v1039
    %v1041 = vpop.xlane.xlu0 %1040
    %v1042 = vsel %vm273, %v1004, 0.0
    %1043 = vadd.xlane.f32.xlu0 %v1042
    %v1044 = vpop.xlane.xlu0 %1043
    %v1045 = vsel %vm273, %v1005, 0.0
    %1046 = vadd.xlane.f32.xlu0 %v1045
    %v1047 = vpop.xlane.xlu0 %1046
    %v1048 = vsel %vm273, %v1006, 0.0
    %1049 = vadd.xlane.f32.xlu0 %v1048
    %v1050 = vpop.xlane.xlu0 %1049
    %v1051 = vsel %vm273, %v1007, 0.0
    %1052 = vadd.xlane.f32.xlu0 %v1051
    %v1053 = vpop.xlane.xlu0 %1052
    %v1054 = vsel %vm273, %v1008, 0.0
    %1055 = vadd.xlane.f32.xlu0 %v1054
    %v1056 = vpop.xlane.xlu0 %1055
    %1057 = vmatpush.msra.mxu0 %v992
    %1058 = vmatpush.msra.mxu0 %v989
    %1059 = vmatpush.msra.mxu0 %v986
    %1060 = vmatpush.msra.mxu0 %v983
    %1061 = vmatpush.msra.mxu0 %v980
    %1062 = vmatpush.msra.mxu0 %v977
    %1063 = vmatpush.msra.mxu0 %v974
    %1064 = vmatpush.msra.mxu0 %v971
    %1065 = vmatpush.msra.mxu0 %v968
    %1066 = vmatpush.msra.mxu0 %v965
    %1067 = vmatpush.msra.mxu0 %v962
    %1068 = vmatpush.msra.mxu0 %v959
    %1069 = vmatpush.msra.mxu0 %v956
    %1070 = vmatpush.msra.mxu0 %v953
    %1071 = vmatpush.msra.mxu0 %v950
    %1072 = vmatpush.msra.mxu0 %v947
    %1073 = vmatmul.f32.gmra.mxu0 %v917
    %v1074 = vpop.f32.mrf.mxu0
    %v1075 = vadd.f32 0.0, %v1074
    %1076 = vmatmul.f32.gmra.mxu0 %v918
    %v1077 = vpop.f32.mrf.mxu0
    %v1078 = vadd.f32 0.0, %v1077
    %1079 = vmatmul.f32.gmra.mxu0 %v919
    %v1080 = vpop.f32.mrf.mxu0
    %v1081 = vadd.f32 0.0, %v1080
    %1082 = vmatmul.f32.gmra.mxu0 %v920
    %v1083 = vpop.f32.mrf.mxu0
    %v1084 = vadd.f32 0.0, %v1083
    %1085 = vdwg.mxu0
    %v1086 = vmul.f32 %v1075, 0.03125
    %v1087 = vmul.f32 %v1078, 0.03125
    %v1088 = vmul.f32 %v1081, 0.03125
    %v1089 = vmul.f32 %v1084, 0.03125
    %1090 = vmatpush.msra.mxu0 %v1056
    %1091 = vmatpush.msra.mxu0 %v1053
    %1092 = vmatpush.msra.mxu0 %v1050
    %1093 = vmatpush.msra.mxu0 %v1047
    %1094 = vmatpush.msra.mxu0 %v1044
    %1095 = vmatpush.msra.mxu0 %v1041
    %1096 = vmatpush.msra.mxu0 %v1038
    %1097 = vmatpush.msra.mxu0 %v1035
    %1098 = vmatpush.msra.mxu0 %v1032
    %1099 = vmatpush.msra.mxu0 %v1029
    %1100 = vmatpush.msra.mxu0 %v1026
    %1101 = vmatpush.msra.mxu0 %v1023
    %1102 = vmatpush.msra.mxu0 %v1020
    %1103 = vmatpush.msra.mxu0 %v1017
    %1104 = vmatpush.msra.mxu0 %v1014
    %1105 = vmatpush.msra.mxu0 %v1011
    %1106 = vmatmul.f32.gmra.mxu0 %v917
    %v1107 = vpop.f32.mrf.mxu0
    %v1108 = vadd.f32 0.0, %v1107
    %1109 = vmatmul.f32.gmra.mxu0 %v918
    %v1110 = vpop.f32.mrf.mxu0
    %v1111 = vadd.f32 0.0, %v1110
    %1112 = vmatmul.f32.gmra.mxu0 %v919
    %v1113 = vpop.f32.mrf.mxu0
    %v1114 = vadd.f32 0.0, %v1113
    %1115 = vmatmul.f32.gmra.mxu0 %v920
    %v1116 = vpop.f32.mrf.mxu0
    %v1117 = vadd.f32 0.0, %v1116
    %1118 = vdwg.mxu0
    %v1119 = vmul.f32 %v1108, 0.03125
    %v1120 = vmul.f32 %v1111, 0.03125
    %v1121 = vmul.f32 %v1114, 0.03125
    %v1122 = vmul.f32 %v1117, 0.03125
    %v1123 = vmul.f32 %v1086, %v1086
    %v1124 = vmul.f32 %v1087, %v1087
    %v1125 = vmul.f32 %v1088, %v1088
    %v1126 = vmul.f32 %v1089, %v1089
    %v1127 = vsub.f32 %v1119, %v1123
    %v1128 = vsub.f32 %v1120, %v1124
    %v1129 = vsub.f32 %v1121, %v1125
    %v1130 = vsub.f32 %v1122, %v1126
    %v1131 = vadd.f32 %v1127, 0.8
    %v1132 = vadd.f32 %v1128, 0.8
    %v1133 = vadd.f32 %v1129, 0.8
    %v1134 = vadd.f32 %v1130, 0.8
    %v1135 = vrsqrt.pop %v1131
    %v1136 = vmul.f32 %v1135, %v1131
    %v1137 = vmul.f32 %v1136, %v1135
    %v1138 = vmul.f32 0.5, %v1137
    %v1139 = vsub.f32 1.5, %v1138
    %v1140 = vmul.f32 %v1135, %v1139
    %vm1141 = vweird.f32 %v1131
    %vm1142 = vweird.f32 %v1135
    %vm1143 = vmor %vm1141, %vm1142
    %v1144 = vsel %vm1143, %v1135, %v1140
    %v1145 = vrsqrt.pop %v1132
    %v1146 = vmul.f32 %v1145, %v1132
    %v1147 = vmul.f32 %v1146, %v1145
    %v1148 = vmul.f32 0.5, %v1147
    %v1149 = vsub.f32 1.5, %v1148
    %v1150 = vmul.f32 %v1145, %v1149
    %vm1151 = vweird.f32 %v1132
    %vm1152 = vweird.f32 %v1145
    %vm1153 = vmor %vm1151, %vm1152
    %v1154 = vsel %vm1153, %v1145, %v1150
    %v1155 = vrsqrt.pop %v1133
    %v1156 = vmul.f32 %v1155, %v1133
    %v1157 = vmul.f32 %v1156, %v1155
    %v1158 = vmul.f32 0.5, %v1157
    %v1159 = vsub.f32 1.5, %v1158
    %v1160 = vmul.f32 %v1155, %v1159
    %vm1161 = vweird.f32 %v1133
    %vm1162 = vweird.f32 %v1155
    %vm1163 = vmor %vm1161, %vm1162
    %v1164 = vsel %vm1163, %v1155, %v1160
    %v1165 = vrsqrt.pop %v1134
    %v1166 = vmul.f32 %v1165, %v1134
    %v1167 = vmul.f32 %v1166, %v1165
    %v1168 = vmul.f32 0.5, %v1167
    %v1169 = vsub.f32 1.5, %v1168
    %v1170 = vmul.f32 %v1165, %v1169
    %vm1171 = vweird.f32 %v1134
    %vm1172 = vweird.f32 %v1165
    %vm1173 = vmor %vm1171, %vm1172
    %v1174 = vsel %vm1173, %v1165, %v1170
    %v1175 = vmul.f32 %v937, %v1144
    %v1176 = vmul.f32 %v938, %v1154
    %v1177 = vmul.f32 %v939, %v1164
    %v1178 = vmul.f32 %v940, %v1174
    %v1179 = vmul.f32 %v1086, %v1175
    %v1180 = vmul.f32 %v1087, %v1176
    %v1181 = vmul.f32 %v1088, %v1177
    %v1182 = vmul.f32 %v1089, %v1178
    %v1183 = vsub.f32 %v941, %v1179
    %v1184 = vsub.f32 %v942, %v1180
    %v1185 = vsub.f32 %v943, %v1181
    %v1186 = vsub.f32 %v944, %v1182
    %vm1187 = vcmask 261120
    %v1189 = vsel %vm1187, %v921, 0
    %v1192 = vsel %vm1187, %v922, 0
    %v1195 = vsel %vm1187, %v923, 0
    %v1198 = vsel %vm1187, %v924, 0
    %v1201 = vsel %vm1187, %v925, 0
    %v1204 = vsel %vm1187, %v926, 0
    %v1207 = vsel %vm1187, %v927, 0
    %v1210 = vsel %vm1187, %v928, 0
    %v1213 = vsel %vm1187, %v929, 0
    %v1216 = vsel %vm1187, %v930, 0
    %v1219 = vsel %vm1187, %v931, 0
    %v1222 = vsel %vm1187, %v932, 0
    %v1225 = vsel %vm1187, %v933, 0
    %v1228 = vsel %vm1187, %v934, 0
    %v1231 = vsel %vm1187, %v935, 0
    %v1234 = vsel %vm1187, %v936, 0
    %1236 = vmatpush.msra.mxu0 0.0
    %1237 = vmatpush.msra.mxu0 0.0
    %1238 = vmatpush.msra.mxu0 0.0
    %1239 = vmatpush.msra.mxu0 0.0
    %1240 = vmatpush.msra.mxu0 0.0
    %1241 = vmatpush.msra.mxu0 0.0
    %1242 = vmatpush.msra.mxu0 0.0
    %1243 = vmatpush.msra.mxu0 0.0
    %1244 = vmatpush.msra.mxu0 0.0
    %1245 = vmatpush.msra.mxu0 0.0
    %1246 = vmatpush.msra.mxu0 0.0
    %1247 = vmatpush.msra.mxu0 0.0
    %1248 = vmatpush.msra.mxu0 %v1178
    %1249 = vmatpush.msra.mxu0 %v1177
    %1250 = vmatpush.msra.mxu0 %v1176
    %1251 = vmatpush.msra.mxu0 %v1175
    %1252 = vmatmul.f32.gmra.mxu0 %v1189
    %v1253 = vpop.f32.mrf.mxu0
    %v1254 = vadd.f32 0.0, %v1253
    %1255 = vmatmul.f32.gmra.mxu0 %v1192
    %v1256 = vpop.f32.mrf.mxu0
    %v1257 = vadd.f32 0.0, %v1256
    %1258 = vmatmul.f32.gmra.mxu0 %v1195
    %v1259 = vpop.f32.mrf.mxu0
    %v1260 = vadd.f32 0.0, %v1259
    %1261 = vmatmul.f32.gmra.mxu0 %v1198
    %v1262 = vpop.f32.mrf.mxu0
    %v1263 = vadd.f32 0.0, %v1262
    %1264 = vmatmul.f32.gmra.mxu0 %v1201
    %v1265 = vpop.f32.mrf.mxu0
    %v1266 = vadd.f32 0.0, %v1265
    %1267 = vmatmul.f32.gmra.mxu0 %v1204
    %v1268 = vpop.f32.mrf.mxu0
    %v1269 = vadd.f32 0.0, %v1268
    %1270 = vmatmul.f32.gmra.mxu0 %v1207
    %v1271 = vpop.f32.mrf.mxu0
    %v1272 = vadd.f32 0.0, %v1271
    %1273 = vmatmul.f32.gmra.mxu0 %v1210
    %v1274 = vpop.f32.mrf.mxu0
    %v1275 = vadd.f32 0.0, %v1274
    %1276 = vmatmul.f32.gmra.mxu0 %v1213
    %v1277 = vpop.f32.mrf.mxu0
    %v1278 = vadd.f32 0.0, %v1277
    %1279 = vmatmul.f32.gmra.mxu0 %v1216
    %v1280 = vpop.f32.mrf.mxu0
    %v1281 = vadd.f32 0.0, %v1280
    %1282 = vmatmul.f32.gmra.mxu0 %v1219
    %v1283 = vpop.f32.mrf.mxu0
    %v1284 = vadd.f32 0.0, %v1283
    %1285 = vmatmul.f32.gmra.mxu0 %v1222
    %v1286 = vpop.f32.mrf.mxu0
    %v1287 = vadd.f32 0.0, %v1286
    %1288 = vmatmul.f32.gmra.mxu0 %v1225
    %v1289 = vpop.f32.mrf.mxu0
    %v1290 = vadd.f32 0.0, %v1289
    %1291 = vmatmul.f32.gmra.mxu0 %v1228
    %v1292 = vpop.f32.mrf.mxu0
    %v1293 = vadd.f32 0.0, %v1292
    %1294 = vmatmul.f32.gmra.mxu0 %v1231
    %v1295 = vpop.f32.mrf.mxu0
    %v1296 = vadd.f32 0.0, %v1295
    %1297 = vmatmul.f32.gmra.mxu0 %v1234
    %v1298 = vpop.f32.mrf.mxu0
    %v1299 = vadd.f32 0.0, %v1298
    %1300 = vdwg.mxu0
    %1301 = vmatpush.msra.mxu0 0.0
    %1302 = vmatpush.msra.mxu0 0.0
    %1303 = vmatpush.msra.mxu0 0.0
    %1304 = vmatpush.msra.mxu0 0.0
    %1305 = vmatpush.msra.mxu0 0.0
    %1306 = vmatpush.msra.mxu0 0.0
    %1307 = vmatpush.msra.mxu0 0.0
    %1308 = vmatpush.msra.mxu0 0.0
    %1309 = vmatpush.msra.mxu0 0.0
    %1310 = vmatpush.msra.mxu0 0.0
    %1311 = vmatpush.msra.mxu0 0.0
    %1312 = vmatpush.msra.mxu0 0.0
    %1313 = vmatpush.msra.mxu0 %v1186
    %1314 = vmatpush.msra.mxu0 %v1185
    %1315 = vmatpush.msra.mxu0 %v1184
    %1316 = vmatpush.msra.mxu0 %v1183
    %1317 = vmatmul.f32.gmra.mxu0 %v1189
    %v1318 = vpop.f32.mrf.mxu0
    %v1319 = vadd.f32 0.0, %v1318
    %1320 = vmatmul.f32.gmra.mxu0 %v1192
    %v1321 = vpop.f32.mrf.mxu0
    %v1322 = vadd.f32 0.0, %v1321
    %1323 = vmatmul.f32.gmra.mxu0 %v1195
    %v1324 = vpop.f32.mrf.mxu0
    %v1325 = vadd.f32 0.0, %v1324
    %1326 = vmatmul.f32.gmra.mxu0 %v1198
    %v1327 = vpop.f32.mrf.mxu0
    %v1328 = vadd.f32 0.0, %v1327
    %1329 = vmatmul.f32.gmra.mxu0 %v1201
    %v1330 = vpop.f32.mrf.mxu0
    %v1331 = vadd.f32 0.0, %v1330
    %1332 = vmatmul.f32.gmra.mxu0 %v1204
    %v1333 = vpop.f32.mrf.mxu0
    %v1334 = vadd.f32 0.0, %v1333
    %1335 = vmatmul.f32.gmra.mxu0 %v1207
    %v1336 = vpop.f32.mrf.mxu0
    %v1337 = vadd.f32 0.0, %v1336
    %1338 = vmatmul.f32.gmra.mxu0 %v1210
    %v1339 = vpop.f32.mrf.mxu0
    %v1340 = vadd.f32 0.0, %v1339
    %1341 = vmatmul.f32.gmra.mxu0 %v1213
    %v1342 = vpop.f32.mrf.mxu0
    %v1343 = vadd.f32 0.0, %v1342
    %1344 = vmatmul.f32.gmra.mxu0 %v1216
    %v1345 = vpop.f32.mrf.mxu0
    %v1346 = vadd.f32 0.0, %v1345
    %1347 = vmatmul.f32.gmra.mxu0 %v1219
    %v1348 = vpop.f32.mrf.mxu0
    %v1349 = vadd.f32 0.0, %v1348
    %1350 = vmatmul.f32.gmra.mxu0 %v1222
    %v1351 = vpop.f32.mrf.mxu0
    %v1352 = vadd.f32 0.0, %v1351
    %1353 = vmatmul.f32.gmra.mxu0 %v1225
    %v1354 = vpop.f32.mrf.mxu0
    %v1355 = vadd.f32 0.0, %v1354
    %1356 = vmatmul.f32.gmra.mxu0 %v1228
    %v1357 = vpop.f32.mrf.mxu0
    %v1358 = vadd.f32 0.0, %v1357
    %1359 = vmatmul.f32.gmra.mxu0 %v1231
    %v1360 = vpop.f32.mrf.mxu0
    %v1361 = vadd.f32 0.0, %v1360
    %1362 = vmatmul.f32.gmra.mxu0 %v1234
    %v1363 = vpop.f32.mrf.mxu0
    %v1364 = vadd.f32 0.0, %v1363
    %1365 = vdwg.mxu0
    %1367 = vset.pattern.permute.xlu0 0
    %1368 = vperm.xlu0 %1367, %v1254
    %v1369 = vpop.permute.xlu0 %1368
    %1372 = vset.pattern.permute.xlu0 0
    %1373 = vperm.xlu0 %1372, %v1257
    %v1374 = vpop.permute.xlu0 %1373
    %1377 = vset.pattern.permute.xlu0 0
    %1378 = vperm.xlu0 %1377, %v1260
    %v1379 = vpop.permute.xlu0 %1378
    %1382 = vset.pattern.permute.xlu0 0
    %1383 = vperm.xlu0 %1382, %v1263
    %v1384 = vpop.permute.xlu0 %1383
    %1387 = vset.pattern.permute.xlu0 0
    %1388 = vperm.xlu0 %1387, %v1266
    %v1389 = vpop.permute.xlu0 %1388
    %1392 = vset.pattern.permute.xlu0 0
    %1393 = vperm.xlu0 %1392, %v1269
    %v1394 = vpop.permute.xlu0 %1393
    %1397 = vset.pattern.permute.xlu0 0
    %1398 = vperm.xlu0 %1397, %v1272
    %v1399 = vpop.permute.xlu0 %1398
    %1402 = vset.pattern.permute.xlu0 0
    %1403 = vperm.xlu0 %1402, %v1275
    %v1404 = vpop.permute.xlu0 %1403
    %1407 = vset.pattern.permute.xlu0 0
    %1408 = vperm.xlu0 %1407, %v1278
    %v1409 = vpop.permute.xlu0 %1408
    %1412 = vset.pattern.permute.xlu0 0
    %1413 = vperm.xlu0 %1412, %v1281
    %v1414 = vpop.permute.xlu0 %1413
    %1417 = vset.pattern.permute.xlu0 0
    %1418 = vperm.xlu0 %1417, %v1284
    %v1419 = vpop.permute.xlu0 %1418
    %1422 = vset.pattern.permute.xlu0 0
    %1423 = vperm.xlu0 %1422, %v1287
    %v1424 = vpop.permute.xlu0 %1423
    %1427 = vset.pattern.permute.xlu0 0
    %1428 = vperm.xlu0 %1427, %v1290
    %v1429 = vpop.permute.xlu0 %1428
    %1432 = vset.pattern.permute.xlu0 0
    %1433 = vperm.xlu0 %1432, %v1293
    %v1434 = vpop.permute.xlu0 %1433
    %1437 = vset.pattern.permute.xlu0 0
    %1438 = vperm.xlu0 %1437, %v1296
    %v1439 = vpop.permute.xlu0 %1438
    %1442 = vset.pattern.permute.xlu0 0
    %1443 = vperm.xlu0 %1442, %v1299
    %v1444 = vpop.permute.xlu0 %1443
    %v1446 = vmul.f32 %v901, %v1369
    %v1447 = vmul.f32 %v902, %v1374
    %v1448 = vmul.f32 %v903, %v1379
    %v1449 = vmul.f32 %v904, %v1384
    %v1450 = vmul.f32 %v905, %v1389
    %v1451 = vmul.f32 %v906, %v1394
    %v1452 = vmul.f32 %v907, %v1399
    %v1453 = vmul.f32 %v908, %v1404
    %v1454 = vmul.f32 %v909, %v1409
    %v1455 = vmul.f32 %v910, %v1414
    %v1456 = vmul.f32 %v911, %v1419
    %v1457 = vmul.f32 %v912, %v1424
    %v1458 = vmul.f32 %v913, %v1429
    %v1459 = vmul.f32 %v914, %v1434
    %v1460 = vmul.f32 %v915, %v1439
    %v1461 = vmul.f32 %v916, %v1444
    %1463 = vset.pattern.permute.xlu0 0
    %1464 = vperm.xlu0 %1463, %v1319
    %v1465 = vpop.permute.xlu0 %1464
    %1468 = vset.pattern.permute.xlu0 0
    %1469 = vperm.xlu0 %1468, %v1322
    %v1470 = vpop.permute.xlu0 %1469
    %1473 = vset.pattern.permute.xlu0 0
    %1474 = vperm.xlu0 %1473, %v1325
    %v1475 = vpop.permute.xlu0 %1474
    %1478 = vset.pattern.permute.xlu0 0
    %1479 = vperm.xlu0 %1478, %v1328
    %v1480 = vpop.permute.xlu0 %1479
    %1483 = vset.pattern.permute.xlu0 0
    %1484 = vperm.xlu0 %1483, %v1331
    %v1485 = vpop.permute.xlu0 %1484
    %1488 = vset.pattern.permute.xlu0 0
    %1489 = vperm.xlu0 %1488, %v1334
    %v1490 = vpop.permute.xlu0 %1489
    %1493 = vset.pattern.permute.xlu0 0
    %1494 = vperm.xlu0 %1493, %v1337
    %v1495 = vpop.permute.xlu0 %1494
    %1498 = vset.pattern.permute.xlu0 0
    %1499 = vperm.xlu0 %1498, %v1340
    %v1500 = vpop.permute.xlu0 %1499
    %1503 = vset.pattern.permute.xlu0 0
    %1504 = vperm.xlu0 %1503, %v1343
    %v1505 = vpop.permute.xlu0 %1504
    %1508 = vset.pattern.permute.xlu0 0
    %1509 = vperm.xlu0 %1508, %v1346
    %v1510 = vpop.permute.xlu0 %1509
    %1513 = vset.pattern.permute.xlu0 0
    %1514 = vperm.xlu0 %1513, %v1349
    %v1515 = vpop.permute.xlu0 %1514
    %1518 = vset.pattern.permute.xlu0 0
    %1519 = vperm.xlu0 %1518, %v1352
    %v1520 = vpop.permute.xlu0 %1519
    %1523 = vset.pattern.permute.xlu0 0
    %1524 = vperm.xlu0 %1523, %v1355
    %v1525 = vpop.permute.xlu0 %1524
    %1528 = vset.pattern.permute.xlu0 0
    %1529 = vperm.xlu0 %1528, %v1358
    %v1530 = vpop.permute.xlu0 %1529
    %1533 = vset.pattern.permute.xlu0 0
    %1534 = vperm.xlu0 %1533, %v1361
    %v1535 = vpop.permute.xlu0 %1534
    %1538 = vset.pattern.permute.xlu0 0
    %1539 = vperm.xlu0 %1538, %v1364
    %v1540 = vpop.permute.xlu0 %1539
    %v1542 = vadd.f32 %v1446, %v1465
    %v1543 = vadd.f32 %v1447, %v1470
    %v1544 = vadd.f32 %v1448, %v1475
    %v1545 = vadd.f32 %v1449, %v1480
    %v1546 = vadd.f32 %v1450, %v1485
    %v1547 = vadd.f32 %v1451, %v1490
    %v1548 = vadd.f32 %v1452, %v1495
    %v1549 = vadd.f32 %v1453, %v1500
    %v1550 = vadd.f32 %v1454, %v1505
    %v1551 = vadd.f32 %v1455, %v1510
    %v1552 = vadd.f32 %v1456, %v1515
    %v1553 = vadd.f32 %v1457, %v1520
    %v1554 = vadd.f32 %v1458, %v1525
    %v1555 = vadd.f32 %v1459, %v1530
    %v1556 = vadd.f32 %v1460, %v1535
    %v1557 = vadd.f32 %v1461, %v1540
    %vm1558 = vcmp.ge.f32.partialorder %v1542, 0.0
    %vm1559 = vcmp.ge.f32.partialorder %v1543, 0.0
    %vm1560 = vcmp.ge.f32.partialorder %v1544, 0.0
    %vm1561 = vcmp.ge.f32.partialorder %v1545, 0.0
    %vm1562 = vcmp.ge.f32.partialorder %v1546, 0.0
    %vm1563 = vcmp.ge.f32.partialorder %v1547, 0.0
    %vm1564 = vcmp.ge.f32.partialorder %v1548, 0.0
    %vm1565 = vcmp.ge.f32.partialorder %v1549, 0.0
    %vm1566 = vcmp.ge.f32.partialorder %v1550, 0.0
    %vm1567 = vcmp.ge.f32.partialorder %v1551, 0.0
    %vm1568 = vcmp.ge.f32.partialorder %v1552, 0.0
    %vm1569 = vcmp.ge.f32.partialorder %v1553, 0.0
    %vm1570 = vcmp.ge.f32.partialorder %v1554, 0.0
    %vm1571 = vcmp.ge.f32.partialorder %v1555, 0.0
    %vm1572 = vcmp.ge.f32.partialorder %v1556, 0.0
    %vm1573 = vcmp.ge.f32.partialorder %v1557, 0.0
    %v1574 = vmul.f32 %v1542, 0.2
    %v1575 = vmul.f32 %v1543, 0.2
    %v1576 = vmul.f32 %v1544, 0.2
    %v1577 = vmul.f32 %v1545, 0.2
    %v1578 = vmul.f32 %v1546, 0.2
    %v1579 = vmul.f32 %v1547, 0.2
    %v1580 = vmul.f32 %v1548, 0.2
    %v1581 = vmul.f32 %v1549, 0.2
    %v1582 = vmul.f32 %v1550, 0.2
    %v1583 = vmul.f32 %v1551, 0.2
    %v1584 = vmul.f32 %v1552, 0.2
    %v1585 = vmul.f32 %v1553, 0.2
    %v1586 = vmul.f32 %v1554, 0.2
    %v1587 = vmul.f32 %v1555, 0.2
    %v1588 = vmul.f32 %v1556, 0.2
    %v1589 = vmul.f32 %v1557, 0.2
    %v1590 = vsel %vm1558, %v1542, %v1574
    %v1591 = vsel %vm1559, %v1543, %v1575
    %v1592 = vsel %vm1560, %v1544, %v1576
    %v1593 = vsel %vm1561, %v1545, %v1577
    %v1594 = vsel %vm1562, %v1546, %v1578
    %v1595 = vsel %vm1563, %v1547, %v1579
    %v1596 = vsel %vm1564, %v1548, %v1580
    %v1597 = vsel %vm1565, %v1549, %v1581
    %v1598 = vsel %vm1566, %v1550, %v1582
    %v1599 = vsel %vm1567, %v1551, %v1583
    %v1600 = vsel %vm1568, %v1552, %v1584
    %v1601 = vsel %vm1569, %v1553, %v1585
    %v1602 = vsel %vm1570, %v1554, %v1586
    %v1603 = vsel %vm1571, %v1555, %v1587
    %v1604 = vsel %vm1572, %v1556, %v1588
    %v1605 = vsel %vm1573, %v1557, %v1589
    %v1606 = vld [vmem:[#allocation2 + $0x110] sm:$0xf]
    %v1607 = vld [vmem:[#allocation2 + $0x114] sm:$0xf]
    %v1608 = vld [vmem:[#allocation2 + $0x118] sm:$0xf]
    %v1609 = vld [vmem:[#allocation2 + $0x11c] sm:$0xf]
    %v1610 = vld [vmem:[#allocation2 + $0x120] sm:$0xf]
    %v1611 = vld [vmem:[#allocation2 + $0x124] sm:$0xf]
    %v1612 = vld [vmem:[#allocation2 + $0x128] sm:$0xf]
    %v1613 = vld [vmem:[#allocation2 + $0x12c] sm:$0xf]
    %v1614 = vld [vmem:[#allocation2 + $0x130] sm:$0xf]
    %v1615 = vld [vmem:[#allocation2 + $0x134] sm:$0xf]
    %v1616 = vld [vmem:[#allocation2 + $0x138] sm:$0xf]
    %v1617 = vld [vmem:[#allocation2 + $0x13c] sm:$0xf]
    %v1618 = vld [vmem:[#allocation2 + $0x140] sm:$0xf]
    %v1619 = vld [vmem:[#allocation2 + $0x144] sm:$0xf]
    %v1620 = vld [vmem:[#allocation2 + $0x148] sm:$0xf]
    %v1621 = vld [vmem:[#allocation2 + $0x14c] sm:$0xf]
    %v1622 = vld [vmem:[#allocation2 + $0x150] sm:$0xf]
    %v1623 = vld [vmem:[#allocation2 + $0x154] sm:$0xf]
    %v1624 = vld [vmem:[#allocation2 + $0x158] sm:$0xf]
    %v1625 = vld [vmem:[#allocation2 + $0x15c] sm:$0xf]
    %v1626 = vld [vmem:[#allocation2 + $0x160] sm:$0xf]
    %v1627 = vld [vmem:[#allocation2 + $0x164] sm:$0xf]
    %v1628 = vld [vmem:[#allocation2 + $0x168] sm:$0xf]
    %v1629 = vld [vmem:[#allocation2 + $0x16c] sm:$0xf]
    %v1630 = vld [vmem:[#allocation2 + $0x170] sm:$0xf]
    %v1631 = vld [vmem:[#allocation2 + $0x174] sm:$0xf]
    %v1632 = vld [vmem:[#allocation2 + $0x178] sm:$0xf]
    %v1633 = vld [vmem:[#allocation2 + $0x17c] sm:$0xf]
    %v1634 = vld [vmem:[#allocation2 + $0x180] sm:$0xf]
    %v1635 = vld [vmem:[#allocation2 + $0x184] sm:$0xf]
    %v1636 = vld [vmem:[#allocation2 + $0x188] sm:$0xf]
    %v1637 = vld [vmem:[#allocation2 + $0x18c] sm:$0xf]
    %v1638 = vld [vmem:[#allocation2 + $0x190] sm:$0xf]
    %v1639 = vld [vmem:[#allocation2 + $0x194] sm:$0xf]
    %v1640 = vld [vmem:[#allocation2 + $0x198] sm:$0xf]
    %v1641 = vld [vmem:[#allocation2 + $0x19c] sm:$0xf]
    %v1642 = vld [vmem:[#allocation2 + $0x1a0] sm:$0xf]
    %v1643 = vld [vmem:[#allocation2 + $0x1a4] sm:$0xf]
    %v1644 = vld [vmem:[#allocation2 + $0x1a8] sm:$0xf]
    %v1645 = vld [vmem:[#allocation2 + $0x1ac] sm:$0xf]
    %v1646 = vld [vmem:[#allocation2 + $0x1b0] sm:$0xf]
    %v1647 = vld [vmem:[#allocation2 + $0x1b4] sm:$0xf]
    %v1648 = vld [vmem:[#allocation2 + $0x1b8] sm:$0xf]
    %v1649 = vld [vmem:[#allocation2 + $0x1bc] sm:$0xf]
    %v1650 = vld [vmem:[#allocation2 + $0x1c0] sm:$0xf]
    %v1651 = vld [vmem:[#allocation2 + $0x1c4] sm:$0xf]
    %v1652 = vld [vmem:[#allocation2 + $0x1c8] sm:$0xf]
    %v1653 = vld [vmem:[#allocation2 + $0x1cc] sm:$0xf]
    %v1654 = vld [vmem:[#allocation2 + $0x1d0] sm:$0xf]
    %v1655 = vld [vmem:[#allocation2 + $0x1d4] sm:$0xf]
    %v1656 = vld [vmem:[#allocation2 + $0x1d8] sm:$0xf]
    %v1657 = vld [vmem:[#allocation2 + $0x1dc] sm:$0xf]
    %v1658 = vld [vmem:[#allocation2 + $0x1e0] sm:$0xf]
    %v1659 = vld [vmem:[#allocation2 + $0x1e4] sm:$0xf]
    %v1660 = vld [vmem:[#allocation2 + $0x1e8] sm:$0xf]
    %v1661 = vld [vmem:[#allocation2 + $0x1ec] sm:$0xf]
    %v1662 = vld [vmem:[#allocation2 + $0x1f0] sm:$0xf]
    %v1663 = vld [vmem:[#allocation2 + $0x1f4] sm:$0xf]
    %v1664 = vld [vmem:[#allocation2 + $0x1f8] sm:$0xf]
    %v1665 = vld [vmem:[#allocation2 + $0x1fc] sm:$0xf]
    %v1666 = vld [vmem:[#allocation2 + $0x200] sm:$0xf]
    %v1667 = vld [vmem:[#allocation2 + $0x204] sm:$0xf]
    %v1668 = vld [vmem:[#allocation2 + $0x208] sm:$0xf]
    %v1669 = vld [vmem:[#allocation2 + $0x20c] sm:$0xf]
    %v1670 = vpack.c.bf16 %v1591, %v1590
    %v1671 = vpack.c.bf16 %v1593, %v1592
    %v1672 = vpack.c.bf16 %v1595, %v1594
    %v1673 = vpack.c.bf16 %v1597, %v1596
    %v1674 = vpack.c.bf16 %v1599, %v1598
    %v1675 = vpack.c.bf16 %v1601, %v1600
    %v1676 = vpack.c.bf16 %v1603, %v1602
    %v1677 = vpack.c.bf16 %v1605, %v1604
    %v1742 = vunpack.c.l.b16 %v1606
    %v1743 = vunpack.c.l.b16 %v1607
    %v1744 = vunpack.c.l.b16 %v1608
    %v1745 = vunpack.c.l.b16 %v1609
    %v1746 = vunpack.c.l.b16 %v1610
    %v1747 = vunpack.c.l.b16 %v1611
    %v1748 = vunpack.c.l.b16 %v1612
    %v1749 = vunpack.c.l.b16 %v1613
    %v1750 = vunpack.c.l.b16 %v1614
    %v1751 = vunpack.c.l.b16 %v1615
    %v1752 = vunpack.c.l.b16 %v1616
    %v1753 = vunpack.c.l.b16 %v1617
    %v1754 = vunpack.c.l.b16 %v1618
    %v1755 = vunpack.c.l.b16 %v1619
    %v1756 = vunpack.c.l.b16 %v1620
    %v1757 = vunpack.c.l.b16 %v1621
    %v1758 = vunpack.c.l.b16 %v1622
    %v1759 = vunpack.c.l.b16 %v1623
    %v1760 = vunpack.c.l.b16 %v1624
    %v1761 = vunpack.c.l.b16 %v1625
    %v1762 = vunpack.c.l.b16 %v1626
    %v1763 = vunpack.c.l.b16 %v1627
    %v1764 = vunpack.c.l.b16 %v1628
    %v1765 = vunpack.c.l.b16 %v1629
    %v1766 = vunpack.c.l.b16 %v1630
    %v1767 = vunpack.c.l.b16 %v1631
    %v1768 = vunpack.c.l.b16 %v1632
    %v1769 = vunpack.c.l.b16 %v1633
    %v1770 = vunpack.c.l.b16 %v1634
    %v1771 = vunpack.c.l.b16 %v1635
    %v1772 = vunpack.c.l.b16 %v1636
    %v1773 = vunpack.c.l.b16 %v1637
    %v1774 = vunpack.c.l.b16 %v1638
    %v1775 = vunpack.c.l.b16 %v1639
    %v1776 = vunpack.c.l.b16 %v1640
    %v1777 = vunpack.c.l.b16 %v1641
    %v1778 = vunpack.c.l.b16 %v1642
    %v1779 = vunpack.c.l.b16 %v1643
    %v1780 = vunpack.c.l.b16 %v1644
    %v1781 = vunpack.c.l.b16 %v1645
    %v1782 = vunpack.c.l.b16 %v1646
    %v1783 = vunpack.c.l.b16 %v1647
    %v1784 = vunpack.c.l.b16 %v1648
    %v1785 = vunpack.c.l.b16 %v1649
    %v1786 = vunpack.c.l.b16 %v1650
    %v1787 = vunpack.c.l.b16 %v1651
    %v1788 = vunpack.c.l.b16 %v1652
    %v1789 = vunpack.c.l.b16 %v1653
    %v1790 = vunpack.c.l.b16 %v1654
    %v1791 = vunpack.c.l.b16 %v1655
    %v1792 = vunpack.c.l.b16 %v1656
    %v1793 = vunpack.c.l.b16 %v1657
    %v1794 = vunpack.c.l.b16 %v1658
    %v1795 = vunpack.c.l.b16 %v1659
    %v1796 = vunpack.c.l.b16 %v1660
    %v1797 = vunpack.c.l.b16 %v1661
    %v1798 = vunpack.c.l.b16 %v1662
    %v1799 = vunpack.c.l.b16 %v1663
    %v1800 = vunpack.c.l.b16 %v1664
    %v1801 = vunpack.c.l.b16 %v1665
    %v1802 = vunpack.c.l.b16 %v1666
    %v1803 = vunpack.c.l.b16 %v1667
    %v1804 = vunpack.c.l.b16 %v1668
    %v1805 = vunpack.c.l.b16 %v1669
    %v1806 = vpack.c.b16 %v1743, %v1742
    %v1807 = vpack.c.b16 %v1745, %v1744
    %v1808 = vpack.c.b16 %v1747, %v1746
    %v1809 = vpack.c.b16 %v1749, %v1748
    %v1810 = vpack.c.b16 %v1751, %v1750
    %v1811 = vpack.c.b16 %v1753, %v1752
    %v1812 = vpack.c.b16 %v1755, %v1754
    %v1813 = vpack.c.b16 %v1757, %v1756
    %v1814 = vpack.c.b16 %v1759, %v1758
    %v1815 = vpack.c.b16 %v1761, %v1760
    %v1816 = vpack.c.b16 %v1763, %v1762
    %v1817 = vpack.c.b16 %v1765, %v1764
    %v1818 = vpack.c.b16 %v1767, %v1766
    %v1819 = vpack.c.b16 %v1769, %v1768
    %v1820 = vpack.c.b16 %v1771, %v1770
    %v1821 = vpack.c.b16 %v1773, %v1772
    %v1822 = vpack.c.b16 %v1775, %v1774
    %v1823 = vpack.c.b16 %v1777, %v1776
    %v1824 = vpack.c.b16 %v1779, %v1778
    %v1825 = vpack.c.b16 %v1781, %v1780
    %v1826 = vpack.c.b16 %v1783, %v1782
    %v1827 = vpack.c.b16 %v1785, %v1784
    %v1828 = vpack.c.b16 %v1787, %v1786
    %v1829 = vpack.c.b16 %v1789, %v1788
    %v1830 = vpack.c.b16 %v1791, %v1790
    %v1831 = vpack.c.b16 %v1793, %v1792
    %v1832 = vpack.c.b16 %v1795, %v1794
    %v1833 = vpack.c.b16 %v1797, %v1796
    %v1834 = vpack.c.b16 %v1799, %v1798
    %v1835 = vpack.c.b16 %v1801, %v1800
    %v1836 = vpack.c.b16 %v1803, %v1802
    %v1837 = vpack.c.b16 %v1805, %v1804
    %1870 = vmatpush.bf16.msra.mxu0 %v1677
    %1871 = vmatpush.bf16.msra.mxu0 %v1676
    %1872 = vmatpush.bf16.msra.mxu0 %v1675
    %1873 = vmatpush.bf16.msra.mxu0 %v1674
    %1874 = vmatpush.bf16.msra.mxu0 %v1673
    %1875 = vmatpush.bf16.msra.mxu0 %v1672
    %1876 = vmatpush.bf16.msra.mxu0 %v1671
    %1877 = vmatpush.bf16.msra.mxu0 %v1670
    %1878 = vmatmul.bf16.gmra.mxu0 %v1806
    %v1879 = vpop.f32.mrf.mxu0
    %v1880 = vadd.f32 0.0, %v1879
    %v1881 = vpop.f32.mrf.mxu0
    %v1882 = vadd.f32 0.0, %v1881
    %1883 = vmatmul.bf16.gmra.mxu0 %v1807
    %v1884 = vpop.f32.mrf.mxu0
    %v1885 = vadd.f32 0.0, %v1884
    %v1886 = vpop.f32.mrf.mxu0
    %v1887 = vadd.f32 0.0, %v1886
    %1888 = vmatmul.bf16.gmra.mxu0 %v1808
    %v1889 = vpop.f32.mrf.mxu0
    %v1890 = vadd.f32 0.0, %v1889
    %v1891 = vpop.f32.mrf.mxu0
    %v1892 = vadd.f32 0.0, %v1891
    %1893 = vmatmul.bf16.gmra.mxu0 %v1809
    %v1894 = vpop.f32.mrf.mxu0
    %v1895 = vadd.f32 0.0, %v1894
    %v1896 = vpop.f32.mrf.mxu0
    %v1897 = vadd.f32 0.0, %v1896
    %1898 = vmatmul.bf16.gmra.mxu0 %v1810
    %v1899 = vpop.f32.mrf.mxu0
    %v1900 = vadd.f32 0.0, %v1899
    %v1901 = vpop.f32.mrf.mxu0
    %v1902 = vadd.f32 0.0, %v1901
    %1903 = vmatmul.bf16.gmra.mxu0 %v1811
    %v1904 = vpop.f32.mrf.mxu0
    %v1905 = vadd.f32 0.0, %v1904
    %v1906 = vpop.f32.mrf.mxu0
    %v1907 = vadd.f32 0.0, %v1906
    %1908 = vmatmul.bf16.gmra.mxu0 %v1812
    %v1909 = vpop.f32.mrf.mxu0
    %v1910 = vadd.f32 0.0, %v1909
    %v1911 = vpop.f32.mrf.mxu0
    %v1912 = vadd.f32 0.0, %v1911
    %1913 = vmatmul.bf16.gmra.mxu0 %v1813
    %v1914 = vpop.f32.mrf.mxu0
    %v1915 = vadd.f32 0.0, %v1914
    %v1916 = vpop.f32.mrf.mxu0
    %v1917 = vadd.f32 0.0, %v1916
    %1918 = vmatmul.bf16.gmra.mxu0 %v1814
    %v1919 = vpop.f32.mrf.mxu0
    %v1920 = vadd.f32 0.0, %v1919
    %v1921 = vpop.f32.mrf.mxu0
    %v1922 = vadd.f32 0.0, %v1921
    %1923 = vmatmul.bf16.gmra.mxu0 %v1815
    %v1924 = vpop.f32.mrf.mxu0
    %v1925 = vadd.f32 0.0, %v1924
    %v1926 = vpop.f32.mrf.mxu0
    %v1927 = vadd.f32 0.0, %v1926
    %1928 = vmatmul.bf16.gmra.mxu0 %v1816
    %v1929 = vpop.f32.mrf.mxu0
    %v1930 = vadd.f32 0.0, %v1929
    %v1931 = vpop.f32.mrf.mxu0
    %v1932 = vadd.f32 0.0, %v1931
    %1933 = vmatmul.bf16.gmra.mxu0 %v1817
    %v1934 = vpop.f32.mrf.mxu0
    %v1935 = vadd.f32 0.0, %v1934
    %v1936 = vpop.f32.mrf.mxu0
    %v1937 = vadd.f32 0.0, %v1936
    %1938 = vmatmul.bf16.gmra.mxu0 %v1818
    %v1939 = vpop.f32.mrf.mxu0
    %v1940 = vadd.f32 0.0, %v1939
    %v1941 = vpop.f32.mrf.mxu0
    %v1942 = vadd.f32 0.0, %v1941
    %1943 = vmatmul.bf16.gmra.mxu0 %v1819
    %v1944 = vpop.f32.mrf.mxu0
    %v1945 = vadd.f32 0.0, %v1944
    %v1946 = vpop.f32.mrf.mxu0
    %v1947 = vadd.f32 0.0, %v1946
    %1948 = vmatmul.bf16.gmra.mxu0 %v1820
    %v1949 = vpop.f32.mrf.mxu0
    %v1950 = vadd.f32 0.0, %v1949
    %v1951 = vpop.f32.mrf.mxu0
    %v1952 = vadd.f32 0.0, %v1951
    %1953 = vmatmul.bf16.gmra.mxu0 %v1821
    %v1954 = vpop.f32.mrf.mxu0
    %v1955 = vadd.f32 0.0, %v1954
    %v1956 = vpop.f32.mrf.mxu0
    %v1957 = vadd.f32 0.0, %v1956
    %1958 = vmatmul.bf16.gmra.mxu0 %v1822
    %v1959 = vpop.f32.mrf.mxu0
    %v1960 = vadd.f32 0.0, %v1959
    %v1961 = vpop.f32.mrf.mxu0
    %v1962 = vadd.f32 0.0, %v1961
    %1963 = vmatmul.bf16.gmra.mxu0 %v1823
    %v1964 = vpop.f32.mrf.mxu0
    %v1965 = vadd.f32 0.0, %v1964
    %v1966 = vpop.f32.mrf.mxu0
    %v1967 = vadd.f32 0.0, %v1966
    %1968 = vmatmul.bf16.gmra.mxu0 %v1824
    %v1969 = vpop.f32.mrf.mxu0
    %v1970 = vadd.f32 0.0, %v1969
    %v1971 = vpop.f32.mrf.mxu0
    %v1972 = vadd.f32 0.0, %v1971
    %1973 = vmatmul.bf16.gmra.mxu0 %v1825
    %v1974 = vpop.f32.mrf.mxu0
    %v1975 = vadd.f32 0.0, %v1974
    %v1976 = vpop.f32.mrf.mxu0
    %v1977 = vadd.f32 0.0, %v1976
    %1978 = vmatmul.bf16.gmra.mxu0 %v1826
    %v1979 = vpop.f32.mrf.mxu0
    %v1980 = vadd.f32 0.0, %v1979
    %v1981 = vpop.f32.mrf.mxu0
    %v1982 = vadd.f32 0.0, %v1981
    %1983 = vmatmul.bf16.gmra.mxu0 %v1827
    %v1984 = vpop.f32.mrf.mxu0
    %v1985 = vadd.f32 0.0, %v1984
    %v1986 = vpop.f32.mrf.mxu0
    %v1987 = vadd.f32 0.0, %v1986
    %1988 = vmatmul.bf16.gmra.mxu0 %v1828
    %v1989 = vpop.f32.mrf.mxu0
    %v1990 = vadd.f32 0.0, %v1989
    %v1991 = vpop.f32.mrf.mxu0
    %v1992 = vadd.f32 0.0, %v1991
    %1993 = vmatmul.bf16.gmra.mxu0 %v1829
    %v1994 = vpop.f32.mrf.mxu0
    %v1995 = vadd.f32 0.0, %v1994
    %v1996 = vpop.f32.mrf.mxu0
    %v1997 = vadd.f32 0.0, %v1996
    %1998 = vmatmul.bf16.gmra.mxu0 %v1830
    %v1999 = vpop.f32.mrf.mxu0
    %v2000 = vadd.f32 0.0, %v1999
    %v2001 = vpop.f32.mrf.mxu0
    %v2002 = vadd.f32 0.0, %v2001
    %2003 = vmatmul.bf16.gmra.mxu0 %v1831
    %v2004 = vpop.f32.mrf.mxu0
    %v2005 = vadd.f32 0.0, %v2004
    %v2006 = vpop.f32.mrf.mxu0
    %v2007 = vadd.f32 0.0, %v2006
    %2008 = vmatmul.bf16.gmra.mxu0 %v1832
    %v2009 = vpop.f32.mrf.mxu0
    %v2010 = vadd.f32 0.0, %v2009
    %v2011 = vpop.f32.mrf.mxu0
    %v2012 = vadd.f32 0.0, %v2011
    %2013 = vmatmul.bf16.gmra.mxu0 %v1833
    %v2014 = vpop.f32.mrf.mxu0
    %v2015 = vadd.f32 0.0, %v2014
    %v2016 = vpop.f32.mrf.mxu0
    %v2017 = vadd.f32 0.0, %v2016
    %2018 = vmatmul.bf16.gmra.mxu0 %v1834
    %v2019 = vpop.f32.mrf.mxu0
    %v2020 = vadd.f32 0.0, %v2019
    %v2021 = vpop.f32.mrf.mxu0
    %v2022 = vadd.f32 0.0, %v2021
    %2023 = vmatmul.bf16.gmra.mxu0 %v1835
    %v2024 = vpop.f32.mrf.mxu0
    %v2025 = vadd.f32 0.0, %v2024
    %v2026 = vpop.f32.mrf.mxu0
    %v2027 = vadd.f32 0.0, %v2026
    %2028 = vmatmul.bf16.gmra.mxu0 %v1836
    %v2029 = vpop.f32.mrf.mxu0
    %v2030 = vadd.f32 0.0, %v2029
    %v2031 = vpop.f32.mrf.mxu0
    %v2032 = vadd.f32 0.0, %v2031
    %2033 = vmatmul.bf16.gmra.mxu0 %v1837
    %v2034 = vpop.f32.mrf.mxu0
    %v2035 = vadd.f32 0.0, %v2034
    %v2036 = vpop.f32.mrf.mxu0
    %v2037 = vadd.f32 0.0, %v2036
    %2038 = vdwg.mxu0
    %v2039 = vld [vmem:[#allocation2 + $0x210] sm:$0xf]
    %v2040 = vpack.c.bf16 %v1882, %v1880
    %v2041 = vpack.c.bf16 %v1887, %v1885
    %v2042 = vpack.c.bf16 %v1892, %v1890
    %v2043 = vpack.c.bf16 %v1897, %v1895
    %v2044 = vpack.c.bf16 %v1902, %v1900
    %v2045 = vpack.c.bf16 %v1907, %v1905
    %v2046 = vpack.c.bf16 %v1912, %v1910
    %v2047 = vpack.c.bf16 %v1917, %v1915
    %v2048 = vld [vmem:[#allocation2 + $0x214] sm:$0xf]
    %v2049 = vpack.c.bf16 %v1922, %v1920
    %v2050 = vpack.c.bf16 %v1927, %v1925
    %v2051 = vpack.c.bf16 %v1932, %v1930
    %v2052 = vpack.c.bf16 %v1937, %v1935
    %v2053 = vpack.c.bf16 %v1942, %v1940
    %v2054 = vpack.c.bf16 %v1947, %v1945
    %v2055 = vpack.c.bf16 %v1952, %v1950
    %v2056 = vpack.c.bf16 %v1957, %v1955
    %v2058 = vsel %vm273, %v2049, 0
    %v2061 = vsel %vm273, %v2050, 0
    %v2064 = vsel %vm273, %v2051, 0
    %v2067 = vsel %vm273, %v2052, 0
    %v2070 = vsel %vm273, %v2053, 0
    %v2073 = vsel %vm273, %v2054, 0
    %v2076 = vsel %vm273, %v2055, 0
    %v2079 = vsel %vm273, %v2056, 0
    %v2082 = vsel %vm370, %v2048, 0
    %2084 = vmatpush.bf16.msra.mxu0 0
    %2085 = vmatpush.bf16.msra.mxu0 0
    %2086 = vmatpush.bf16.msra.mxu0 0
    %2087 = vmatpush.bf16.msra.mxu0 0
    %2088 = vmatpush.bf16.msra.mxu0 0
    %2089 = vmatpush.bf16.msra.mxu0 0
    %2090 = vmatpush.bf16.msra.mxu0 0
    %2091 = vmatpush.bf16.msra.mxu0 %v2082
    %2092 = vmatmul.bf16.gmra.mxu0 %v2058
    %v2093 = vpop.f32.mrf.mxu0
    %v2094 = vadd.f32 0.0, %v2093
    %v2095 = vpop.f32.mrf.mxu0
    %v2096 = vadd.f32 0.0, %v2095
    %2097 = vmatmul.bf16.gmra.mxu0 %v2061
    %v2098 = vpop.f32.mrf.mxu0
    %v2099 = vadd.f32 0.0, %v2098
    %v2100 = vpop.f32.mrf.mxu0
    %v2101 = vadd.f32 0.0, %v2100
    %2102 = vmatmul.bf16.gmra.mxu0 %v2064
    %v2103 = vpop.f32.mrf.mxu0
    %v2104 = vadd.f32 0.0, %v2103
    %v2105 = vpop.f32.mrf.mxu0
    %v2106 = vadd.f32 0.0, %v2105
    %2107 = vmatmul.bf16.gmra.mxu0 %v2067
    %v2108 = vpop.f32.mrf.mxu0
    %v2109 = vadd.f32 0.0, %v2108
    %v2110 = vpop.f32.mrf.mxu0
    %v2111 = vadd.f32 0.0, %v2110
    %2112 = vmatmul.bf16.gmra.mxu0 %v2070
    %v2113 = vpop.f32.mrf.mxu0
    %v2114 = vadd.f32 0.0, %v2113
    %v2115 = vpop.f32.mrf.mxu0
    %v2116 = vadd.f32 0.0, %v2115
    %2117 = vmatmul.bf16.gmra.mxu0 %v2073
    %v2118 = vpop.f32.mrf.mxu0
    %v2119 = vadd.f32 0.0, %v2118
    %v2120 = vpop.f32.mrf.mxu0
    %v2121 = vadd.f32 0.0, %v2120
    %2122 = vmatmul.bf16.gmra.mxu0 %v2076
    %v2123 = vpop.f32.mrf.mxu0
    %v2124 = vadd.f32 0.0, %v2123
    %v2125 = vpop.f32.mrf.mxu0
    %v2126 = vadd.f32 0.0, %v2125
    %2127 = vmatmul.bf16.gmra.mxu0 %v2079
    %v2128 = vpop.f32.mrf.mxu0
    %v2129 = vadd.f32 0.0, %v2128
    %v2130 = vpop.f32.mrf.mxu0
    %v2131 = vadd.f32 0.0, %v2130
    %2132 = vdwg.mxu0
    %v2134 = vsel %vm273, %v2040, 0
    %v2137 = vsel %vm273, %v2041, 0
    %v2140 = vsel %vm273, %v2042, 0
    %v2143 = vsel %vm273, %v2043, 0
    %v2146 = vsel %vm273, %v2044, 0
    %v2149 = vsel %vm273, %v2045, 0
    %v2152 = vsel %vm273, %v2046, 0
    %v2155 = vsel %vm273, %v2047, 0
    %v2158 = vsel %vm370, %v2039, 0
    %2160 = vmatpush.bf16.msra.mxu0 0
    %2161 = vmatpush.bf16.msra.mxu0 0
    %2162 = vmatpush.bf16.msra.mxu0 0
    %2163 = vmatpush.bf16.msra.mxu0 0
    %2164 = vmatpush.bf16.msra.mxu0 0
    %2165 = vmatpush.bf16.msra.mxu0 0
    %2166 = vmatpush.bf16.msra.mxu0 0
    %2167 = vmatpush.bf16.msra.mxu0 %v2158
    %2168 = vmatmul.bf16.gmra.mxu0 %v2134
    %v2169 = vpop.f32.mrf.mxu0
    %v2170 = vadd.f32 %v2094, %v2169
    %v2171 = vpop.f32.mrf.mxu0
    %v2172 = vadd.f32 %v2096, %v2171
    %2173 = vmatmul.bf16.gmra.mxu0 %v2137
    %v2174 = vpop.f32.mrf.mxu0
    %v2175 = vadd.f32 %v2099, %v2174
    %v2176 = vpop.f32.mrf.mxu0
    %v2177 = vadd.f32 %v2101, %v2176
    %2178 = vmatmul.bf16.gmra.mxu0 %v2140
    %v2179 = vpop.f32.mrf.mxu0
    %v2180 = vadd.f32 %v2104, %v2179
    %v2181 = vpop.f32.mrf.mxu0
    %v2182 = vadd.f32 %v2106, %v2181
    %2183 = vmatmul.bf16.gmra.mxu0 %v2143
    %v2184 = vpop.f32.mrf.mxu0
    %v2185 = vadd.f32 %v2109, %v2184
    %v2186 = vpop.f32.mrf.mxu0
    %v2187 = vadd.f32 %v2111, %v2186
    %2188 = vmatmul.bf16.gmra.mxu0 %v2146
    %v2189 = vpop.f32.mrf.mxu0
    %v2190 = vadd.f32 %v2114, %v2189
    %v2191 = vpop.f32.mrf.mxu0
    %v2192 = vadd.f32 %v2116, %v2191
    %2193 = vmatmul.bf16.gmra.mxu0 %v2149
    %v2194 = vpop.f32.mrf.mxu0
    %v2195 = vadd.f32 %v2119, %v2194
    %v2196 = vpop.f32.mrf.mxu0
    %v2197 = vadd.f32 %v2121, %v2196
    %2198 = vmatmul.bf16.gmra.mxu0 %v2152
    %v2199 = vpop.f32.mrf.mxu0
    %v2200 = vadd.f32 %v2124, %v2199
    %v2201 = vpop.f32.mrf.mxu0
    %v2202 = vadd.f32 %v2126, %v2201
    %2203 = vmatmul.bf16.gmra.mxu0 %v2155
    %v2204 = vpop.f32.mrf.mxu0
    %v2205 = vadd.f32 %v2129, %v2204
    %v2206 = vpop.f32.mrf.mxu0
    %v2207 = vadd.f32 %v2131, %v2206
    %2208 = vdwg.mxu0
    %v2209 = vld [vmem:[#allocation2 + $0x218] sm:$0xf]
    %v2210 = vpack.c.bf16 %v1962, %v1960
    %v2211 = vpack.c.bf16 %v1967, %v1965
    %v2212 = vpack.c.bf16 %v1972, %v1970
    %v2213 = vpack.c.bf16 %v1977, %v1975
    %v2214 = vpack.c.bf16 %v1982, %v1980
    %v2215 = vpack.c.bf16 %v1987, %v1985
    %v2216 = vpack.c.bf16 %v1992, %v1990
    %v2217 = vpack.c.bf16 %v1997, %v1995
    %v2219 = vsel %vm273, %v2210, 0
    %v2222 = vsel %vm273, %v2211, 0
    %v2225 = vsel %vm273, %v2212, 0
    %v2228 = vsel %vm273, %v2213, 0
    %v2231 = vsel %vm273, %v2214, 0
    %v2234 = vsel %vm273, %v2215, 0
    %v2237 = vsel %vm273, %v2216, 0
    %v2240 = vsel %vm273, %v2217, 0
    %v2243 = vsel %vm370, %v2209, 0
    %2245 = vmatpush.bf16.msra.mxu0 0
    %2246 = vmatpush.bf16.msra.mxu0 0
    %2247 = vmatpush.bf16.msra.mxu0 0
    %2248 = vmatpush.bf16.msra.mxu0 0
    %2249 = vmatpush.bf16.msra.mxu0 0
    %2250 = vmatpush.bf16.msra.mxu0 0
    %2251 = vmatpush.bf16.msra.mxu0 0
    %2252 = vmatpush.bf16.msra.mxu0 %v2243
    %2253 = vmatmul.bf16.gmra.mxu0 %v2219
    %v2254 = vpop.f32.mrf.mxu0
    %v2255 = vadd.f32 0.0, %v2254
    %v2256 = vpop.f32.mrf.mxu0
    %v2257 = vadd.f32 0.0, %v2256
    %2258 = vmatmul.bf16.gmra.mxu0 %v2222
    %v2259 = vpop.f32.mrf.mxu0
    %v2260 = vadd.f32 0.0, %v2259
    %v2261 = vpop.f32.mrf.mxu0
    %v2262 = vadd.f32 0.0, %v2261
    %2263 = vmatmul.bf16.gmra.mxu0 %v2225
    %v2264 = vpop.f32.mrf.mxu0
    %v2265 = vadd.f32 0.0, %v2264
    %v2266 = vpop.f32.mrf.mxu0
    %v2267 = vadd.f32 0.0, %v2266
    %2268 = vmatmul.bf16.gmra.mxu0 %v2228
    %v2269 = vpop.f32.mrf.mxu0
    %v2270 = vadd.f32 0.0, %v2269
    %v2271 = vpop.f32.mrf.mxu0
    %v2272 = vadd.f32 0.0, %v2271
    %2273 = vmatmul.bf16.gmra.mxu0 %v2231
    %v2274 = vpop.f32.mrf.mxu0
    %v2275 = vadd.f32 0.0, %v2274
    %v2276 = vpop.f32.mrf.mxu0
    %v2277 = vadd.f32 0.0, %v2276
    %2278 = vmatmul.bf16.gmra.mxu0 %v2234
    %v2279 = vpop.f32.mrf.mxu0
    %v2280 = vadd.f32 0.0, %v2279
    %v2281 = vpop.f32.mrf.mxu0
    %v2282 = vadd.f32 0.0, %v2281
    %2283 = vmatmul.bf16.gmra.mxu0 %v2237
    %v2284 = vpop.f32.mrf.mxu0
    %v2285 = vadd.f32 0.0, %v2284
    %v2286 = vpop.f32.mrf.mxu0
    %v2287 = vadd.f32 0.0, %v2286
    %2288 = vmatmul.bf16.gmra.mxu0 %v2240
    %v2289 = vpop.f32.mrf.mxu0
    %v2290 = vadd.f32 0.0, %v2289
    %v2291 = vpop.f32.mrf.mxu0
    %v2292 = vadd.f32 0.0, %v2291
    %2293 = vdwg.mxu0
    %v2294 = vadd.f32 %v2170, %v2255
    %v2295 = vadd.f32 %v2172, %v2257
    %v2296 = vadd.f32 %v2175, %v2260
    %v2297 = vadd.f32 %v2177, %v2262
    %v2298 = vadd.f32 %v2180, %v2265
    %v2299 = vadd.f32 %v2182, %v2267
    %v2300 = vadd.f32 %v2185, %v2270
    %v2301 = vadd.f32 %v2187, %v2272
    %v2302 = vadd.f32 %v2190, %v2275
    %v2303 = vadd.f32 %v2192, %v2277
    %v2304 = vadd.f32 %v2195, %v2280
    %v2305 = vadd.f32 %v2197, %v2282
    %v2306 = vadd.f32 %v2200, %v2285
    %v2307 = vadd.f32 %v2202, %v2287
    %v2308 = vadd.f32 %v2205, %v2290
    %v2309 = vadd.f32 %v2207, %v2292
    %v2310 = vld [vmem:[#allocation2 + $0x21c] sm:$0xf]
    %v2311 = vpack.c.bf16 %v2002, %v2000
    %v2312 = vpack.c.bf16 %v2007, %v2005
    %v2313 = vpack.c.bf16 %v2012, %v2010
    %v2314 = vpack.c.bf16 %v2017, %v2015
    %v2315 = vpack.c.bf16 %v2022, %v2020
    %v2316 = vpack.c.bf16 %v2027, %v2025
    %v2317 = vpack.c.bf16 %v2032, %v2030
    %v2318 = vpack.c.bf16 %v2037, %v2035
    %v2320 = vsel %vm273, %v2311, 0
    %v2323 = vsel %vm273, %v2312, 0
    %v2326 = vsel %vm273, %v2313, 0
    %v2329 = vsel %vm273, %v2314, 0
    %v2332 = vsel %vm273, %v2315, 0
    %v2335 = vsel %vm273, %v2316, 0
    %v2338 = vsel %vm273, %v2317, 0
    %v2341 = vsel %vm273, %v2318, 0
    %v2344 = vsel %vm370, %v2310, 0
    %2346 = vmatpush.bf16.msra.mxu0 0
    %2347 = vmatpush.bf16.msra.mxu0 0
    %2348 = vmatpush.bf16.msra.mxu0 0
    %2349 = vmatpush.bf16.msra.mxu0 0
    %2350 = vmatpush.bf16.msra.mxu0 0
    %2351 = vmatpush.bf16.msra.mxu0 0
    %2352 = vmatpush.bf16.msra.mxu0 0
    %2353 = vmatpush.bf16.msra.mxu0 %v2344
    %2354 = vmatmul.bf16.gmra.mxu0 %v2320
    %v2355 = vpop.f32.mrf.mxu0
    %v2356 = vadd.f32 0.0, %v2355
    %v2357 = vpop.f32.mrf.mxu0
    %v2358 = vadd.f32 0.0, %v2357
    %2359 = vmatmul.bf16.gmra.mxu0 %v2323
    %v2360 = vpop.f32.mrf.mxu0
    %v2361 = vadd.f32 0.0, %v2360
    %v2362 = vpop.f32.mrf.mxu0
    %v2363 = vadd.f32 0.0, %v2362
    %2364 = vmatmul.bf16.gmra.mxu0 %v2326
    %v2365 = vpop.f32.mrf.mxu0
    %v2366 = vadd.f32 0.0, %v2365
    %v2367 = vpop.f32.mrf.mxu0
    %v2368 = vadd.f32 0.0, %v2367
    %2369 = vmatmul.bf16.gmra.mxu0 %v2329
    %v2370 = vpop.f32.mrf.mxu0
    %v2371 = vadd.f32 0.0, %v2370
    %v2372 = vpop.f32.mrf.mxu0
    %v2373 = vadd.f32 0.0, %v2372
    %2374 = vmatmul.bf16.gmra.mxu0 %v2332
    %v2375 = vpop.f32.mrf.mxu0
    %v2376 = vadd.f32 0.0, %v2375
    %v2377 = vpop.f32.mrf.mxu0
    %v2378 = vadd.f32 0.0, %v2377
    %2379 = vmatmul.bf16.gmra.mxu0 %v2335
    %v2380 = vpop.f32.mrf.mxu0
    %v2381 = vadd.f32 0.0, %v2380
    %v2382 = vpop.f32.mrf.mxu0
    %v2383 = vadd.f32 0.0, %v2382
    %2384 = vmatmul.bf16.gmra.mxu0 %v2338
    %v2385 = vpop.f32.mrf.mxu0
    %v2386 = vadd.f32 0.0, %v2385
    %v2387 = vpop.f32.mrf.mxu0
    %v2388 = vadd.f32 0.0, %v2387
    %2389 = vmatmul.bf16.gmra.mxu0 %v2341
    %v2390 = vpop.f32.mrf.mxu0
    %v2391 = vadd.f32 0.0, %v2390
    %v2392 = vpop.f32.mrf.mxu0
    %v2393 = vadd.f32 0.0, %v2392
    %2394 = vdwg.mxu0
    %v2395 = vadd.f32 %v2294, %v2356
    %v2396 = vadd.f32 %v2295, %v2358
    %v2397 = vadd.f32 %v2296, %v2361
    %v2398 = vadd.f32 %v2297, %v2363
    %v2399 = vadd.f32 %v2298, %v2366
    %v2400 = vadd.f32 %v2299, %v2368
    %v2401 = vadd.f32 %v2300, %v2371
    %v2402 = vadd.f32 %v2301, %v2373
    %v2403 = vadd.f32 %v2302, %v2376
    %v2404 = vadd.f32 %v2303, %v2378
    %v2405 = vadd.f32 %v2304, %v2381
    %v2406 = vadd.f32 %v2305, %v2383
    %v2407 = vadd.f32 %v2306, %v2386
    %v2408 = vadd.f32 %v2307, %v2388
    %v2409 = vadd.f32 %v2308, %v2391
    %v2410 = vadd.f32 %v2309, %v2393
    %v2411 = vld [vmem:[#allocation4 + $0xe0] sm:$0xff]
    %v2412 = vld [vmem:[#allocation4 + $0xe8] sm:$0xff]
    %v2413 = vld [vmem:[#allocation4 + $0xf0] sm:$0xff]
    %v2414 = vld [vmem:[#allocation4 + $0xf8] sm:$0xff]
    %v2415 = vld [vmem:[#allocation4 + $0x100] sm:$0xff]
    %v2416 = vld [vmem:[#allocation4 + $0x108] sm:$0xff]
    %v2417 = vld [vmem:[#allocation4 + $0x110] sm:$0xff]
    %v2418 = vld [vmem:[#allocation4 + $0x118] sm:$0xff]
    %v2419 = vld [vmem:[#allocation4 + $0x120] sm:$0xff]
    %v2420 = vld [vmem:[#allocation4 + $0x128] sm:$0xff]
    %v2421 = vld [vmem:[#allocation4 + $0x130] sm:$0xff]
    %v2422 = vld [vmem:[#allocation4 + $0x138] sm:$0xff]
    %v2423 = vld [vmem:[#allocation4 + $0x140] sm:$0xff]
    %v2424 = vld [vmem:[#allocation4 + $0x148] sm:$0xff]
    %v2425 = vld [vmem:[#allocation4 + $0x150] sm:$0xff]
    %v2426 = vld [vmem:[#allocation4 + $0x158] sm:$0xff]
    %v2427 = vld [vmem:[#allocation4 + $0x160] sm:$0xff]
    %v2428 = vld [vmem:[#allocation4 + $0x168] sm:$0xff]
    %v2429 = vld [vmem:[#allocation4 + $0x170] sm:$0xff]
    %v2430 = vld [vmem:[#allocation4 + $0x178] sm:$0xff]
    %v2431 = vld [vmem:[#allocation4 + $0x180] sm:$0xff]
    %v2432 = vld [vmem:[#allocation4 + $0x188] sm:$0xff]
    %vm2433 = vcmask 130048
    %v2434 = vsel %vm2433, %v2395, 0.0
    %2435 = vadd.xlane.f32.xlu0 %v2434
    %v2436 = vpop.xlane.xlu0 %2435
    %v2437 = vsel %vm2433, %v2396, 0.0
    %2438 = vadd.xlane.f32.xlu0 %v2437
    %v2439 = vpop.xlane.xlu0 %2438
    %v2440 = vsel %vm2433, %v2397, 0.0
    %2441 = vadd.xlane.f32.xlu0 %v2440
    %v2442 = vpop.xlane.xlu0 %2441
    %v2443 = vsel %vm2433, %v2398, 0.0
    %2444 = vadd.xlane.f32.xlu0 %v2443
    %v2445 = vpop.xlane.xlu0 %2444
    %v2446 = vsel %vm2433, %v2399, 0.0
    %2447 = vadd.xlane.f32.xlu0 %v2446
    %v2448 = vpop.xlane.xlu0 %2447
    %v2449 = vsel %vm2433, %v2400, 0.0
    %2450 = vadd.xlane.f32.xlu0 %v2449
    %v2451 = vpop.xlane.xlu0 %2450
    %v2452 = vsel %vm2433, %v2401, 0.0
    %2453 = vadd.xlane.f32.xlu0 %v2452
    %v2454 = vpop.xlane.xlu0 %2453
    %v2455 = vsel %vm2433, %v2402, 0.0
    %2456 = vadd.xlane.f32.xlu0 %v2455
    %v2457 = vpop.xlane.xlu0 %2456
    %v2458 = vsel %vm2433, %v2403, 0.0
    %2459 = vadd.xlane.f32.xlu0 %v2458
    %v2460 = vpop.xlane.xlu0 %2459
    %v2461 = vsel %vm2433, %v2404, 0.0
    %2462 = vadd.xlane.f32.xlu0 %v2461
    %v2463 = vpop.xlane.xlu0 %2462
    %v2464 = vsel %vm2433, %v2405, 0.0
    %2465 = vadd.xlane.f32.xlu0 %v2464
    %v2466 = vpop.xlane.xlu0 %2465
    %v2467 = vsel %vm2433, %v2406, 0.0
    %2468 = vadd.xlane.f32.xlu0 %v2467
    %v2469 = vpop.xlane.xlu0 %2468
    %v2470 = vsel %vm2433, %v2407, 0.0
    %2471 = vadd.xlane.f32.xlu0 %v2470
    %v2472 = vpop.xlane.xlu0 %2471
    %v2473 = vsel %vm2433, %v2408, 0.0
    %2474 = vadd.xlane.f32.xlu0 %v2473
    %v2475 = vpop.xlane.xlu0 %2474
    %v2476 = vsel %vm2433, %v2409, 0.0
    %2477 = vadd.xlane.f32.xlu0 %v2476
    %v2478 = vpop.xlane.xlu0 %2477
    %v2479 = vsel %vm2433, %v2410, 0.0
    %2480 = vadd.xlane.f32.xlu0 %v2479
    %v2481 = vpop.xlane.xlu0 %2480
    %v2482 = vmul.f32 %v2395, %v2395
    %v2483 = vmul.f32 %v2396, %v2396
    %v2484 = vmul.f32 %v2397, %v2397
    %v2485 = vmul.f32 %v2398, %v2398
    %v2486 = vmul.f32 %v2399, %v2399
    %v2487 = vmul.f32 %v2400, %v2400
    %v2488 = vmul.f32 %v2401, %v2401
    %v2489 = vmul.f32 %v2402, %v2402
    %v2490 = vmul.f32 %v2403, %v2403
    %v2491 = vmul.f32 %v2404, %v2404
    %v2492 = vmul.f32 %v2405, %v2405
    %v2493 = vmul.f32 %v2406, %v2406
    %v2494 = vmul.f32 %v2407, %v2407
    %v2495 = vmul.f32 %v2408, %v2408
    %v2496 = vmul.f32 %v2409, %v2409
    %v2497 = vmul.f32 %v2410, %v2410
    %v2498 = vsel %vm2433, %v2482, 0.0
    %2499 = vadd.xlane.f32.xlu0 %v2498
    %v2500 = vpop.xlane.xlu0 %2499
    %v2501 = vsel %vm2433, %v2483, 0.0
    %2502 = vadd.xlane.f32.xlu0 %v2501
    %v2503 = vpop.xlane.xlu0 %2502
    %v2504 = vsel %vm2433, %v2484, 0.0
    %2505 = vadd.xlane.f32.xlu0 %v2504
    %v2506 = vpop.xlane.xlu0 %2505
    %v2507 = vsel %vm2433, %v2485, 0.0
    %2508 = vadd.xlane.f32.xlu0 %v2507
    %v2509 = vpop.xlane.xlu0 %2508
    %v2510 = vsel %vm2433, %v2486, 0.0
    %2511 = vadd.xlane.f32.xlu0 %v2510
    %v2512 = vpop.xlane.xlu0 %2511
    %v2513 = vsel %vm2433, %v2487, 0.0
    %2514 = vadd.xlane.f32.xlu0 %v2513
    %v2515 = vpop.xlane.xlu0 %2514
    %v2516 = vsel %vm2433, %v2488, 0.0
    %2517 = vadd.xlane.f32.xlu0 %v2516
    %v2518 = vpop.xlane.xlu0 %2517
    %v2519 = vsel %vm2433, %v2489, 0.0
    %2520 = vadd.xlane.f32.xlu0 %v2519
    %v2521 = vpop.xlane.xlu0 %2520
    %v2522 = vsel %vm2433, %v2490, 0.0
    %2523 = vadd.xlane.f32.xlu0 %v2522
    %v2524 = vpop.xlane.xlu0 %2523
    %v2525 = vsel %vm2433, %v2491, 0.0
    %2526 = vadd.xlane.f32.xlu0 %v2525
    %v2527 = vpop.xlane.xlu0 %2526
    %v2528 = vsel %vm2433, %v2492, 0.0
    %2529 = vadd.xlane.f32.xlu0 %v2528
    %v2530 = vpop.xlane.xlu0 %2529
    %v2531 = vsel %vm2433, %v2493, 0.0
    %2532 = vadd.xlane.f32.xlu0 %v2531
    %v2533 = vpop.xlane.xlu0 %2532
    %v2534 = vsel %vm2433, %v2494, 0.0
    %2535 = vadd.xlane.f32.xlu0 %v2534
    %v2536 = vpop.xlane.xlu0 %2535
    %v2537 = vsel %vm2433, %v2495, 0.0
    %2538 = vadd.xlane.f32.xlu0 %v2537
    %v2539 = vpop.xlane.xlu0 %2538
    %v2540 = vsel %vm2433, %v2496, 0.0
    %2541 = vadd.xlane.f32.xlu0 %v2540
    %v2542 = vpop.xlane.xlu0 %2541
    %v2543 = vsel %vm2433, %v2497, 0.0
    %2544 = vadd.xlane.f32.xlu0 %v2543
    %v2545 = vpop.xlane.xlu0 %2544
    %2546 = vmatpush.msra.mxu0 %v2481
    %2547 = vmatpush.msra.mxu0 %v2478
    %2548 = vmatpush.msra.mxu0 %v2475
    %2549 = vmatpush.msra.mxu0 %v2472
    %2550 = vmatpush.msra.mxu0 %v2469
    %2551 = vmatpush.msra.mxu0 %v2466
    %2552 = vmatpush.msra.mxu0 %v2463
    %2553 = vmatpush.msra.mxu0 %v2460
    %2554 = vmatpush.msra.mxu0 %v2457
    %2555 = vmatpush.msra.mxu0 %v2454
    %2556 = vmatpush.msra.mxu0 %v2451
    %2557 = vmatpush.msra.mxu0 %v2448
    %2558 = vmatpush.msra.mxu0 %v2445
    %2559 = vmatpush.msra.mxu0 %v2442
    %2560 = vmatpush.msra.mxu0 %v2439
    %2561 = vmatpush.msra.mxu0 %v2436
    %2562 = vmatmul.f32.gmra.mxu0 %v2411
    %v2563 = vpop.f32.mrf.mxu0
    %v2564 = vadd.f32 0.0, %v2563
    %2565 = vmatmul.f32.gmra.mxu0 %v2412
    %v2566 = vpop.f32.mrf.mxu0
    %v2567 = vadd.f32 0.0, %v2566
    %2568 = vdwg.mxu0
    %v2569 = vmul.f32 %v2564, 0.0078125
    %v2570 = vmul.f32 %v2567, 0.0078125
    %2571 = vmatpush.msra.mxu0 %v2545
    %2572 = vmatpush.msra.mxu0 %v2542
    %2573 = vmatpush.msra.mxu0 %v2539
    %2574 = vmatpush.msra.mxu0 %v2536
    %2575 = vmatpush.msra.mxu0 %v2533
    %2576 = vmatpush.msra.mxu0 %v2530
    %2577 = vmatpush.msra.mxu0 %v2527
    %2578 = vmatpush.msra.mxu0 %v2524
    %2579 = vmatpush.msra.mxu0 %v2521
    %2580 = vmatpush.msra.mxu0 %v2518
    %2581 = vmatpush.msra.mxu0 %v2515
    %2582 = vmatpush.msra.mxu0 %v2512
    %2583 = vmatpush.msra.mxu0 %v2509
    %2584 = vmatpush.msra.mxu0 %v2506
    %2585 = vmatpush.msra.mxu0 %v2503
    %2586 = vmatpush.msra.mxu0 %v2500
    %2587 = vmatmul.f32.gmra.mxu0 %v2411
    %v2588 = vpop.f32.mrf.mxu0
    %v2589 = vadd.f32 0.0, %v2588
    %2590 = vmatmul.f32.gmra.mxu0 %v2412
    %v2591 = vpop.f32.mrf.mxu0
    %v2592 = vadd.f32 0.0, %v2591
    %2593 = vdwg.mxu0
    %v2594 = vmul.f32 %v2589, 0.0078125
    %v2595 = vmul.f32 %v2592, 0.0078125
    %v2596 = vmul.f32 %v2569, %v2569
    %v2597 = vmul.f32 %v2570, %v2570
    %v2598 = vsub.f32 %v2594, %v2596
    %v2599 = vsub.f32 %v2595, %v2597
    %v2600 = vadd.f32 %v2598, 0.8
    %v2601 = vadd.f32 %v2599, 0.8
    %v2602 = vrsqrt.pop %v2600
    %v2603 = vmul.f32 %v2602, %v2600
    %v2604 = vmul.f32 %v2603, %v2602
    %v2605 = vmul.f32 0.5, %v2604
    %v2606 = vsub.f32 1.5, %v2605
    %v2607 = vmul.f32 %v2602, %v2606
    %vm2608 = vweird.f32 %v2600
    %vm2609 = vweird.f32 %v2602
    %vm2610 = vmor %vm2608, %vm2609
    %v2611 = vsel %vm2610, %v2602, %v2607
    %v2612 = vrsqrt.pop %v2601
    %v2613 = vmul.f32 %v2612, %v2601
    %v2614 = vmul.f32 %v2613, %v2612
    %v2615 = vmul.f32 0.5, %v2614
    %v2616 = vsub.f32 1.5, %v2615
    %v2617 = vmul.f32 %v2612, %v2616
    %vm2618 = vweird.f32 %v2601
    %vm2619 = vweird.f32 %v2612
    %vm2620 = vmor %vm2618, %vm2619
    %v2621 = vsel %vm2620, %v2612, %v2617
    %v2622 = vmul.f32 %v2429, %v2611
    %v2623 = vmul.f32 %v2430, %v2621
    %v2624 = vmul.f32 %v2569, %v2622
    %v2625 = vmul.f32 %v2570, %v2623
    %v2626 = vsub.f32 %v2431, %v2624
    %v2627 = vsub.f32 %v2432, %v2625
    %v2629 = vsel %vm2433, %v2413, 0
    %v2632 = vsel %vm2433, %v2414, 0
    %v2635 = vsel %vm2433, %v2415, 0
    %v2638 = vsel %vm2433, %v2416, 0
    %v2641 = vsel %vm2433, %v2417, 0
    %v2644 = vsel %vm2433, %v2418, 0
    %v2647 = vsel %vm2433, %v2419, 0
    %v2650 = vsel %vm2433, %v2420, 0
    %v2653 = vsel %vm2433, %v2421, 0
    %v2656 = vsel %vm2433, %v2422, 0
    %v2659 = vsel %vm2433, %v2423, 0
    %v2662 = vsel %vm2433, %v2424, 0
    %v2665 = vsel %vm2433, %v2425, 0
    %v2668 = vsel %vm2433, %v2426, 0
    %v2671 = vsel %vm2433, %v2427, 0
    %v2674 = vsel %vm2433, %v2428, 0
    %2676 = vmatpush.msra.mxu0 0.0
    %2677 = vmatpush.msra.mxu0 0.0
    %2678 = vmatpush.msra.mxu0 0.0
    %2679 = vmatpush.msra.mxu0 0.0
    %2680 = vmatpush.msra.mxu0 0.0
    %2681 = vmatpush.msra.mxu0 0.0
    %2682 = vmatpush.msra.mxu0 0.0
    %2683 = vmatpush.msra.mxu0 0.0
    %2684 = vmatpush.msra.mxu0 0.0
    %2685 = vmatpush.msra.mxu0 0.0
    %2686 = vmatpush.msra.mxu0 0.0
    %2687 = vmatpush.msra.mxu0 0.0
    %2688 = vmatpush.msra.mxu0 0.0
    %2689 = vmatpush.msra.mxu0 0.0
    %2690 = vmatpush.msra.mxu0 %v2623
    %2691 = vmatpush.msra.mxu0 %v2622
    %2692 = vmatmul.f32.gmra.mxu0 %v2629
    %v2693 = vpop.f32.mrf.mxu0
    %v2694 = vadd.f32 0.0, %v2693
    %2695 = vmatmul.f32.gmra.mxu0 %v2632
    %v2696 = vpop.f32.mrf.mxu0
    %v2697 = vadd.f32 0.0, %v2696
    %2698 = vmatmul.f32.gmra.mxu0 %v2635
    %v2699 = vpop.f32.mrf.mxu0
    %v2700 = vadd.f32 0.0, %v2699
    %2701 = vmatmul.f32.gmra.mxu0 %v2638
    %v2702 = vpop.f32.mrf.mxu0
    %v2703 = vadd.f32 0.0, %v2702
    %2704 = vmatmul.f32.gmra.mxu0 %v2641
    %v2705 = vpop.f32.mrf.mxu0
    %v2706 = vadd.f32 0.0, %v2705
    %2707 = vmatmul.f32.gmra.mxu0 %v2644
    %v2708 = vpop.f32.mrf.mxu0
    %v2709 = vadd.f32 0.0, %v2708
    %2710 = vmatmul.f32.gmra.mxu0 %v2647
    %v2711 = vpop.f32.mrf.mxu0
    %v2712 = vadd.f32 0.0, %v2711
    %2713 = vmatmul.f32.gmra.mxu0 %v2650
    %v2714 = vpop.f32.mrf.mxu0
    %v2715 = vadd.f32 0.0, %v2714
    %2716 = vmatmul.f32.gmra.mxu0 %v2653
    %v2717 = vpop.f32.mrf.mxu0
    %v2718 = vadd.f32 0.0, %v2717
    %2719 = vmatmul.f32.gmra.mxu0 %v2656
    %v2720 = vpop.f32.mrf.mxu0
    %v2721 = vadd.f32 0.0, %v2720
    %2722 = vmatmul.f32.gmra.mxu0 %v2659
    %v2723 = vpop.f32.mrf.mxu0
    %v2724 = vadd.f32 0.0, %v2723
    %2725 = vmatmul.f32.gmra.mxu0 %v2662
    %v2726 = vpop.f32.mrf.mxu0
    %v2727 = vadd.f32 0.0, %v2726
    %2728 = vmatmul.f32.gmra.mxu0 %v2665
    %v2729 = vpop.f32.mrf.mxu0
    %v2730 = vadd.f32 0.0, %v2729
    %2731 = vmatmul.f32.gmra.mxu0 %v2668
    %v2732 = vpop.f32.mrf.mxu0
    %v2733 = vadd.f32 0.0, %v2732
    %2734 = vmatmul.f32.gmra.mxu0 %v2671
    %v2735 = vpop.f32.mrf.mxu0
    %v2736 = vadd.f32 0.0, %v2735
    %2737 = vmatmul.f32.gmra.mxu0 %v2674
    %v2738 = vpop.f32.mrf.mxu0
    %v2739 = vadd.f32 0.0, %v2738
    %2740 = vdwg.mxu0
    %2741 = vmatpush.msra.mxu0 0.0
    %2742 = vmatpush.msra.mxu0 0.0
    %2743 = vmatpush.msra.mxu0 0.0
    %2744 = vmatpush.msra.mxu0 0.0
    %2745 = vmatpush.msra.mxu0 0.0
    %2746 = vmatpush.msra.mxu0 0.0
    %2747 = vmatpush.msra.mxu0 0.0
    %2748 = vmatpush.msra.mxu0 0.0
    %2749 = vmatpush.msra.mxu0 0.0
    %2750 = vmatpush.msra.mxu0 0.0
    %2751 = vmatpush.msra.mxu0 0.0
    %2752 = vmatpush.msra.mxu0 0.0
    %2753 = vmatpush.msra.mxu0 0.0
    %2754 = vmatpush.msra.mxu0 0.0
    %2755 = vmatpush.msra.mxu0 %v2627
    %2756 = vmatpush.msra.mxu0 %v2626
    %2757 = vmatmul.f32.gmra.mxu0 %v2629
    %v2758 = vpop.f32.mrf.mxu0
    %v2759 = vadd.f32 0.0, %v2758
    %2760 = vmatmul.f32.gmra.mxu0 %v2632
    %v2761 = vpop.f32.mrf.mxu0
    %v2762 = vadd.f32 0.0, %v2761
    %2763 = vmatmul.f32.gmra.mxu0 %v2635
    %v2764 = vpop.f32.mrf.mxu0
    %v2765 = vadd.f32 0.0, %v2764
    %2766 = vmatmul.f32.gmra.mxu0 %v2638
    %v2767 = vpop.f32.mrf.mxu0
    %v2768 = vadd.f32 0.0, %v2767
    %2769 = vmatmul.f32.gmra.mxu0 %v2641
    %v2770 = vpop.f32.mrf.mxu0
    %v2771 = vadd.f32 0.0, %v2770
    %2772 = vmatmul.f32.gmra.mxu0 %v2644
    %v2773 = vpop.f32.mrf.mxu0
    %v2774 = vadd.f32 0.0, %v2773
    %2775 = vmatmul.f32.gmra.mxu0 %v2647
    %v2776 = vpop.f32.mrf.mxu0
    %v2777 = vadd.f32 0.0, %v2776
    %2778 = vmatmul.f32.gmra.mxu0 %v2650
    %v2779 = vpop.f32.mrf.mxu0
    %v2780 = vadd.f32 0.0, %v2779
    %2781 = vmatmul.f32.gmra.mxu0 %v2653
    %v2782 = vpop.f32.mrf.mxu0
    %v2783 = vadd.f32 0.0, %v2782
    %2784 = vmatmul.f32.gmra.mxu0 %v2656
    %v2785 = vpop.f32.mrf.mxu0
    %v2786 = vadd.f32 0.0, %v2785
    %2787 = vmatmul.f32.gmra.mxu0 %v2659
    %v2788 = vpop.f32.mrf.mxu0
    %v2789 = vadd.f32 0.0, %v2788
    %2790 = vmatmul.f32.gmra.mxu0 %v2662
    %v2791 = vpop.f32.mrf.mxu0
    %v2792 = vadd.f32 0.0, %v2791
    %2793 = vmatmul.f32.gmra.mxu0 %v2665
    %v2794 = vpop.f32.mrf.mxu0
    %v2795 = vadd.f32 0.0, %v2794
    %2796 = vmatmul.f32.gmra.mxu0 %v2668
    %v2797 = vpop.f32.mrf.mxu0
    %v2798 = vadd.f32 0.0, %v2797
    %2799 = vmatmul.f32.gmra.mxu0 %v2671
    %v2800 = vpop.f32.mrf.mxu0
    %v2801 = vadd.f32 0.0, %v2800
    %2802 = vmatmul.f32.gmra.mxu0 %v2674
    %v2803 = vpop.f32.mrf.mxu0
    %v2804 = vadd.f32 0.0, %v2803
    %2805 = vdwg.mxu0
    %2807 = vset.pattern.permute.xlu0 0
    %2808 = vperm.xlu0 %2807, %v2694
    %v2809 = vpop.permute.xlu0 %2808
    %2812 = vset.pattern.permute.xlu0 0
    %2813 = vperm.xlu0 %2812, %v2697
    %v2814 = vpop.permute.xlu0 %2813
    %2817 = vset.pattern.permute.xlu0 0
    %2818 = vperm.xlu0 %2817, %v2700
    %v2819 = vpop.permute.xlu0 %2818
    %2822 = vset.pattern.permute.xlu0 0
    %2823 = vperm.xlu0 %2822, %v2703
    %v2824 = vpop.permute.xlu0 %2823
    %2827 = vset.pattern.permute.xlu0 0
    %2828 = vperm.xlu0 %2827, %v2706
    %v2829 = vpop.permute.xlu0 %2828
    %2832 = vset.pattern.permute.xlu0 0
    %2833 = vperm.xlu0 %2832, %v2709
    %v2834 = vpop.permute.xlu0 %2833
    %2837 = vset.pattern.permute.xlu0 0
    %2838 = vperm.xlu0 %2837, %v2712
    %v2839 = vpop.permute.xlu0 %2838
    %2842 = vset.pattern.permute.xlu0 0
    %2843 = vperm.xlu0 %2842, %v2715
    %v2844 = vpop.permute.xlu0 %2843
    %2847 = vset.pattern.permute.xlu0 0
    %2848 = vperm.xlu0 %2847, %v2718
    %v2849 = vpop.permute.xlu0 %2848
    %2852 = vset.pattern.permute.xlu0 0
    %2853 = vperm.xlu0 %2852, %v2721
    %v2854 = vpop.permute.xlu0 %2853
    %2857 = vset.pattern.permute.xlu0 0
    %2858 = vperm.xlu0 %2857, %v2724
    %v2859 = vpop.permute.xlu0 %2858
    %2862 = vset.pattern.permute.xlu0 0
    %2863 = vperm.xlu0 %2862, %v2727
    %v2864 = vpop.permute.xlu0 %2863
    %2867 = vset.pattern.permute.xlu0 0
    %2868 = vperm.xlu0 %2867, %v2730
    %v2869 = vpop.permute.xlu0 %2868
    %2872 = vset.pattern.permute.xlu0 0
    %2873 = vperm.xlu0 %2872, %v2733
    %v2874 = vpop.permute.xlu0 %2873
    %2877 = vset.pattern.permute.xlu0 0
    %2878 = vperm.xlu0 %2877, %v2736
    %v2879 = vpop.permute.xlu0 %2878
    %2882 = vset.pattern.permute.xlu0 0
    %2883 = vperm.xlu0 %2882, %v2739
    %v2884 = vpop.permute.xlu0 %2883
    %v2886 = vmul.f32 %v2395, %v2809
    %v2887 = vmul.f32 %v2396, %v2814
    %v2888 = vmul.f32 %v2397, %v2819
    %v2889 = vmul.f32 %v2398, %v2824
    %v2890 = vmul.f32 %v2399, %v2829
    %v2891 = vmul.f32 %v2400, %v2834
    %v2892 = vmul.f32 %v2401, %v2839
    %v2893 = vmul.f32 %v2402, %v2844
    %v2894 = vmul.f32 %v2403, %v2849
    %v2895 = vmul.f32 %v2404, %v2854
    %v2896 = vmul.f32 %v2405, %v2859
    %v2897 = vmul.f32 %v2406, %v2864
    %v2898 = vmul.f32 %v2407, %v2869
    %v2899 = vmul.f32 %v2408, %v2874
    %v2900 = vmul.f32 %v2409, %v2879
    %v2901 = vmul.f32 %v2410, %v2884
    %2903 = vset.pattern.permute.xlu0 0
    %2904 = vperm.xlu0 %2903, %v2759
    %v2905 = vpop.permute.xlu0 %2904
    %2908 = vset.pattern.permute.xlu0 0
    %2909 = vperm.xlu0 %2908, %v2762
    %v2910 = vpop.permute.xlu0 %2909
    %2913 = vset.pattern.permute.xlu0 0
    %2914 = vperm.xlu0 %2913, %v2765
    %v2915 = vpop.permute.xlu0 %2914
    %2918 = vset.pattern.permute.xlu0 0
    %2919 = vperm.xlu0 %2918, %v2768
    %v2920 = vpop.permute.xlu0 %2919
    %2923 = vset.pattern.permute.xlu0 0
    %2924 = vperm.xlu0 %2923, %v2771
    %v2925 = vpop.permute.xlu0 %2924
    %2928 = vset.pattern.permute.xlu0 0
    %2929 = vperm.xlu0 %2928, %v2774
    %v2930 = vpop.permute.xlu0 %2929
    %2933 = vset.pattern.permute.xlu0 0
    %2934 = vperm.xlu0 %2933, %v2777
    %v2935 = vpop.permute.xlu0 %2934
    %2938 = vset.pattern.permute.xlu0 0
    %2939 = vperm.xlu0 %2938, %v2780
    %v2940 = vpop.permute.xlu0 %2939
    %2943 = vset.pattern.permute.xlu0 0
    %2944 = vperm.xlu0 %2943, %v2783
    %v2945 = vpop.permute.xlu0 %2944
    %2948 = vset.pattern.permute.xlu0 0
    %2949 = vperm.xlu0 %2948, %v2786
    %v2950 = vpop.permute.xlu0 %2949
    %2953 = vset.pattern.permute.xlu0 0
    %2954 = vperm.xlu0 %2953, %v2789
    %v2955 = vpop.permute.xlu0 %2954
    %2958 = vset.pattern.permute.xlu0 0
    %2959 = vperm.xlu0 %2958, %v2792
    %v2960 = vpop.permute.xlu0 %2959
    %2963 = vset.pattern.permute.xlu0 0
    %2964 = vperm.xlu0 %2963, %v2795
    %v2965 = vpop.permute.xlu0 %2964
    %2968 = vset.pattern.permute.xlu0 0
    %2969 = vperm.xlu0 %2968, %v2798
    %v2970 = vpop.permute.xlu0 %2969
    %2973 = vset.pattern.permute.xlu0 0
    %2974 = vperm.xlu0 %2973, %v2801
    %v2975 = vpop.permute.xlu0 %2974
    %2978 = vset.pattern.permute.xlu0 0
    %2979 = vperm.xlu0 %2978, %v2804
    %v2980 = vpop.permute.xlu0 %2979
    %v2982 = vadd.f32 %v2886, %v2905
    %v2983 = vadd.f32 %v2887, %v2910
    %v2984 = vadd.f32 %v2888, %v2915
    %v2985 = vadd.f32 %v2889, %v2920
    %v2986 = vadd.f32 %v2890, %v2925
    %v2987 = vadd.f32 %v2891, %v2930
    %v2988 = vadd.f32 %v2892, %v2935
    %v2989 = vadd.f32 %v2893, %v2940
    %v2990 = vadd.f32 %v2894, %v2945
    %v2991 = vadd.f32 %v2895, %v2950
    %v2992 = vadd.f32 %v2896, %v2955
    %v2993 = vadd.f32 %v2897, %v2960
    %v2994 = vadd.f32 %v2898, %v2965
    %v2995 = vadd.f32 %v2899, %v2970
    %v2996 = vadd.f32 %v2900, %v2975
    %v2997 = vadd.f32 %v2901, %v2980
    %vm2998 = vcmp.ge.f32.partialorder %v2982, 0.0
    %vm2999 = vcmp.ge.f32.partialorder %v2983, 0.0
    %vm3000 = vcmp.ge.f32.partialorder %v2984, 0.0
    %vm3001 = vcmp.ge.f32.partialorder %v2985, 0.0
    %vm3002 = vcmp.ge.f32.partialorder %v2986, 0.0
    %vm3003 = vcmp.ge.f32.partialorder %v2987, 0.0
    %vm3004 = vcmp.ge.f32.partialorder %v2988, 0.0
    %vm3005 = vcmp.ge.f32.partialorder %v2989, 0.0
    %vm3006 = vcmp.ge.f32.partialorder %v2990, 0.0
    %vm3007 = vcmp.ge.f32.partialorder %v2991, 0.0
    %vm3008 = vcmp.ge.f32.partialorder %v2992, 0.0
    %vm3009 = vcmp.ge.f32.partialorder %v2993, 0.0
    %vm3010 = vcmp.ge.f32.partialorder %v2994, 0.0
    %vm3011 = vcmp.ge.f32.partialorder %v2995, 0.0
    %vm3012 = vcmp.ge.f32.partialorder %v2996, 0.0
    %vm3013 = vcmp.ge.f32.partialorder %v2997, 0.0
    %v3014 = vmul.f32 %v2982, 0.2
    %v3015 = vmul.f32 %v2983, 0.2
    %v3016 = vmul.f32 %v2984, 0.2
    %v3017 = vmul.f32 %v2985, 0.2
    %v3018 = vmul.f32 %v2986, 0.2
    %v3019 = vmul.f32 %v2987, 0.2
    %v3020 = vmul.f32 %v2988, 0.2
    %v3021 = vmul.f32 %v2989, 0.2
    %v3022 = vmul.f32 %v2990, 0.2
    %v3023 = vmul.f32 %v2991, 0.2
    %v3024 = vmul.f32 %v2992, 0.2
    %v3025 = vmul.f32 %v2993, 0.2
    %v3026 = vmul.f32 %v2994, 0.2
    %v3027 = vmul.f32 %v2995, 0.2
    %v3028 = vmul.f32 %v2996, 0.2
    %v3029 = vmul.f32 %v2997, 0.2
    %v3030 = vsel %vm2998, %v2982, %v3014
    %v3031 = vsel %vm2999, %v2983, %v3015
    %v3032 = vsel %vm3000, %v2984, %v3016
    %v3033 = vsel %vm3001, %v2985, %v3017
    %v3034 = vsel %vm3002, %v2986, %v3018
    %v3035 = vsel %vm3003, %v2987, %v3019
    %v3036 = vsel %vm3004, %v2988, %v3020
    %v3037 = vsel %vm3005, %v2989, %v3021
    %v3038 = vsel %vm3006, %v2990, %v3022
    %v3039 = vsel %vm3007, %v2991, %v3023
    %v3040 = vsel %vm3008, %v2992, %v3024
    %v3041 = vsel %vm3009, %v2993, %v3025
    %v3042 = vsel %vm3010, %v2994, %v3026
    %v3043 = vsel %vm3011, %v2995, %v3027
    %v3044 = vsel %vm3012, %v2996, %v3028
    %v3045 = vsel %vm3013, %v2997, %v3029
    %v3046 = vld [vmem:[#allocation2 + $0x220] sm:$0xf]
    %v3047 = vld [vmem:[#allocation2 + $0x224] sm:$0xf]
    %v3048 = vld [vmem:[#allocation2 + $0x228] sm:$0xf]
    %v3049 = vld [vmem:[#allocation2 + $0x22c] sm:$0xf]
    %v3050 = vld [vmem:[#allocation2 + $0x230] sm:$0xf]
    %v3051 = vld [vmem:[#allocation2 + $0x234] sm:$0xf]
    %v3052 = vld [vmem:[#allocation2 + $0x238] sm:$0xf]
    %v3053 = vld [vmem:[#allocation2 + $0x23c] sm:$0xf]
    %v3054 = vld [vmem:[#allocation2 + $0x240] sm:$0xf]
    %v3055 = vld [vmem:[#allocation2 + $0x244] sm:$0xf]
    %v3056 = vld [vmem:[#allocation2 + $0x248] sm:$0xf]
    %v3057 = vld [vmem:[#allocation2 + $0x24c] sm:$0xf]
    %v3058 = vld [vmem:[#allocation2 + $0x250] sm:$0xf]
    %v3059 = vld [vmem:[#allocation2 + $0x254] sm:$0xf]
    %v3060 = vld [vmem:[#allocation2 + $0x258] sm:$0xf]
    %v3061 = vld [vmem:[#allocation2 + $0x25c] sm:$0xf]
    %v3062 = vld [vmem:[#allocation2 + $0x260] sm:$0xf]
    %v3063 = vld [vmem:[#allocation2 + $0x264] sm:$0xf]
    %v3064 = vld [vmem:[#allocation2 + $0x268] sm:$0xf]
    %v3065 = vld [vmem:[#allocation2 + $0x26c] sm:$0xf]
    %v3066 = vld [vmem:[#allocation2 + $0x270] sm:$0xf]
    %v3067 = vld [vmem:[#allocation2 + $0x274] sm:$0xf]
    %v3068 = vld [vmem:[#allocation2 + $0x278] sm:$0xf]
    %v3069 = vld [vmem:[#allocation2 + $0x27c] sm:$0xf]
    %v3070 = vld [vmem:[#allocation2 + $0x280] sm:$0xf]
    %v3071 = vld [vmem:[#allocation2 + $0x284] sm:$0xf]
    %v3072 = vld [vmem:[#allocation2 + $0x288] sm:$0xf]
    %v3073 = vld [vmem:[#allocation2 + $0x28c] sm:$0xf]
    %v3074 = vld [vmem:[#allocation2 + $0x290] sm:$0xf]
    %v3075 = vld [vmem:[#allocation2 + $0x294] sm:$0xf]
    %v3076 = vld [vmem:[#allocation2 + $0x298] sm:$0xf]
    %v3077 = vld [vmem:[#allocation2 + $0x29c] sm:$0xf]
    %v3078 = vpack.c.bf16 %v3031, %v3030
    %v3079 = vpack.c.bf16 %v3033, %v3032
    %v3080 = vpack.c.bf16 %v3035, %v3034
    %v3081 = vpack.c.bf16 %v3037, %v3036
    %v3082 = vpack.c.bf16 %v3039, %v3038
    %v3083 = vpack.c.bf16 %v3041, %v3040
    %v3084 = vpack.c.bf16 %v3043, %v3042
    %v3085 = vpack.c.bf16 %v3045, %v3044
    %v3118 = vunpack.c.l.b16 %v3046
    %v3119 = vunpack.c.l.b16 %v3047
    %v3120 = vunpack.c.l.b16 %v3048
    %v3121 = vunpack.c.l.b16 %v3049
    %v3122 = vunpack.c.l.b16 %v3050
    %v3123 = vunpack.c.l.b16 %v3051
    %v3124 = vunpack.c.l.b16 %v3052
    %v3125 = vunpack.c.l.b16 %v3053
    %v3126 = vunpack.c.l.b16 %v3054
    %v3127 = vunpack.c.l.b16 %v3055
    %v3128 = vunpack.c.l.b16 %v3056
    %v3129 = vunpack.c.l.b16 %v3057
    %v3130 = vunpack.c.l.b16 %v3058
    %v3131 = vunpack.c.l.b16 %v3059
    %v3132 = vunpack.c.l.b16 %v3060
    %v3133 = vunpack.c.l.b16 %v3061
    %v3134 = vunpack.c.l.b16 %v3062
    %v3135 = vunpack.c.l.b16 %v3063
    %v3136 = vunpack.c.l.b16 %v3064
    %v3137 = vunpack.c.l.b16 %v3065
    %v3138 = vunpack.c.l.b16 %v3066
    %v3139 = vunpack.c.l.b16 %v3067
    %v3140 = vunpack.c.l.b16 %v3068
    %v3141 = vunpack.c.l.b16 %v3069
    %v3142 = vunpack.c.l.b16 %v3070
    %v3143 = vunpack.c.l.b16 %v3071
    %v3144 = vunpack.c.l.b16 %v3072
    %v3145 = vunpack.c.l.b16 %v3073
    %v3146 = vunpack.c.l.b16 %v3074
    %v3147 = vunpack.c.l.b16 %v3075
    %v3148 = vunpack.c.l.b16 %v3076
    %v3149 = vunpack.c.l.b16 %v3077
    %v3150 = vpack.c.b16 %v3119, %v3118
    %v3151 = vpack.c.b16 %v3121, %v3120
    %v3152 = vpack.c.b16 %v3123, %v3122
    %v3153 = vpack.c.b16 %v3125, %v3124
    %v3154 = vpack.c.b16 %v3127, %v3126
    %v3155 = vpack.c.b16 %v3129, %v3128
    %v3156 = vpack.c.b16 %v3131, %v3130
    %v3157 = vpack.c.b16 %v3133, %v3132
    %v3158 = vpack.c.b16 %v3135, %v3134
    %v3159 = vpack.c.b16 %v3137, %v3136
    %v3160 = vpack.c.b16 %v3139, %v3138
    %v3161 = vpack.c.b16 %v3141, %v3140
    %v3162 = vpack.c.b16 %v3143, %v3142
    %v3163 = vpack.c.b16 %v3145, %v3144
    %v3164 = vpack.c.b16 %v3147, %v3146
    %v3165 = vpack.c.b16 %v3149, %v3148
    %3182 = vmatpush.bf16.msra.mxu0 %v3085
    %3183 = vmatpush.bf16.msra.mxu0 %v3084
    %3184 = vmatpush.bf16.msra.mxu0 %v3083
    %3185 = vmatpush.bf16.msra.mxu0 %v3082
    %3186 = vmatpush.bf16.msra.mxu0 %v3081
    %3187 = vmatpush.bf16.msra.mxu0 %v3080
    %3188 = vmatpush.bf16.msra.mxu0 %v3079
    %3189 = vmatpush.bf16.msra.mxu0 %v3078
    %3190 = vmatmul.bf16.gmra.mxu0 %v3150
    %v3191 = vpop.f32.mrf.mxu0
    %v3192 = vadd.f32 0.0, %v3191
    %v3193 = vpop.f32.mrf.mxu0
    %v3194 = vadd.f32 0.0, %v3193
    %3195 = vmatmul.bf16.gmra.mxu0 %v3151
    %v3196 = vpop.f32.mrf.mxu0
    %v3197 = vadd.f32 0.0, %v3196
    %v3198 = vpop.f32.mrf.mxu0
    %v3199 = vadd.f32 0.0, %v3198
    %3200 = vmatmul.bf16.gmra.mxu0 %v3152
    %v3201 = vpop.f32.mrf.mxu0
    %v3202 = vadd.f32 0.0, %v3201
    %v3203 = vpop.f32.mrf.mxu0
    %v3204 = vadd.f32 0.0, %v3203
    %3205 = vmatmul.bf16.gmra.mxu0 %v3153
    %v3206 = vpop.f32.mrf.mxu0
    %v3207 = vadd.f32 0.0, %v3206
    %v3208 = vpop.f32.mrf.mxu0
    %v3209 = vadd.f32 0.0, %v3208
    %3210 = vmatmul.bf16.gmra.mxu0 %v3154
    %v3211 = vpop.f32.mrf.mxu0
    %v3212 = vadd.f32 0.0, %v3211
    %v3213 = vpop.f32.mrf.mxu0
    %v3214 = vadd.f32 0.0, %v3213
    %3215 = vmatmul.bf16.gmra.mxu0 %v3155
    %v3216 = vpop.f32.mrf.mxu0
    %v3217 = vadd.f32 0.0, %v3216
    %v3218 = vpop.f32.mrf.mxu0
    %v3219 = vadd.f32 0.0, %v3218
    %3220 = vmatmul.bf16.gmra.mxu0 %v3156
    %v3221 = vpop.f32.mrf.mxu0
    %v3222 = vadd.f32 0.0, %v3221
    %v3223 = vpop.f32.mrf.mxu0
    %v3224 = vadd.f32 0.0, %v3223
    %3225 = vmatmul.bf16.gmra.mxu0 %v3157
    %v3226 = vpop.f32.mrf.mxu0
    %v3227 = vadd.f32 0.0, %v3226
    %v3228 = vpop.f32.mrf.mxu0
    %v3229 = vadd.f32 0.0, %v3228
    %3230 = vmatmul.bf16.gmra.mxu0 %v3158
    %v3231 = vpop.f32.mrf.mxu0
    %v3232 = vadd.f32 0.0, %v3231
    %v3233 = vpop.f32.mrf.mxu0
    %v3234 = vadd.f32 0.0, %v3233
    %3235 = vmatmul.bf16.gmra.mxu0 %v3159
    %v3236 = vpop.f32.mrf.mxu0
    %v3237 = vadd.f32 0.0, %v3236
    %v3238 = vpop.f32.mrf.mxu0
    %v3239 = vadd.f32 0.0, %v3238
    %3240 = vmatmul.bf16.gmra.mxu0 %v3160
    %v3241 = vpop.f32.mrf.mxu0
    %v3242 = vadd.f32 0.0, %v3241
    %v3243 = vpop.f32.mrf.mxu0
    %v3244 = vadd.f32 0.0, %v3243
    %3245 = vmatmul.bf16.gmra.mxu0 %v3161
    %v3246 = vpop.f32.mrf.mxu0
    %v3247 = vadd.f32 0.0, %v3246
    %v3248 = vpop.f32.mrf.mxu0
    %v3249 = vadd.f32 0.0, %v3248
    %3250 = vmatmul.bf16.gmra.mxu0 %v3162
    %v3251 = vpop.f32.mrf.mxu0
    %v3252 = vadd.f32 0.0, %v3251
    %v3253 = vpop.f32.mrf.mxu0
    %v3254 = vadd.f32 0.0, %v3253
    %3255 = vmatmul.bf16.gmra.mxu0 %v3163
    %v3256 = vpop.f32.mrf.mxu0
    %v3257 = vadd.f32 0.0, %v3256
    %v3258 = vpop.f32.mrf.mxu0
    %v3259 = vadd.f32 0.0, %v3258
    %3260 = vmatmul.bf16.gmra.mxu0 %v3164
    %v3261 = vpop.f32.mrf.mxu0
    %v3262 = vadd.f32 0.0, %v3261
    %v3263 = vpop.f32.mrf.mxu0
    %v3264 = vadd.f32 0.0, %v3263
    %3265 = vmatmul.bf16.gmra.mxu0 %v3165
    %v3266 = vpop.f32.mrf.mxu0
    %v3267 = vadd.f32 0.0, %v3266
    %v3268 = vpop.f32.mrf.mxu0
    %v3269 = vadd.f32 0.0, %v3268
    %3270 = vdwg.mxu0
    %v3271 = vld [vmem:[#allocation2 + $0x2a0] sm:$0xf]
    %v3272 = vld [vmem:[#allocation2 + $0x2a4] sm:$0xf]
    %v3273 = vpack.c.bf16 %v3194, %v3192
    %v3274 = vpack.c.bf16 %v3199, %v3197
    %v3275 = vpack.c.bf16 %v3204, %v3202
    %v3276 = vpack.c.bf16 %v3209, %v3207
    %v3277 = vld [vmem:[#allocation2 + $0x2a8] sm:$0xf]
    %v3278 = vld [vmem:[#allocation2 + $0x2ac] sm:$0xf]
    %v3279 = vpack.c.bf16 %v3214, %v3212
    %v3280 = vpack.c.bf16 %v3219, %v3217
    %v3281 = vpack.c.bf16 %v3224, %v3222
    %v3282 = vpack.c.bf16 %v3229, %v3227
    %v3285 = vunpack.c.l.b16 %v3277
    %v3286 = vunpack.c.l.b16 %v3278
    %v3287 = vpack.c.b16 %v3286, %v3285
    %v3290 = vsel %vm2433, %v3279, 0
    %v3293 = vsel %vm2433, %v3280, 0
    %v3296 = vsel %vm2433, %v3281, 0
    %v3299 = vsel %vm2433, %v3282, 0
    %3301 = vmatpush.bf16.msra.mxu0 0
    %3302 = vmatpush.bf16.msra.mxu0 0
    %3303 = vmatpush.bf16.msra.mxu0 0
    %3304 = vmatpush.bf16.msra.mxu0 0
    %3305 = vmatpush.bf16.msra.mxu0 0
    %3306 = vmatpush.bf16.msra.mxu0 0
    %3307 = vmatpush.bf16.msra.mxu0 0
    %3308 = vmatpush.bf16.msra.mxu0 %v3287
    %3309 = vmatmul.bf16.gmra.mxu0 %v3290
    %v3310 = vpop.f32.mrf.mxu0
    %v3311 = vadd.f32 0.0, %v3310
    %v3312 = vpop.f32.mrf.mxu0
    %v3313 = vadd.f32 0.0, %v3312
    %3314 = vmatmul.bf16.gmra.mxu0 %v3293
    %v3315 = vpop.f32.mrf.mxu0
    %v3316 = vadd.f32 0.0, %v3315
    %v3317 = vpop.f32.mrf.mxu0
    %v3318 = vadd.f32 0.0, %v3317
    %3319 = vmatmul.bf16.gmra.mxu0 %v3296
    %v3320 = vpop.f32.mrf.mxu0
    %v3321 = vadd.f32 0.0, %v3320
    %v3322 = vpop.f32.mrf.mxu0
    %v3323 = vadd.f32 0.0, %v3322
    %3324 = vmatmul.bf16.gmra.mxu0 %v3299
    %v3325 = vpop.f32.mrf.mxu0
    %v3326 = vadd.f32 0.0, %v3325
    %v3327 = vpop.f32.mrf.mxu0
    %v3328 = vadd.f32 0.0, %v3327
    %3329 = vdwg.mxu0
    %v3332 = vunpack.c.l.b16 %v3271
    %v3333 = vunpack.c.l.b16 %v3272
    %v3334 = vpack.c.b16 %v3333, %v3332
    %v3337 = vsel %vm2433, %v3273, 0
    %v3340 = vsel %vm2433, %v3274, 0
    %v3343 = vsel %vm2433, %v3275, 0
    %v3346 = vsel %vm2433, %v3276, 0
    %3348 = vmatpush.bf16.msra.mxu0 0
    %3349 = vmatpush.bf16.msra.mxu0 0
    %3350 = vmatpush.bf16.msra.mxu0 0
    %3351 = vmatpush.bf16.msra.mxu0 0
    %3352 = vmatpush.bf16.msra.mxu0 0
    %3353 = vmatpush.bf16.msra.mxu0 0
    %3354 = vmatpush.bf16.msra.mxu0 0
    %3355 = vmatpush.bf16.msra.mxu0 %v3334
    %3356 = vmatmul.bf16.gmra.mxu0 %v3337
    %v3357 = vpop.f32.mrf.mxu0
    %v3358 = vadd.f32 %v3311, %v3357
    %v3359 = vpop.f32.mrf.mxu0
    %v3360 = vadd.f32 %v3313, %v3359
    %3361 = vmatmul.bf16.gmra.mxu0 %v3340
    %v3362 = vpop.f32.mrf.mxu0
    %v3363 = vadd.f32 %v3316, %v3362
    %v3364 = vpop.f32.mrf.mxu0
    %v3365 = vadd.f32 %v3318, %v3364
    %3366 = vmatmul.bf16.gmra.mxu0 %v3343
    %v3367 = vpop.f32.mrf.mxu0
    %v3368 = vadd.f32 %v3321, %v3367
    %v3369 = vpop.f32.mrf.mxu0
    %v3370 = vadd.f32 %v3323, %v3369
    %3371 = vmatmul.bf16.gmra.mxu0 %v3346
    %v3372 = vpop.f32.mrf.mxu0
    %v3373 = vadd.f32 %v3326, %v3372
    %v3374 = vpop.f32.mrf.mxu0
    %v3375 = vadd.f32 %v3328, %v3374
    %3376 = vdwg.mxu0
    %v3377 = vld [vmem:[#allocation2 + $0x2b0] sm:$0xf]
    %v3378 = vld [vmem:[#allocation2 + $0x2b4] sm:$0xf]
    %v3379 = vpack.c.bf16 %v3234, %v3232
    %v3380 = vpack.c.bf16 %v3239, %v3237
    %v3381 = vpack.c.bf16 %v3244, %v3242
    %v3382 = vpack.c.bf16 %v3249, %v3247
    %v3385 = vunpack.c.l.b16 %v3377
    %v3386 = vunpack.c.l.b16 %v3378
    %v3387 = vpack.c.b16 %v3386, %v3385
    %v3390 = vsel %vm2433, %v3379, 0
    %v3393 = vsel %vm2433, %v3380, 0
    %v3396 = vsel %vm2433, %v3381, 0
    %v3399 = vsel %vm2433, %v3382, 0
    %3401 = vmatpush.bf16.msra.mxu0 0
    %3402 = vmatpush.bf16.msra.mxu0 0
    %3403 = vmatpush.bf16.msra.mxu0 0
    %3404 = vmatpush.bf16.msra.mxu0 0
    %3405 = vmatpush.bf16.msra.mxu0 0
    %3406 = vmatpush.bf16.msra.mxu0 0
    %3407 = vmatpush.bf16.msra.mxu0 0
    %3408 = vmatpush.bf16.msra.mxu0 %v3387
    %3409 = vmatmul.bf16.gmra.mxu0 %v3390
    %v3410 = vpop.f32.mrf.mxu0
    %v3411 = vadd.f32 0.0, %v3410
    %v3412 = vpop.f32.mrf.mxu0
    %v3413 = vadd.f32 0.0, %v3412
    %3414 = vmatmul.bf16.gmra.mxu0 %v3393
    %v3415 = vpop.f32.mrf.mxu0
    %v3416 = vadd.f32 0.0, %v3415
    %v3417 = vpop.f32.mrf.mxu0
    %v3418 = vadd.f32 0.0, %v3417
    %3419 = vmatmul.bf16.gmra.mxu0 %v3396
    %v3420 = vpop.f32.mrf.mxu0
    %v3421 = vadd.f32 0.0, %v3420
    %v3422 = vpop.f32.mrf.mxu0
    %v3423 = vadd.f32 0.0, %v3422
    %3424 = vmatmul.bf16.gmra.mxu0 %v3399
    %v3425 = vpop.f32.mrf.mxu0
    %v3426 = vadd.f32 0.0, %v3425
    %v3427 = vpop.f32.mrf.mxu0
    %v3428 = vadd.f32 0.0, %v3427
    %3429 = vdwg.mxu0
    %v3430 = vadd.f32 %v3358, %v3411
    %v3431 = vadd.f32 %v3360, %v3413
    %v3432 = vadd.f32 %v3363, %v3416
    %v3433 = vadd.f32 %v3365, %v3418
    %v3434 = vadd.f32 %v3368, %v3421
    %v3435 = vadd.f32 %v3370, %v3423
    %v3436 = vadd.f32 %v3373, %v3426
    %v3437 = vadd.f32 %v3375, %v3428
    %v3438 = vld [vmem:[#allocation2 + $0x2b8] sm:$0xf]
    %v3439 = vld [vmem:[#allocation2 + $0x2bc] sm:$0xf]
    %v3440 = vpack.c.bf16 %v3254, %v3252
    %v3441 = vpack.c.bf16 %v3259, %v3257
    %v3442 = vpack.c.bf16 %v3264, %v3262
    %v3443 = vpack.c.bf16 %v3269, %v3267
    %v3446 = vunpack.c.l.b16 %v3438
    %v3447 = vunpack.c.l.b16 %v3439
    %v3448 = vpack.c.b16 %v3447, %v3446
    %v3451 = vsel %vm2433, %v3440, 0
    %v3454 = vsel %vm2433, %v3441, 0
    %v3457 = vsel %vm2433, %v3442, 0
    %v3460 = vsel %vm2433, %v3443, 0
    %3462 = vmatpush.bf16.msra.mxu0 0
    %3463 = vmatpush.bf16.msra.mxu0 0
    %3464 = vmatpush.bf16.msra.mxu0 0
    %3465 = vmatpush.bf16.msra.mxu0 0
    %3466 = vmatpush.bf16.msra.mxu0 0
    %3467 = vmatpush.bf16.msra.mxu0 0
    %3468 = vmatpush.bf16.msra.mxu0 0
    %3469 = vmatpush.bf16.msra.mxu0 %v3448
    %3470 = vmatmul.bf16.gmra.mxu0 %v3451
    %v3471 = vpop.f32.mrf.mxu0
    %v3472 = vadd.f32 0.0, %v3471
    %v3473 = vpop.f32.mrf.mxu0
    %v3474 = vadd.f32 0.0, %v3473
    %3475 = vmatmul.bf16.gmra.mxu0 %v3454
    %v3476 = vpop.f32.mrf.mxu0
    %v3477 = vadd.f32 0.0, %v3476
    %v3478 = vpop.f32.mrf.mxu0
    %v3479 = vadd.f32 0.0, %v3478
    %3480 = vmatmul.bf16.gmra.mxu0 %v3457
    %v3481 = vpop.f32.mrf.mxu0
    %v3482 = vadd.f32 0.0, %v3481
    %v3483 = vpop.f32.mrf.mxu0
    %v3484 = vadd.f32 0.0, %v3483
    %3485 = vmatmul.bf16.gmra.mxu0 %v3460
    %v3486 = vpop.f32.mrf.mxu0
    %v3487 = vadd.f32 0.0, %v3486
    %v3488 = vpop.f32.mrf.mxu0
    %v3489 = vadd.f32 0.0, %v3488
    %3490 = vdwg.mxu0
    %v3491 = vadd.f32 %v3430, %v3472
    %v3492 = vadd.f32 %v3431, %v3474
    %v3493 = vadd.f32 %v3432, %v3477
    %v3494 = vadd.f32 %v3433, %v3479
    %v3495 = vadd.f32 %v3434, %v3482
    %v3496 = vadd.f32 %v3435, %v3484
    %v3497 = vadd.f32 %v3436, %v3487
    %v3498 = vadd.f32 %v3437, %v3489
    %v3499 = vld [vmem:[#allocation4 + $0x190] sm:$0xff]
    %v3500 = vld [vmem:[#allocation4 + $0x198] sm:$0xff]
    %v3501 = vld [vmem:[#allocation4 + $0x1a0] sm:$0xff]
    %v3502 = vld [vmem:[#allocation4 + $0x1a8] sm:$0xff]
    %v3503 = vld [vmem:[#allocation4 + $0x1b0] sm:$0xff]
    %v3504 = vld [vmem:[#allocation4 + $0x1b8] sm:$0xff]
    %v3505 = vld [vmem:[#allocation4 + $0x1c0] sm:$0xff]
    %v3506 = vld [vmem:[#allocation4 + $0x1c8] sm:$0xff]
    %v3507 = vld [vmem:[#allocation4 + $0x1d0] sm:$0xff]
    %v3508 = vld [vmem:[#allocation4 + $0x1d8] sm:$0xff]
    %v3509 = vld [vmem:[#allocation4 + $0x1e0] sm:$0xff]
    %v3510 = vsel %vm1187, %v3491, 0.0
    %3511 = vadd.xlane.f32.xlu0 %v3510
    %v3512 = vpop.xlane.xlu0 %3511
    %v3513 = vsel %vm1187, %v3492, 0.0
    %3514 = vadd.xlane.f32.xlu0 %v3513
    %v3515 = vpop.xlane.xlu0 %3514
    %v3516 = vsel %vm1187, %v3493, 0.0
    %3517 = vadd.xlane.f32.xlu0 %v3516
    %v3518 = vpop.xlane.xlu0 %3517
    %v3519 = vsel %vm1187, %v3494, 0.0
    %3520 = vadd.xlane.f32.xlu0 %v3519
    %v3521 = vpop.xlane.xlu0 %3520
    %v3522 = vsel %vm1187, %v3495, 0.0
    %3523 = vadd.xlane.f32.xlu0 %v3522
    %v3524 = vpop.xlane.xlu0 %3523
    %v3525 = vsel %vm1187, %v3496, 0.0
    %3526 = vadd.xlane.f32.xlu0 %v3525
    %v3527 = vpop.xlane.xlu0 %3526
    %v3528 = vsel %vm1187, %v3497, 0.0
    %3529 = vadd.xlane.f32.xlu0 %v3528
    %v3530 = vpop.xlane.xlu0 %3529
    %v3531 = vsel %vm1187, %v3498, 0.0
    %3532 = vadd.xlane.f32.xlu0 %v3531
    %v3533 = vpop.xlane.xlu0 %3532
    %v3534 = vmul.f32 %v3491, %v3491
    %v3535 = vmul.f32 %v3492, %v3492
    %v3536 = vmul.f32 %v3493, %v3493
    %v3537 = vmul.f32 %v3494, %v3494
    %v3538 = vmul.f32 %v3495, %v3495
    %v3539 = vmul.f32 %v3496, %v3496
    %v3540 = vmul.f32 %v3497, %v3497
    %v3541 = vmul.f32 %v3498, %v3498
    %v3542 = vsel %vm1187, %v3534, 0.0
    %3543 = vadd.xlane.f32.xlu0 %v3542
    %v3544 = vpop.xlane.xlu0 %3543
    %v3545 = vsel %vm1187, %v3535, 0.0
    %3546 = vadd.xlane.f32.xlu0 %v3545
    %v3547 = vpop.xlane.xlu0 %3546
    %v3548 = vsel %vm1187, %v3536, 0.0
    %3549 = vadd.xlane.f32.xlu0 %v3548
    %v3550 = vpop.xlane.xlu0 %3549
    %v3551 = vsel %vm1187, %v3537, 0.0
    %3552 = vadd.xlane.f32.xlu0 %v3551
    %v3553 = vpop.xlane.xlu0 %3552
    %v3554 = vsel %vm1187, %v3538, 0.0
    %3555 = vadd.xlane.f32.xlu0 %v3554
    %v3556 = vpop.xlane.xlu0 %3555
    %v3557 = vsel %vm1187, %v3539, 0.0
    %3558 = vadd.xlane.f32.xlu0 %v3557
    %v3559 = vpop.xlane.xlu0 %3558
    %v3560 = vsel %vm1187, %v3540, 0.0
    %3561 = vadd.xlane.f32.xlu0 %v3560
    %v3562 = vpop.xlane.xlu0 %3561
    %v3563 = vsel %vm1187, %v3541, 0.0
    %3564 = vadd.xlane.f32.xlu0 %v3563
    %v3565 = vpop.xlane.xlu0 %3564
    %vm3566 = vcmask 523264
    %v3568 = vsel %vm3566, %v3499, 0
    %3570 = vmatpush.msra.mxu0 0.0
    %3571 = vmatpush.msra.mxu0 0.0
    %3572 = vmatpush.msra.mxu0 0.0
    %3573 = vmatpush.msra.mxu0 0.0
    %3574 = vmatpush.msra.mxu0 0.0
    %3575 = vmatpush.msra.mxu0 0.0
    %3576 = vmatpush.msra.mxu0 0.0
    %3577 = vmatpush.msra.mxu0 0.0
    %3578 = vmatpush.msra.mxu0 %v3533
    %3579 = vmatpush.msra.mxu0 %v3530
    %3580 = vmatpush.msra.mxu0 %v3527
    %3581 = vmatpush.msra.mxu0 %v3524
    %3582 = vmatpush.msra.mxu0 %v3521
    %3583 = vmatpush.msra.mxu0 %v3518
    %3584 = vmatpush.msra.mxu0 %v3515
    %3585 = vmatpush.msra.mxu0 %v3512
    %3586 = vmatmul.f32.gmra.mxu0 %v3568
    %v3587 = vpop.f32.mrf.mxu0
    %v3588 = vadd.f32 0.0, %v3587
    %3589 = vdwg.mxu0
    %v3590 = vmul.f32 %v3588, 0.00390625
    %3591 = vmatpush.msra.mxu0 0.0
    %3592 = vmatpush.msra.mxu0 0.0
    %3593 = vmatpush.msra.mxu0 0.0
    %3594 = vmatpush.msra.mxu0 0.0
    %3595 = vmatpush.msra.mxu0 0.0
    %3596 = vmatpush.msra.mxu0 0.0
    %3597 = vmatpush.msra.mxu0 0.0
    %3598 = vmatpush.msra.mxu0 0.0
    %3599 = vmatpush.msra.mxu0 %v3565
    %3600 = vmatpush.msra.mxu0 %v3562
    %3601 = vmatpush.msra.mxu0 %v3559
    %3602 = vmatpush.msra.mxu0 %v3556
    %3603 = vmatpush.msra.mxu0 %v3553
    %3604 = vmatpush.msra.mxu0 %v3550
    %3605 = vmatpush.msra.mxu0 %v3547
    %3606 = vmatpush.msra.mxu0 %v3544
    %3607 = vmatmul.f32.gmra.mxu0 %v3568
    %v3608 = vpop.f32.mrf.mxu0
    %v3609 = vadd.f32 0.0, %v3608
    %3610 = vdwg.mxu0
    %v3611 = vmul.f32 %v3609, 0.00390625
    %v3612 = vmul.f32 %v3590, %v3590
    %v3613 = vsub.f32 %v3611, %v3612
    %v3614 = vadd.f32 %v3613, 0.8
    %v3615 = vrsqrt.pop %v3614
    %v3616 = vmul.f32 %v3615, %v3614
    %v3617 = vmul.f32 %v3616, %v3615
    %v3618 = vmul.f32 0.5, %v3617
    %v3619 = vsub.f32 1.5, %v3618
    %v3620 = vmul.f32 %v3615, %v3619
    %vm3621 = vweird.f32 %v3614
    %vm3622 = vweird.f32 %v3615
    %vm3623 = vmor %vm3621, %vm3622
    %v3624 = vsel %vm3623, %v3615, %v3620
    %v3625 = vmul.f32 %v3508, %v3624
    %v3626 = vmul.f32 %v3590, %v3625
    %v3627 = vsub.f32 %v3509, %v3626
    %v3629 = vsel %vm273, %v3500, 0
    %v3632 = vsel %vm273, %v3501, 0
    %v3635 = vsel %vm273, %v3502, 0
    %v3638 = vsel %vm273, %v3503, 0
    %v3641 = vsel %vm273, %v3504, 0
    %v3644 = vsel %vm273, %v3505, 0
    %v3647 = vsel %vm273, %v3506, 0
    %v3650 = vsel %vm273, %v3507, 0
    %3652 = vmatpush.msra.mxu0 0.0
    %3653 = vmatpush.msra.mxu0 0.0
    %3654 = vmatpush.msra.mxu0 0.0
    %3655 = vmatpush.msra.mxu0 0.0
    %3656 = vmatpush.msra.mxu0 0.0
    %3657 = vmatpush.msra.mxu0 0.0
    %3658 = vmatpush.msra.mxu0 0.0
    %3659 = vmatpush.msra.mxu0 0.0
    %3660 = vmatpush.msra.mxu0 0.0
    %3661 = vmatpush.msra.mxu0 0.0
    %3662 = vmatpush.msra.mxu0 0.0
    %3663 = vmatpush.msra.mxu0 0.0
    %3664 = vmatpush.msra.mxu0 0.0
    %3665 = vmatpush.msra.mxu0 0.0
    %3666 = vmatpush.msra.mxu0 0.0
    %3667 = vmatpush.msra.mxu0 %v3625
    %3668 = vmatmul.f32.gmra.mxu0 %v3629
    %v3669 = vpop.f32.mrf.mxu0
    %v3670 = vadd.f32 0.0, %v3669
    %3671 = vmatmul.f32.gmra.mxu0 %v3632
    %v3672 = vpop.f32.mrf.mxu0
    %v3673 = vadd.f32 0.0, %v3672
    %3674 = vmatmul.f32.gmra.mxu0 %v3635
    %v3675 = vpop.f32.mrf.mxu0
    %v3676 = vadd.f32 0.0, %v3675
    %3677 = vmatmul.f32.gmra.mxu0 %v3638
    %v3678 = vpop.f32.mrf.mxu0
    %v3679 = vadd.f32 0.0, %v3678
    %3680 = vmatmul.f32.gmra.mxu0 %v3641
    %v3681 = vpop.f32.mrf.mxu0
    %v3682 = vadd.f32 0.0, %v3681
    %3683 = vmatmul.f32.gmra.mxu0 %v3644
    %v3684 = vpop.f32.mrf.mxu0
    %v3685 = vadd.f32 0.0, %v3684
    %3686 = vmatmul.f32.gmra.mxu0 %v3647
    %v3687 = vpop.f32.mrf.mxu0
    %v3688 = vadd.f32 0.0, %v3687
    %3689 = vmatmul.f32.gmra.mxu0 %v3650
    %v3690 = vpop.f32.mrf.mxu0
    %v3691 = vadd.f32 0.0, %v3690
    %3692 = vdwg.mxu0
    %3693 = vmatpush.msra.mxu0 0.0
    %3694 = vmatpush.msra.mxu0 0.0
    %3695 = vmatpush.msra.mxu0 0.0
    %3696 = vmatpush.msra.mxu0 0.0
    %3697 = vmatpush.msra.mxu0 0.0
    %3698 = vmatpush.msra.mxu0 0.0
    %3699 = vmatpush.msra.mxu0 0.0
    %3700 = vmatpush.msra.mxu0 0.0
    %3701 = vmatpush.msra.mxu0 0.0
    %3702 = vmatpush.msra.mxu0 0.0
    %3703 = vmatpush.msra.mxu0 0.0
    %3704 = vmatpush.msra.mxu0 0.0
    %3705 = vmatpush.msra.mxu0 0.0
    %3706 = vmatpush.msra.mxu0 0.0
    %3707 = vmatpush.msra.mxu0 0.0
    %3708 = vmatpush.msra.mxu0 %v3627
    %3709 = vmatmul.f32.gmra.mxu0 %v3629
    %v3710 = vpop.f32.mrf.mxu0
    %v3711 = vadd.f32 0.0, %v3710
    %3712 = vmatmul.f32.gmra.mxu0 %v3632
    %v3713 = vpop.f32.mrf.mxu0
    %v3714 = vadd.f32 0.0, %v3713
    %3715 = vmatmul.f32.gmra.mxu0 %v3635
    %v3716 = vpop.f32.mrf.mxu0
    %v3717 = vadd.f32 0.0, %v3716
    %3718 = vmatmul.f32.gmra.mxu0 %v3638
    %v3719 = vpop.f32.mrf.mxu0
    %v3720 = vadd.f32 0.0, %v3719
    %3721 = vmatmul.f32.gmra.mxu0 %v3641
    %v3722 = vpop.f32.mrf.mxu0
    %v3723 = vadd.f32 0.0, %v3722
    %3724 = vmatmul.f32.gmra.mxu0 %v3644
    %v3725 = vpop.f32.mrf.mxu0
    %v3726 = vadd.f32 0.0, %v3725
    %3727 = vmatmul.f32.gmra.mxu0 %v3647
    %v3728 = vpop.f32.mrf.mxu0
    %v3729 = vadd.f32 0.0, %v3728
    %3730 = vmatmul.f32.gmra.mxu0 %v3650
    %v3731 = vpop.f32.mrf.mxu0
    %v3732 = vadd.f32 0.0, %v3731
    %3733 = vdwg.mxu0
    %3735 = vset.pattern.permute.xlu0 0
    %3736 = vperm.xlu0 %3735, %v3670
    %v3737 = vpop.permute.xlu0 %3736
    %3740 = vset.pattern.permute.xlu0 0
    %3741 = vperm.xlu0 %3740, %v3673
    %v3742 = vpop.permute.xlu0 %3741
    %3745 = vset.pattern.permute.xlu0 0
    %3746 = vperm.xlu0 %3745, %v3676
    %v3747 = vpop.permute.xlu0 %3746
    %3750 = vset.pattern.permute.xlu0 0
    %3751 = vperm.xlu0 %3750, %v3679
    %v3752 = vpop.permute.xlu0 %3751
    %3755 = vset.pattern.permute.xlu0 0
    %3756 = vperm.xlu0 %3755, %v3682
    %v3757 = vpop.permute.xlu0 %3756
    %3760 = vset.pattern.permute.xlu0 0
    %3761 = vperm.xlu0 %3760, %v3685
    %v3762 = vpop.permute.xlu0 %3761
    %3765 = vset.pattern.permute.xlu0 0
    %3766 = vperm.xlu0 %3765, %v3688
    %v3767 = vpop.permute.xlu0 %3766
    %3770 = vset.pattern.permute.xlu0 0
    %3771 = vperm.xlu0 %3770, %v3691
    %v3772 = vpop.permute.xlu0 %3771
    %v3774 = vmul.f32 %v3491, %v3737
    %v3775 = vmul.f32 %v3492, %v3742
    %v3776 = vmul.f32 %v3493, %v3747
    %v3777 = vmul.f32 %v3494, %v3752
    %v3778 = vmul.f32 %v3495, %v3757
    %v3779 = vmul.f32 %v3496, %v3762
    %v3780 = vmul.f32 %v3497, %v3767
    %v3781 = vmul.f32 %v3498, %v3772
    %3783 = vset.pattern.permute.xlu0 0
    %3784 = vperm.xlu0 %3783, %v3711
    %v3785 = vpop.permute.xlu0 %3784
    %3788 = vset.pattern.permute.xlu0 0
    %3789 = vperm.xlu0 %3788, %v3714
    %v3790 = vpop.permute.xlu0 %3789
    %3793 = vset.pattern.permute.xlu0 0
    %3794 = vperm.xlu0 %3793, %v3717
    %v3795 = vpop.permute.xlu0 %3794
    %3798 = vset.pattern.permute.xlu0 0
    %3799 = vperm.xlu0 %3798, %v3720
    %v3800 = vpop.permute.xlu0 %3799
    %3803 = vset.pattern.permute.xlu0 0
    %3804 = vperm.xlu0 %3803, %v3723
    %v3805 = vpop.permute.xlu0 %3804
    %3808 = vset.pattern.permute.xlu0 0
    %3809 = vperm.xlu0 %3808, %v3726
    %v3810 = vpop.permute.xlu0 %3809
    %3813 = vset.pattern.permute.xlu0 0
    %3814 = vperm.xlu0 %3813, %v3729
    %v3815 = vpop.permute.xlu0 %3814
    %3818 = vset.pattern.permute.xlu0 0
    %3819 = vperm.xlu0 %3818, %v3732
    %v3820 = vpop.permute.xlu0 %3819
    %v3822 = vadd.f32 %v3774, %v3785
    %v3823 = vadd.f32 %v3775, %v3790
    %v3824 = vadd.f32 %v3776, %v3795
    %v3825 = vadd.f32 %v3777, %v3800
    %v3826 = vadd.f32 %v3778, %v3805
    %v3827 = vadd.f32 %v3779, %v3810
    %v3828 = vadd.f32 %v3780, %v3815
    %v3829 = vadd.f32 %v3781, %v3820
    %vm3830 = vcmp.ge.f32.partialorder %v3822, 0.0
    %vm3831 = vcmp.ge.f32.partialorder %v3823, 0.0
    %vm3832 = vcmp.ge.f32.partialorder %v3824, 0.0
    %vm3833 = vcmp.ge.f32.partialorder %v3825, 0.0
    %vm3834 = vcmp.ge.f32.partialorder %v3826, 0.0
    %vm3835 = vcmp.ge.f32.partialorder %v3827, 0.0
    %vm3836 = vcmp.ge.f32.partialorder %v3828, 0.0
    %vm3837 = vcmp.ge.f32.partialorder %v3829, 0.0
    %v3838 = vmul.f32 %v3822, 0.2
    %v3839 = vmul.f32 %v3823, 0.2
    %v3840 = vmul.f32 %v3824, 0.2
    %v3841 = vmul.f32 %v3825, 0.2
    %v3842 = vmul.f32 %v3826, 0.2
    %v3843 = vmul.f32 %v3827, 0.2
    %v3844 = vmul.f32 %v3828, 0.2
    %v3845 = vmul.f32 %v3829, 0.2
    %v3846 = vsel %vm3830, %v3822, %v3838
    %v3847 = vsel %vm3831, %v3823, %v3839
    %v3848 = vsel %vm3832, %v3824, %v3840
    %v3849 = vsel %vm3833, %v3825, %v3841
    %v3850 = vsel %vm3834, %v3826, %v3842
    %v3851 = vsel %vm3835, %v3827, %v3843
    %v3852 = vsel %vm3836, %v3828, %v3844
    %v3853 = vsel %vm3837, %v3829, %v3845
    %v3854 = vld [vmem:[#allocation2 + $0x2c0] sm:$0xf]
    %v3855 = vld [vmem:[#allocation2 + $0x2c4] sm:$0xf]
    %v3856 = vld [vmem:[#allocation2 + $0x2c8] sm:$0xf]
    %v3857 = vld [vmem:[#allocation2 + $0x2cc] sm:$0xf]
    %v3858 = vld [vmem:[#allocation2 + $0x2d0] sm:$0xf]
    %v3859 = vld [vmem:[#allocation2 + $0x2d4] sm:$0xf]
    %v3860 = vld [vmem:[#allocation2 + $0x2d8] sm:$0xf]
    %v3861 = vld [vmem:[#allocation2 + $0x2dc] sm:$0xf]
    %v3862 = vld [vmem:[#allocation2 + $0x2e0] sm:$0xf]
    %v3863 = vld [vmem:[#allocation2 + $0x2e4] sm:$0xf]
    %v3864 = vld [vmem:[#allocation2 + $0x2e8] sm:$0xf]
    %v3865 = vld [vmem:[#allocation2 + $0x2ec] sm:$0xf]
    %v3866 = vld [vmem:[#allocation2 + $0x2f0] sm:$0xf]
    %v3867 = vld [vmem:[#allocation2 + $0x2f4] sm:$0xf]
    %v3868 = vld [vmem:[#allocation2 + $0x2f8] sm:$0xf]
    %v3869 = vld [vmem:[#allocation2 + $0x2fc] sm:$0xf]
    %v3870 = vpack.c.bf16 %v3847, %v3846
    %v3871 = vpack.c.bf16 %v3849, %v3848
    %v3872 = vpack.c.bf16 %v3851, %v3850
    %v3873 = vpack.c.bf16 %v3853, %v3852
    %v3890 = vunpack.c.l.b16 %v3854
    %v3891 = vunpack.c.l.b16 %v3855
    %v3892 = vunpack.c.l.b16 %v3856
    %v3893 = vunpack.c.l.b16 %v3857
    %v3894 = vunpack.c.l.b16 %v3858
    %v3895 = vunpack.c.l.b16 %v3859
    %v3896 = vunpack.c.l.b16 %v3860
    %v3897 = vunpack.c.l.b16 %v3861
    %v3898 = vunpack.c.l.b16 %v3862
    %v3899 = vunpack.c.l.b16 %v3863
    %v3900 = vunpack.c.l.b16 %v3864
    %v3901 = vunpack.c.l.b16 %v3865
    %v3902 = vunpack.c.l.b16 %v3866
    %v3903 = vunpack.c.l.b16 %v3867
    %v3904 = vunpack.c.l.b16 %v3868
    %v3905 = vunpack.c.l.b16 %v3869
    %v3906 = vpack.c.b16 %v3891, %v3890
    %v3907 = vpack.c.b16 %v3893, %v3892
    %v3908 = vpack.c.b16 %v3895, %v3894
    %v3909 = vpack.c.b16 %v3897, %v3896
    %v3910 = vpack.c.b16 %v3899, %v3898
    %v3911 = vpack.c.b16 %v3901, %v3900
    %v3912 = vpack.c.b16 %v3903, %v3902
    %v3913 = vpack.c.b16 %v3905, %v3904
    %v3915 = vsel %vm3566, %v3906, 0
    %v3918 = vsel %vm3566, %v3907, 0
    %v3921 = vsel %vm3566, %v3908, 0
    %v3924 = vsel %vm3566, %v3909, 0
    %v3927 = vsel %vm3566, %v3910, 0
    %v3930 = vsel %vm3566, %v3911, 0
    %v3933 = vsel %vm3566, %v3912, 0
    %v3936 = vsel %vm3566, %v3913, 0
    %3938 = vmatpush.bf16.msra.mxu0 0
    %3939 = vmatpush.bf16.msra.mxu0 0
    %3940 = vmatpush.bf16.msra.mxu0 0
    %3941 = vmatpush.bf16.msra.mxu0 0
    %3942 = vmatpush.bf16.msra.mxu0 %v3873
    %3943 = vmatpush.bf16.msra.mxu0 %v3872
    %3944 = vmatpush.bf16.msra.mxu0 %v3871
    %3945 = vmatpush.bf16.msra.mxu0 %v3870
    %3946 = vmatmul.bf16.gmra.mxu0 %v3915
    %v3947 = vpop.f32.mrf.mxu0
    %v3948 = vadd.f32 0.0, %v3947
    %v3949 = vpop.f32.mrf.mxu0
    %v3950 = vadd.f32 0.0, %v3949
    %3951 = vmatmul.bf16.gmra.mxu0 %v3918
    %v3952 = vpop.f32.mrf.mxu0
    %v3953 = vadd.f32 0.0, %v3952
    %v3954 = vpop.f32.mrf.mxu0
    %v3955 = vadd.f32 0.0, %v3954
    %3956 = vmatmul.bf16.gmra.mxu0 %v3921
    %v3957 = vpop.f32.mrf.mxu0
    %v3958 = vadd.f32 0.0, %v3957
    %v3959 = vpop.f32.mrf.mxu0
    %v3960 = vadd.f32 0.0, %v3959
    %3961 = vmatmul.bf16.gmra.mxu0 %v3924
    %v3962 = vpop.f32.mrf.mxu0
    %v3963 = vadd.f32 0.0, %v3962
    %v3964 = vpop.f32.mrf.mxu0
    %v3965 = vadd.f32 0.0, %v3964
    %3966 = vmatmul.bf16.gmra.mxu0 %v3927
    %v3967 = vpop.f32.mrf.mxu0
    %v3968 = vadd.f32 0.0, %v3967
    %v3969 = vpop.f32.mrf.mxu0
    %v3970 = vadd.f32 0.0, %v3969
    %3971 = vmatmul.bf16.gmra.mxu0 %v3930
    %v3972 = vpop.f32.mrf.mxu0
    %v3973 = vadd.f32 0.0, %v3972
    %v3974 = vpop.f32.mrf.mxu0
    %v3975 = vadd.f32 0.0, %v3974
    %3976 = vmatmul.bf16.gmra.mxu0 %v3933
    %v3977 = vpop.f32.mrf.mxu0
    %v3978 = vadd.f32 0.0, %v3977
    %v3979 = vpop.f32.mrf.mxu0
    %v3980 = vadd.f32 0.0, %v3979
    %3981 = vmatmul.bf16.gmra.mxu0 %v3936
    %v3982 = vpop.f32.mrf.mxu0
    %v3983 = vadd.f32 0.0, %v3982
    %v3984 = vpop.f32.mrf.mxu0
    %v3985 = vadd.f32 0.0, %v3984
    %3986 = vdwg.mxu0
    %v3987 = vld [vmem:[#allocation2 + $0x300] sm:$0xf]
    %v3988 = vld [vmem:[#allocation2 + $0x304] sm:$0xf]
    %v3989 = vld [vmem:[#allocation2 + $0x308] sm:$0xf]
    %v3990 = vld [vmem:[#allocation2 + $0x30c] sm:$0xf]
    %v3991 = vpack.c.bf16 %v3950, %v3948
    %v3992 = vpack.c.bf16 %v3955, %v3953
    %v3993 = vld [vmem:[#allocation2 + $0x310] sm:$0xf]
    %v3994 = vld [vmem:[#allocation2 + $0x314] sm:$0xf]
    %v3995 = vld [vmem:[#allocation2 + $0x318] sm:$0xf]
    %v3996 = vld [vmem:[#allocation2 + $0x31c] sm:$0xf]
    %v3997 = vpack.c.bf16 %v3960, %v3958
    %v3998 = vpack.c.bf16 %v3965, %v3963
    %v4003 = vunpack.c.l.b16 %v3993
    %v4004 = vunpack.c.l.b16 %v3994
    %v4005 = vunpack.c.l.b16 %v3995
    %v4006 = vunpack.c.l.b16 %v3996
    %v4007 = vpack.c.b16 %v4004, %v4003
    %v4008 = vpack.c.b16 %v4006, %v4005
    %v4012 = vsel %vm1187, %v3997, 0
    %v4015 = vsel %vm1187, %v3998, 0
    %4017 = vmatpush.bf16.msra.mxu0 0
    %4018 = vmatpush.bf16.msra.mxu0 0
    %4019 = vmatpush.bf16.msra.mxu0 0
    %4020 = vmatpush.bf16.msra.mxu0 0
    %4021 = vmatpush.bf16.msra.mxu0 0
    %4022 = vmatpush.bf16.msra.mxu0 0
    %4023 = vmatpush.bf16.msra.mxu0 %v4008
    %4024 = vmatpush.bf16.msra.mxu0 %v4007
    %4025 = vmatmul.bf16.gmra.mxu0 %v4012
    %v4026 = vpop.f32.mrf.mxu0
    %v4027 = vadd.f32 0.0, %v4026
    %v4028 = vpop.f32.mrf.mxu0
    %v4029 = vadd.f32 0.0, %v4028
    %4030 = vmatmul.bf16.gmra.mxu0 %v4015
    %v4031 = vpop.f32.mrf.mxu0
    %v4032 = vadd.f32 0.0, %v4031
    %v4033 = vpop.f32.mrf.mxu0
    %v4034 = vadd.f32 0.0, %v4033
    %4035 = vdwg.mxu0
    %v4040 = vunpack.c.l.b16 %v3987
    %v4041 = vunpack.c.l.b16 %v3988
    %v4042 = vunpack.c.l.b16 %v3989
    %v4043 = vunpack.c.l.b16 %v3990
    %v4044 = vpack.c.b16 %v4041, %v4040
    %v4045 = vpack.c.b16 %v4043, %v4042
    %v4049 = vsel %vm1187, %v3991, 0
    %v4052 = vsel %vm1187, %v3992, 0
    %4054 = vmatpush.bf16.msra.mxu0 0
    %4055 = vmatpush.bf16.msra.mxu0 0
    %4056 = vmatpush.bf16.msra.mxu0 0
    %4057 = vmatpush.bf16.msra.mxu0 0
    %4058 = vmatpush.bf16.msra.mxu0 0
    %4059 = vmatpush.bf16.msra.mxu0 0
    %4060 = vmatpush.bf16.msra.mxu0 %v4045
    %4061 = vmatpush.bf16.msra.mxu0 %v4044
    %4062 = vmatmul.bf16.gmra.mxu0 %v4049
    %v4063 = vpop.f32.mrf.mxu0
    %v4064 = vadd.f32 %v4027, %v4063
    %v4065 = vpop.f32.mrf.mxu0
    %v4066 = vadd.f32 %v4029, %v4065
    %4067 = vmatmul.bf16.gmra.mxu0 %v4052
    %v4068 = vpop.f32.mrf.mxu0
    %v4069 = vadd.f32 %v4032, %v4068
    %v4070 = vpop.f32.mrf.mxu0
    %v4071 = vadd.f32 %v4034, %v4070
    %4072 = vdwg.mxu0
    %v4073 = vld [vmem:[#allocation2 + $0x320] sm:$0xf]
    %v4074 = vld [vmem:[#allocation2 + $0x324] sm:$0xf]
    %v4075 = vld [vmem:[#allocation2 + $0x328] sm:$0xf]
    %v4076 = vld [vmem:[#allocation2 + $0x32c] sm:$0xf]
    %v4077 = vpack.c.bf16 %v3970, %v3968
    %v4078 = vpack.c.bf16 %v3975, %v3973
    %v4083 = vunpack.c.l.b16 %v4073
    %v4084 = vunpack.c.l.b16 %v4074
    %v4085 = vunpack.c.l.b16 %v4075
    %v4086 = vunpack.c.l.b16 %v4076
    %v4087 = vpack.c.b16 %v4084, %v4083
    %v4088 = vpack.c.b16 %v4086, %v4085
    %v4092 = vsel %vm1187, %v4077, 0
    %v4095 = vsel %vm1187, %v4078, 0
    %4097 = vmatpush.bf16.msra.mxu0 0
    %4098 = vmatpush.bf16.msra.mxu0 0
    %4099 = vmatpush.bf16.msra.mxu0 0
    %4100 = vmatpush.bf16.msra.mxu0 0
    %4101 = vmatpush.bf16.msra.mxu0 0
    %4102 = vmatpush.bf16.msra.mxu0 0
    %4103 = vmatpush.bf16.msra.mxu0 %v4088
    %4104 = vmatpush.bf16.msra.mxu0 %v4087
    %4105 = vmatmul.bf16.gmra.mxu0 %v4092
    %v4106 = vpop.f32.mrf.mxu0
    %v4107 = vadd.f32 0.0, %v4106
    %v4108 = vpop.f32.mrf.mxu0
    %v4109 = vadd.f32 0.0, %v4108
    %4110 = vmatmul.bf16.gmra.mxu0 %v4095
    %v4111 = vpop.f32.mrf.mxu0
    %v4112 = vadd.f32 0.0, %v4111
    %v4113 = vpop.f32.mrf.mxu0
    %v4114 = vadd.f32 0.0, %v4113
    %4115 = vdwg.mxu0
    %v4116 = vadd.f32 %v4064, %v4107
    %v4117 = vadd.f32 %v4066, %v4109
    %v4118 = vadd.f32 %v4069, %v4112
    %v4119 = vadd.f32 %v4071, %v4114
    %v4120 = vld [vmem:[#allocation2 + $0x330] sm:$0xf]
    %v4121 = vld [vmem:[#allocation2 + $0x334] sm:$0xf]
    %v4122 = vld [vmem:[#allocation2 + $0x338] sm:$0xf]
    %v4123 = vld [vmem:[#allocation2 + $0x33c] sm:$0xf]
    %v4124 = vpack.c.bf16 %v3980, %v3978
    %v4125 = vpack.c.bf16 %v3985, %v3983
    %v4130 = vunpack.c.l.b16 %v4120
    %v4131 = vunpack.c.l.b16 %v4121
    %v4132 = vunpack.c.l.b16 %v4122
    %v4133 = vunpack.c.l.b16 %v4123
    %v4134 = vpack.c.b16 %v4131, %v4130
    %v4135 = vpack.c.b16 %v4133, %v4132
    %v4139 = vsel %vm1187, %v4124, 0
    %v4142 = vsel %vm1187, %v4125, 0
    %4144 = vmatpush.bf16.msra.mxu0 0
    %4145 = vmatpush.bf16.msra.mxu0 0
    %4146 = vmatpush.bf16.msra.mxu0 0
    %4147 = vmatpush.bf16.msra.mxu0 0
    %4148 = vmatpush.bf16.msra.mxu0 0
    %4149 = vmatpush.bf16.msra.mxu0 0
    %4150 = vmatpush.bf16.msra.mxu0 %v4135
    %4151 = vmatpush.bf16.msra.mxu0 %v4134
    %4152 = vmatmul.bf16.gmra.mxu0 %v4139
    %v4153 = vpop.f32.mrf.mxu0
    %v4154 = vadd.f32 0.0, %v4153
    %v4155 = vpop.f32.mrf.mxu0
    %v4156 = vadd.f32 0.0, %v4155
    %4157 = vmatmul.bf16.gmra.mxu0 %v4142
    %v4158 = vpop.f32.mrf.mxu0
    %v4159 = vadd.f32 0.0, %v4158
    %v4160 = vpop.f32.mrf.mxu0
    %v4161 = vadd.f32 0.0, %v4160
    %4162 = vdwg.mxu0
    %v4163 = vadd.f32 %v4116, %v4154
    %v4164 = vadd.f32 %v4117, %v4156
    %v4165 = vadd.f32 %v4118, %v4159
    %v4166 = vadd.f32 %v4119, %v4161
    %v4167 = vld [vmem:[#allocation4 + $0x1e8] sm:$0xf]
    %v4168 = vld [vmem:[#allocation4 + $0x1f0] sm:$0xff]
    %v4169 = vld [vmem:[#allocation4 + $0x1f8] sm:$0xff]
    %v4170 = vld [vmem:[#allocation4 + $0x200] sm:$0xff]
    %v4171 = vld [vmem:[#allocation4 + $0x208] sm:$0xff]
    %v4172 = vld [vmem:[#allocation4 + $0x210] sm:$0xf]
    %v4173 = vld [vmem:[#allocation4 + $0x218] sm:$0xf]
    %vm4174 = vcmask 556032
    %v4175 = vsel %vm4174, %v4163, 0.0
    %4176 = vadd.xlane.f32.xlu0 %v4175
    %v4177 = vpop.xlane.xlu0 %4176
    %v4178 = vsel %vm4174, %v4164, 0.0
    %4179 = vadd.xlane.f32.xlu0 %v4178
    %v4180 = vpop.xlane.xlu0 %4179
    %v4181 = vsel %vm4174, %v4165, 0.0
    %4182 = vadd.xlane.f32.xlu0 %v4181
    %v4183 = vpop.xlane.xlu0 %4182
    %v4184 = vsel %vm4174, %v4166, 0.0
    %4185 = vadd.xlane.f32.xlu0 %v4184
    %v4186 = vpop.xlane.xlu0 %4185
    %v4187 = vmul.f32 %v4163, %v4163
    %v4188 = vmul.f32 %v4164, %v4164
    %v4189 = vmul.f32 %v4165, %v4165
    %v4190 = vmul.f32 %v4166, %v4166
    %v4191 = vsel %vm4174, %v4187, 0.0
    %4192 = vadd.xlane.f32.xlu0 %v4191
    %v4193 = vpop.xlane.xlu0 %4192
    %v4194 = vsel %vm4174, %v4188, 0.0
    %4195 = vadd.xlane.f32.xlu0 %v4194
    %v4196 = vpop.xlane.xlu0 %4195
    %v4197 = vsel %vm4174, %v4189, 0.0
    %4198 = vadd.xlane.f32.xlu0 %v4197
    %v4199 = vpop.xlane.xlu0 %4198
    %v4200 = vsel %vm4174, %v4190, 0.0
    %4201 = vadd.xlane.f32.xlu0 %v4200
    %v4202 = vpop.xlane.xlu0 %4201
    %v4204 = vsel %vm1187, %v4167, 0
    %4206 = vmatpush.msra.mxu0 0.0
    %4207 = vmatpush.msra.mxu0 0.0
    %4208 = vmatpush.msra.mxu0 0.0
    %4209 = vmatpush.msra.mxu0 0.0
    %4210 = vmatpush.msra.mxu0 0.0
    %4211 = vmatpush.msra.mxu0 0.0
    %4212 = vmatpush.msra.mxu0 0.0
    %4213 = vmatpush.msra.mxu0 0.0
    %4214 = vmatpush.msra.mxu0 0.0
    %4215 = vmatpush.msra.mxu0 0.0
    %4216 = vmatpush.msra.mxu0 0.0
    %4217 = vmatpush.msra.mxu0 0.0
    %4218 = vmatpush.msra.mxu0 %v4186
    %4219 = vmatpush.msra.mxu0 %v4183
    %4220 = vmatpush.msra.mxu0 %v4180
    %4221 = vmatpush.msra.mxu0 %v4177
    %4222 = vmatmul.f32.gmra.mxu0 %v4204
    %v4223 = vpop.f32.mrf.mxu0
    %v4224 = vadd.f32 0.0, %v4223
    %4225 = vdwg.mxu0
    %v4226 = vmul.f32 %v4224, 0.0018382353
    %4227 = vmatpush.msra.mxu0 0.0
    %4228 = vmatpush.msra.mxu0 0.0
    %4229 = vmatpush.msra.mxu0 0.0
    %4230 = vmatpush.msra.mxu0 0.0
    %4231 = vmatpush.msra.mxu0 0.0
    %4232 = vmatpush.msra.mxu0 0.0
    %4233 = vmatpush.msra.mxu0 0.0
    %4234 = vmatpush.msra.mxu0 0.0
    %4235 = vmatpush.msra.mxu0 0.0
    %4236 = vmatpush.msra.mxu0 0.0
    %4237 = vmatpush.msra.mxu0 0.0
    %4238 = vmatpush.msra.mxu0 0.0
    %4239 = vmatpush.msra.mxu0 %v4202
    %4240 = vmatpush.msra.mxu0 %v4199
    %4241 = vmatpush.msra.mxu0 %v4196
    %4242 = vmatpush.msra.mxu0 %v4193
    %4243 = vmatmul.f32.gmra.mxu0 %v4204
    %v4244 = vpop.f32.mrf.mxu0
    %v4245 = vadd.f32 0.0, %v4244
    %4246 = vdwg.mxu0
    %v4247 = vmul.f32 %v4245, 0.0018382353
    %v4248 = vmul.f32 %v4226, %v4226
    %v4249 = vsub.f32 %v4247, %v4248
    %v4250 = vadd.f32 %v4249, 0.8
    %v4251 = vrsqrt.pop %v4250
    %v4252 = vmul.f32 %v4251, %v4250
    %v4253 = vmul.f32 %v4252, %v4251
    %v4254 = vmul.f32 0.5, %v4253
    %v4255 = vsub.f32 1.5, %v4254
    %v4256 = vmul.f32 %v4251, %v4255
    %vm4257 = vweird.f32 %v4250
    %vm4258 = vweird.f32 %v4251
    %vm4259 = vmor %vm4257, %vm4258
    %v4260 = vsel %vm4259, %v4251, %v4256
    %v4261 = vmul.f32 %v4172, %v4260
    %v4262 = vmul.f32 %v4226, %v4261
    %v4263 = vsub.f32 %v4173, %v4262
    %vm4264 = vcmask 31744
    %v4266 = vsel %vm4264, %v4168, 0
    %v4269 = vsel %vm4264, %v4169, 0
    %v4272 = vsel %vm4264, %v4170, 0
    %v4275 = vsel %vm4264, %v4171, 0
    %v4278 = vsel %vm370, %v4261, 0
    %4280 = vmatpush.msra.mxu0 0.0
    %4281 = vmatpush.msra.mxu0 0.0
    %4282 = vmatpush.msra.mxu0 0.0
    %4283 = vmatpush.msra.mxu0 0.0
    %4284 = vmatpush.msra.mxu0 0.0
    %4285 = vmatpush.msra.mxu0 0.0
    %4286 = vmatpush.msra.mxu0 0.0
    %4287 = vmatpush.msra.mxu0 0.0
    %4288 = vmatpush.msra.mxu0 0.0
    %4289 = vmatpush.msra.mxu0 0.0
    %4290 = vmatpush.msra.mxu0 0.0
    %4291 = vmatpush.msra.mxu0 0.0
    %4292 = vmatpush.msra.mxu0 0.0
    %4293 = vmatpush.msra.mxu0 0.0
    %4294 = vmatpush.msra.mxu0 0.0
    %4295 = vmatpush.msra.mxu0 %v4278
    %4296 = vmatmul.f32.gmra.mxu0 %v4266
    %v4297 = vpop.f32.mrf.mxu0
    %v4298 = vadd.f32 0.0, %v4297
    %4299 = vmatmul.f32.gmra.mxu0 %v4269
    %v4300 = vpop.f32.mrf.mxu0
    %v4301 = vadd.f32 0.0, %v4300
    %4302 = vmatmul.f32.gmra.mxu0 %v4272
    %v4303 = vpop.f32.mrf.mxu0
    %v4304 = vadd.f32 0.0, %v4303
    %4305 = vmatmul.f32.gmra.mxu0 %v4275
    %v4306 = vpop.f32.mrf.mxu0
    %v4307 = vadd.f32 0.0, %v4306
    %4308 = vdwg.mxu0
    %v4310 = vsel %vm370, %v4263, 0
    %4312 = vmatpush.msra.mxu0 0.0
    %4313 = vmatpush.msra.mxu0 0.0
    %4314 = vmatpush.msra.mxu0 0.0
    %4315 = vmatpush.msra.mxu0 0.0
    %4316 = vmatpush.msra.mxu0 0.0
    %4317 = vmatpush.msra.mxu0 0.0
    %4318 = vmatpush.msra.mxu0 0.0
    %4319 = vmatpush.msra.mxu0 0.0
    %4320 = vmatpush.msra.mxu0 0.0
    %4321 = vmatpush.msra.mxu0 0.0
    %4322 = vmatpush.msra.mxu0 0.0
    %4323 = vmatpush.msra.mxu0 0.0
    %4324 = vmatpush.msra.mxu0 0.0
    %4325 = vmatpush.msra.mxu0 0.0
    %4326 = vmatpush.msra.mxu0 0.0
    %4327 = vmatpush.msra.mxu0 %v4310
    %4328 = vmatmul.f32.gmra.mxu0 %v4266
    %v4329 = vpop.f32.mrf.mxu0
    %v4330 = vadd.f32 0.0, %v4329
    %4331 = vmatmul.f32.gmra.mxu0 %v4269
    %v4332 = vpop.f32.mrf.mxu0
    %v4333 = vadd.f32 0.0, %v4332
    %4334 = vmatmul.f32.gmra.mxu0 %v4272
    %v4335 = vpop.f32.mrf.mxu0
    %v4336 = vadd.f32 0.0, %v4335
    %4337 = vmatmul.f32.gmra.mxu0 %v4275
    %v4338 = vpop.f32.mrf.mxu0
    %v4339 = vadd.f32 0.0, %v4338
    %4340 = vdwg.mxu0
    %4342 = vset.pattern.permute.xlu0 0
    %4343 = vperm.xlu0 %4342, %v4298
    %v4344 = vpop.permute.xlu0 %4343
    %4347 = vset.pattern.permute.xlu0 0
    %4348 = vperm.xlu0 %4347, %v4301
    %v4349 = vpop.permute.xlu0 %4348
    %4352 = vset.pattern.permute.xlu0 0
    %4353 = vperm.xlu0 %4352, %v4304
    %v4354 = vpop.permute.xlu0 %4353
    %4357 = vset.pattern.permute.xlu0 0
    %4358 = vperm.xlu0 %4357, %v4307
    %v4359 = vpop.permute.xlu0 %4358
    %v4361 = vmul.f32 %v4163, %v4344
    %v4362 = vmul.f32 %v4164, %v4349
    %v4363 = vmul.f32 %v4165, %v4354
    %v4364 = vmul.f32 %v4166, %v4359
    %4366 = vset.pattern.permute.xlu0 0
    %4367 = vperm.xlu0 %4366, %v4330
    %v4368 = vpop.permute.xlu0 %4367
    %4371 = vset.pattern.permute.xlu0 0
    %4372 = vperm.xlu0 %4371, %v4333
    %v4373 = vpop.permute.xlu0 %4372
    %4376 = vset.pattern.permute.xlu0 0
    %4377 = vperm.xlu0 %4376, %v4336
    %v4378 = vpop.permute.xlu0 %4377
    %4381 = vset.pattern.permute.xlu0 0
    %4382 = vperm.xlu0 %4381, %v4339
    %v4383 = vpop.permute.xlu0 %4382
    %v4385 = vadd.f32 %v4361, %v4368
    %v4386 = vadd.f32 %v4362, %v4373
    %v4387 = vadd.f32 %v4363, %v4378
    %v4388 = vadd.f32 %v4364, %v4383
    %vm4389 = vcmp.ge.f32.partialorder %v4385, 0.0
    %vm4390 = vcmp.ge.f32.partialorder %v4386, 0.0
    %vm4391 = vcmp.ge.f32.partialorder %v4387, 0.0
    %vm4392 = vcmp.ge.f32.partialorder %v4388, 0.0
    %v4393 = vmul.f32 %v4385, 0.2
    %v4394 = vmul.f32 %v4386, 0.2
    %v4395 = vmul.f32 %v4387, 0.2
    %v4396 = vmul.f32 %v4388, 0.2
    %v4397 = vsel %vm4389, %v4385, %v4393
    %v4398 = vsel %vm4390, %v4386, %v4394
    %v4399 = vsel %vm4391, %v4387, %v4395
    %v4400 = vsel %vm4392, %v4388, %v4396
    %v4401 = vld [vmem:[#allocation2 + $0x340] sm:$0xf]
    %v4402 = vld [vmem:[#allocation2 + $0x344] sm:$0xf]
    %v4403 = vld [vmem:[#allocation2 + $0x348] sm:$0xf]
    %v4404 = vpack.c.bf16 %v4398, %v4397
    %v4405 = vpack.c.bf16 %v4400, %v4399
    %v4409 = vunpack.c.l.b16 %v4401
    %v4410 = vunpack.c.l.b16 %v4402
    %v4411 = vunpack.c.l.b16 %v4403
    %v4412 = vpack.c.b16 %v4410, %v4409
    %v4413 = vpack.c.b16 %v4411, %v4411
    %v4415 = vsel %vm1187, %v4412, 0
    %v4418 = vsel %vm1187, %v4413, 0
    %4420 = vmatpush.bf16.msra.mxu0 0
    %4421 = vmatpush.bf16.msra.mxu0 0
    %4422 = vmatpush.bf16.msra.mxu0 0
    %4423 = vmatpush.bf16.msra.mxu0 0
    %4424 = vmatpush.bf16.msra.mxu0 0
    %4425 = vmatpush.bf16.msra.mxu0 0
    %4426 = vmatpush.bf16.msra.mxu0 %v4405
    %4427 = vmatpush.bf16.msra.mxu0 %v4404
    %4428 = vmatmul.bf16.gmra.mxu0 %v4415
    %v4429 = vpop.f32.mrf.mxu0
    %v4430 = vadd.f32 0.0, %v4429
    %v4431 = vpop.f32.mrf.mxu0
    %v4432 = vadd.f32 0.0, %v4431
    %4433 = vmatmul.bf16.gmra.mxu0 %v4418
    %v4434 = vpop.f32.mrf.mxu0
    %v4435 = vadd.f32 0.0, %v4434
    %v4436 = vpop.f32.mrf.mxu0
    %4437 = vdwg.mxu0
    %v4438 = vld [vmem:[#allocation2 + $0x34c] sm:$0xf]
    %v4439 = vld [vmem:[#allocation2 + $0x350] sm:$0xf]
    %v4440 = vld [vmem:[#allocation2 + $0x354] sm:$0xf]
    %v4441 = vld [vmem:[#allocation2 + $0x358] sm:$0xf]
    %v4442 = vld [vmem:[#allocation2 + $0x35c] sm:$0xf]
    %v4443 = vld [vmem:[#allocation2 + $0x360] sm:$0xf]
    %v4444 = vld [vmem:[#allocation2 + $0x364] sm:$0xf]
    %v4445 = vld [vmem:[#allocation2 + $0x368] sm:$0xf]
    %v4446 = vld [vmem:[#allocation2 + $0x36c] sm:$0x3]
    %v4447 = vpack.c.bf16 %v4430, %v4430
    %v4448 = vld [vmem:[#allocation2 + $0x370] sm:$0xf]
    %v4449 = vld [vmem:[#allocation2 + $0x374] sm:$0xf]
    %v4450 = vld [vmem:[#allocation2 + $0x378] sm:$0xf]
    %v4451 = vld [vmem:[#allocation2 + $0x37c] sm:$0xf]
    %v4452 = vld [vmem:[#allocation2 + $0x380] sm:$0xf]
    %v4453 = vld [vmem:[#allocation2 + $0x384] sm:$0xf]
    %v4454 = vld [vmem:[#allocation2 + $0x388] sm:$0xf]
    %v4455 = vld [vmem:[#allocation2 + $0x38c] sm:$0xf]
    %v4456 = vld [vmem:[#allocation2 + $0x390] sm:$0x3]
    %v4457 = vpack.c.bf16 %v4432, %v4432
    %v4467 = vunpack.c.l.b16 %v4448
    %v4468 = vunpack.c.l.b16 %v4449
    %v4469 = vunpack.c.l.b16 %v4450
    %v4470 = vunpack.c.l.b16 %v4451
    %v4471 = vunpack.c.l.b16 %v4452
    %v4472 = vunpack.c.l.b16 %v4453
    %v4473 = vunpack.c.l.b16 %v4454
    %v4474 = vunpack.c.l.b16 %v4455
    %v4475 = vunpack.c.l.b16 %v4456
    %v4476 = vpack.c.b16 %v4468, %v4467
    %v4477 = vpack.c.b16 %v4470, %v4469
    %v4478 = vpack.c.b16 %v4472, %v4471
    %v4479 = vpack.c.b16 %v4474, %v4473
    %v4480 = vpack.c.b16 %v4475, %v4475
    %v4486 = vsel %vm4174, %v4457, 0
    %vm4488 = vcmask 1041408
    %v4490 = vsel %vm4488, %v4480, 0
    %4492 = vmatpush.bf16.msra.mxu0 0
    %4493 = vmatpush.bf16.msra.mxu0 0
    %4494 = vmatpush.bf16.msra.mxu0 0
    %4495 = vmatpush.bf16.msra.mxu0 %v4490
    %4496 = vmatpush.bf16.msra.mxu0 %v4479
    %4497 = vmatpush.bf16.msra.mxu0 %v4478
    %4498 = vmatpush.bf16.msra.mxu0 %v4477
    %4499 = vmatpush.bf16.msra.mxu0 %v4476
    %4500 = vmatmul.bf16.gmra.mxu0 %v4486
    %v4501 = vpop.f32.mrf.mxu0
    %v4502 = vadd.f32 0.0, %v4501
    %v4503 = vpop.f32.mrf.mxu0
    %4504 = vdwg.mxu0
    %v4514 = vunpack.c.l.b16 %v4438
    %v4515 = vunpack.c.l.b16 %v4439
    %v4516 = vunpack.c.l.b16 %v4440
    %v4517 = vunpack.c.l.b16 %v4441
    %v4518 = vunpack.c.l.b16 %v4442
    %v4519 = vunpack.c.l.b16 %v4443
    %v4520 = vunpack.c.l.b16 %v4444
    %v4521 = vunpack.c.l.b16 %v4445
    %v4522 = vunpack.c.l.b16 %v4446
    %v4523 = vpack.c.b16 %v4515, %v4514
    %v4524 = vpack.c.b16 %v4517, %v4516
    %v4525 = vpack.c.b16 %v4519, %v4518
    %v4526 = vpack.c.b16 %v4521, %v4520
    %v4527 = vpack.c.b16 %v4522, %v4522
    %v4533 = vsel %vm4174, %v4447, 0
    %v4536 = vsel %vm4488, %v4527, 0
    %4538 = vmatpush.bf16.msra.mxu0 0
    %4539 = vmatpush.bf16.msra.mxu0 0
    %4540 = vmatpush.bf16.msra.mxu0 0
    %4541 = vmatpush.bf16.msra.mxu0 %v4536
    %4542 = vmatpush.bf16.msra.mxu0 %v4526
    %4543 = vmatpush.bf16.msra.mxu0 %v4525
    %4544 = vmatpush.bf16.msra.mxu0 %v4524
    %4545 = vmatpush.bf16.msra.mxu0 %v4523
    %4546 = vmatmul.bf16.gmra.mxu0 %v4533
    %v4547 = vpop.f32.mrf.mxu0
    %v4548 = vadd.f32 %v4502, %v4547
    %v4549 = vpop.f32.mrf.mxu0
    %4550 = vdwg.mxu0
    %v4551 = vld [vmem:[#allocation2 + $0x394] sm:$0xf]
    %v4552 = vld [vmem:[#allocation2 + $0x398] sm:$0xf]
    %v4553 = vld [vmem:[#allocation2 + $0x39c] sm:$0xf]
    %v4554 = vld [vmem:[#allocation2 + $0x3a0] sm:$0xf]
    %v4555 = vld [vmem:[#allocation2 + $0x3a4] sm:$0xf]
    %v4556 = vld [vmem:[#allocation2 + $0x3a8] sm:$0xf]
    %v4557 = vld [vmem:[#allocation2 + $0x3ac] sm:$0xf]
    %v4558 = vld [vmem:[#allocation2 + $0x3b0] sm:$0xf]
    %v4559 = vld [vmem:[#allocation2 + $0x3b4] sm:$0x3]
    %v4560 = vpack.c.bf16 %v4435, %v4435
    %v4570 = vunpack.c.l.b16 %v4551
    %v4571 = vunpack.c.l.b16 %v4552
    %v4572 = vunpack.c.l.b16 %v4553
    %v4573 = vunpack.c.l.b16 %v4554
    %v4574 = vunpack.c.l.b16 %v4555
    %v4575 = vunpack.c.l.b16 %v4556
    %v4576 = vunpack.c.l.b16 %v4557
    %v4577 = vunpack.c.l.b16 %v4558
    %v4578 = vunpack.c.l.b16 %v4559
    %v4579 = vpack.c.b16 %v4571, %v4570
    %v4580 = vpack.c.b16 %v4573, %v4572
    %v4581 = vpack.c.b16 %v4575, %v4574
    %v4582 = vpack.c.b16 %v4577, %v4576
    %v4583 = vpack.c.b16 %v4578, %v4578
    %v4589 = vsel %vm4174, %v4560, 0
    %v4592 = vsel %vm4488, %v4583, 0
    %4594 = vmatpush.bf16.msra.mxu0 0
    %4595 = vmatpush.bf16.msra.mxu0 0
    %4596 = vmatpush.bf16.msra.mxu0 0
    %4597 = vmatpush.bf16.msra.mxu0 %v4592
    %4598 = vmatpush.bf16.msra.mxu0 %v4582
    %4599 = vmatpush.bf16.msra.mxu0 %v4581
    %4600 = vmatpush.bf16.msra.mxu0 %v4580
    %4601 = vmatpush.bf16.msra.mxu0 %v4579
    %4602 = vmatmul.bf16.gmra.mxu0 %v4589
    %v4603 = vpop.f32.mrf.mxu0
    %v4604 = vadd.f32 0.0, %v4603
    %v4605 = vpop.f32.mrf.mxu0
    %4606 = vdwg.mxu0
    %v4607 = vadd.f32 %v4548, %v4604
    %vm4608 = vcmp.ge.f32.partialorder %v4607, 0.0
    %v4609 = vmul.f32 %v4607, 0.2
    %v4610 = vsel %vm4608, %v4607, %v4609
    %v4611 = vld [vmem:[#allocation2 + $0x3b8] sm:$0x7]
    %v4612 = vpack.c.bf16 %v4610, %v4610
    %v4614 = vsel %vm273, %v4611, 0
    %v4617 = vsel %vm370, %v4612, 0
    %4619 = vmatpush.bf16.msra.mxu0 0
    %4620 = vmatpush.bf16.msra.mxu0 0
    %4621 = vmatpush.bf16.msra.mxu0 0
    %4622 = vmatpush.bf16.msra.mxu0 0
    %4623 = vmatpush.bf16.msra.mxu0 0
    %4624 = vmatpush.bf16.msra.mxu0 0
    %4625 = vmatpush.bf16.msra.mxu0 0
    %4626 = vmatpush.bf16.msra.mxu0 %v4617
    %4627 = vmatmul.bf16.gmra.mxu0 %v4614
    %v4628 = vpop.f32.mrf.mxu0
    %v4629 = vadd.f32 0.0, %v4628
    %v4630 = vpop.f32.mrf.mxu0
    %4631 = vdwg.mxu0
    %v4632 = vld [vmem:[#allocation2 + $0x3bc] sm:$0xf]
    %v4633 = vld [vmem:[#allocation2 + $0x3c0] sm:$0xf]
    %v4634 = vld [vmem:[#allocation2 + $0x3c4] sm:$0xf]
    %v4635 = vld [vmem:[#allocation2 + $0x3c8] sm:$0xf]
    %v4636 = vld [vmem:[#allocation2 + $0x3cc] sm:$0xf]
    %v4637 = vld [vmem:[#allocation2 + $0x3d0] sm:$0xf]
    %v4638 = vld [vmem:[#allocation2 + $0x3d4] sm:$0xf]
    %v4639 = vld [vmem:[#allocation2 + $0x3d8] sm:$0xf]
    %v4640 = vld [vmem:[#allocation2 + $0x3dc] sm:$0x3]
    %v4641 = vpack.c.bf16 %v4629, %v4629
    %v4642 = vld [vmem:[#allocation2 + $0x3e0] sm:$0xf]
    %v4643 = vld [vmem:[#allocation2 + $0x3e4] sm:$0xf]
    %v4644 = vld [vmem:[#allocation2 + $0x3e8] sm:$0xf]
    %v4645 = vld [vmem:[#allocation2 + $0x3ec] sm:$0xf]
    %v4646 = vld [vmem:[#allocation2 + $0x3f0] sm:$0xf]
    %v4647 = vld [vmem:[#allocation2 + $0x3f4] sm:$0xf]
    %v4648 = vld [vmem:[#allocation2 + $0x3f8] sm:$0xf]
    %v4649 = vld [vmem:[#allocation2 + $0x3fc] sm:$0xf]
    %v4650 = vld [vmem:[#allocation2 + $0x400] sm:$0x3]
    %v4652 = vrot.slane %v4641, 1
    %v4662 = vunpack.c.l.b16 %v4642
    %v4663 = vunpack.c.l.b16 %v4643
    %v4664 = vunpack.c.l.b16 %v4644
    %v4665 = vunpack.c.l.b16 %v4645
    %v4666 = vunpack.c.l.b16 %v4646
    %v4667 = vunpack.c.l.b16 %v4647
    %v4668 = vunpack.c.l.b16 %v4648
    %v4669 = vunpack.c.l.b16 %v4649
    %v4670 = vunpack.c.l.b16 %v4650
    %v4671 = vpack.c.b16 %v4663, %v4662
    %v4672 = vpack.c.b16 %v4665, %v4664
    %v4673 = vpack.c.b16 %v4667, %v4666
    %v4674 = vpack.c.b16 %v4669, %v4668
    %v4675 = vpack.c.b16 %v4670, %v4670
    %v4681 = vsel %vm4174, %v4652, 0
    %v4684 = vsel %vm4488, %v4675, 0
    %4686 = vmatpush.bf16.msra.mxu0 0
    %4687 = vmatpush.bf16.msra.mxu0 0
    %4688 = vmatpush.bf16.msra.mxu0 0
    %4689 = vmatpush.bf16.msra.mxu0 %v4684
    %4690 = vmatpush.bf16.msra.mxu0 %v4674
    %4691 = vmatpush.bf16.msra.mxu0 %v4673
    %4692 = vmatpush.bf16.msra.mxu0 %v4672
    %4693 = vmatpush.bf16.msra.mxu0 %v4671
    %4694 = vmatmul.bf16.gmra.mxu0 %v4681
    %v4695 = vpop.f32.mrf.mxu0
    %v4696 = vadd.f32 0.0, %v4695
    %v4697 = vpop.f32.mrf.mxu0
    %4698 = vdwg.mxu0
    %v4708 = vunpack.c.l.b16 %v4632
    %v4709 = vunpack.c.l.b16 %v4633
    %v4710 = vunpack.c.l.b16 %v4634
    %v4711 = vunpack.c.l.b16 %v4635
    %v4712 = vunpack.c.l.b16 %v4636
    %v4713 = vunpack.c.l.b16 %v4637
    %v4714 = vunpack.c.l.b16 %v4638
    %v4715 = vunpack.c.l.b16 %v4639
    %v4716 = vunpack.c.l.b16 %v4640
    %v4717 = vpack.c.b16 %v4709, %v4708
    %v4718 = vpack.c.b16 %v4711, %v4710
    %v4719 = vpack.c.b16 %v4713, %v4712
    %v4720 = vpack.c.b16 %v4715, %v4714
    %v4721 = vpack.c.b16 %v4716, %v4716
    %v4727 = vsel %vm4174, %v4641, 0
    %v4730 = vsel %vm4488, %v4721, 0
    %4732 = vmatpush.bf16.msra.mxu0 0
    %4733 = vmatpush.bf16.msra.mxu0 0
    %4734 = vmatpush.bf16.msra.mxu0 0
    %4735 = vmatpush.bf16.msra.mxu0 %v4730
    %4736 = vmatpush.bf16.msra.mxu0 %v4720
    %4737 = vmatpush.bf16.msra.mxu0 %v4719
    %4738 = vmatpush.bf16.msra.mxu0 %v4718
    %4739 = vmatpush.bf16.msra.mxu0 %v4717
    %4740 = vmatmul.bf16.gmra.mxu0 %v4727
    %v4741 = vpop.f32.mrf.mxu0
    %v4742 = vadd.f32 %v4696, %v4741
    %v4743 = vpop.f32.mrf.mxu0
    %4744 = vdwg.mxu0
    %v4745 = vld [vmem:[#allocation2 + $0x404] sm:$0xf]
    %v4746 = vld [vmem:[#allocation2 + $0x408] sm:$0xf]
    %v4747 = vld [vmem:[#allocation2 + $0x40c] sm:$0xf]
    %v4748 = vld [vmem:[#allocation2 + $0x410] sm:$0xf]
    %v4749 = vld [vmem:[#allocation2 + $0x414] sm:$0xf]
    %v4750 = vld [vmem:[#allocation2 + $0x418] sm:$0xf]
    %v4751 = vld [vmem:[#allocation2 + $0x41c] sm:$0xf]
    %v4752 = vld [vmem:[#allocation2 + $0x420] sm:$0xf]
    %v4753 = vld [vmem:[#allocation2 + $0x424] sm:$0x3]
    %v4754 = vrot.slane %v4641, 2
    %v4764 = vunpack.c.l.b16 %v4745
    %v4765 = vunpack.c.l.b16 %v4746
    %v4766 = vunpack.c.l.b16 %v4747
    %v4767 = vunpack.c.l.b16 %v4748
    %v4768 = vunpack.c.l.b16 %v4749
    %v4769 = vunpack.c.l.b16 %v4750
    %v4770 = vunpack.c.l.b16 %v4751
    %v4771 = vunpack.c.l.b16 %v4752
    %v4772 = vunpack.c.l.b16 %v4753
    %v4773 = vpack.c.b16 %v4765, %v4764
    %v4774 = vpack.c.b16 %v4767, %v4766
    %v4775 = vpack.c.b16 %v4769, %v4768
    %v4776 = vpack.c.b16 %v4771, %v4770
    %v4777 = vpack.c.b16 %v4772, %v4772
    %v4783 = vsel %vm4174, %v4754, 0
    %v4786 = vsel %vm4488, %v4777, 0
    %4788 = vmatpush.bf16.msra.mxu0 0
    %4789 = vmatpush.bf16.msra.mxu0 0
    %4790 = vmatpush.bf16.msra.mxu0 0
    %4791 = vmatpush.bf16.msra.mxu0 %v4786
    %4792 = vmatpush.bf16.msra.mxu0 %v4776
    %4793 = vmatpush.bf16.msra.mxu0 %v4775
    %4794 = vmatpush.bf16.msra.mxu0 %v4774
    %4795 = vmatpush.bf16.msra.mxu0 %v4773
    %4796 = vmatmul.bf16.gmra.mxu0 %v4783
    %v4797 = vpop.f32.mrf.mxu0
    %v4798 = vadd.f32 0.0, %v4797
    %v4799 = vpop.f32.mrf.mxu0
    %4800 = vdwg.mxu0
    %v4801 = vadd.f32 %v4742, %v4798
    %v4802 = vtanh.pop %v4801
    %vm4803 = vcmask 549888
    %4804 = vst.msk [vmem:[%s3] sm:$0x3] %vm4803, %v4802
    // Predicated region
    $region22: #{forward.1} parent=1 // pred_check
      _
    $region23: #{forward.1} parent=1 // pred_check_branch
      %4806 = sbr.rel (0) target = $region25
    $region24: #{forward.1} parent=1 // pred_region
      _
    $region25: #{forward.1} parent=1 // pred_fallthru
      _
    // Predicated region
    $region26: #{forward.1} parent=1 // pred_check
      _
    $region27: #{forward.1} parent=1 // pred_check_branch
      %4808 = sbr.rel (0) target = $region29
    $region28: #{forward.1} parent=1 // pred_region
      _
    $region29: #{forward.1} parent=1 // pred_fallthru
      _
    %4809 = vsyncpa [#allocation3], 1
    %4810 = vsyncpa [#allocation5], 1

</llo_original>
